<compile_context>
chip_gen: v7x
topology: tpu7x:2x2x1
jax: 0.10.0
libtpu: 0.0.40
codegen_flags: <defaults>
</compile_context>

<pallas_src>
import functools

import jax
import jax.numpy as jnp
from jax import lax
from jax.experimental import pallas as pl
from jax.experimental.pallas import tpu as pltpu


def _residual_stack_kernel(x_ref, w1_ref, w2_ref, o_ref, pad_ref, *,
                           H, W, C, CH, L):
    """Fused ResidualStack for one image.

    x_ref  : (1, H, W, C) f32     input activations (pre-ReLU)
    w1_ref : (L*9, C, CH) bf16    3x3 conv weights, tap index t = ky*3 + kx
    w2_ref : (L, CH, C)   bf16    1x1 conv weights
    o_ref  : (1, H, W, C) f32     output; also holds the running activation
    pad_ref: ((H+2)*W, C) bf16    flat, H-padded ReLU'd activation
                                  (flat row i*W + w  <->  padded pixel (i, w))
    """
    HW = H * W

    # Zero ONLY the two 1-row halo slabs; the interior is rewritten per layer.
    # (Not guarded by program_id == 0: with a "parallel" batch axis each core
    # owns its own scratch.)
    halo = jnp.zeros((W, C), jnp.bfloat16)
    pad_ref[0:W] = halo
    pad_ref[(H + 1) * W:(H + 2) * W] = halo

    # L is small (typically 2): keep the layer loop unrolled.  For large L,
    # switch to lax.fori_loop with dynamic w1_ref/w2_ref indexing.
    for l in range(L):
        # Running activation lives in the output block -> VMEM-resident across
        # all layers; exactly one HBM read (x) and one HBM write (o) per image.
        act = x_ref[0] if l == 0 else o_ref[0]              # (H, W, C) f32
        relu = jnp.maximum(act, 0.0).astype(jnp.bfloat16)   # ReLU once, bf16 for MXU
        pad_ref[W:W + HW] = relu.reshape(HW, C)             # interior rows 1..H

        # 3x3 conv as 9 accumulated K=C MXU matmuls (bf16 x bf16 -> f32 acc).
        # Vertical taps (ky) come from sublane-aligned slabs of pad_ref;
        # horizontal taps (kx) are accumulated separately and aligned below.
        y_kx = [None, None, None]
        for ky in range(3):
            row = pad_ref[ky * W:ky * W + HW]                # (HW, C) bf16, aligned
            for kx in range(3):
                p = jnp.dot(row, w1_ref[l * 9 + ky * 3 + kx],
                            preferred_element_type=jnp.float32)   # (HW, CH)
                y_kx[kx] = p if y_kx[kx] is None else y_kx[kx] + p

        # Horizontal alignment on the small (H, W, CH) partials:
        #   out[:, w] = y_kx0[:, w-1] + y_kx1[:, w] + y_kx2[:, w+1]   (zeros at edges)
        yl = y_kx[0].reshape(H, W, CH)
        yc = y_kx[1].reshape(H, W, CH)
        yr = y_kx[2].reshape(H, W, CH)
        zero_col = jnp.zeros((H, 1, CH), jnp.float32)
        y = (yc
             + jnp.concatenate([zero_col, yl[:, :W - 1, :]], axis=1)
             + jnp.concatenate([yr[:, 1:, :], zero_col], axis=1))

        y = jnp.maximum(y, 0.0).astype(jnp.bfloat16)         # ReLU before 1x1 conv
        z = jnp.dot(y.reshape(HW, CH), w2_ref[l],
                    preferred_element_type=jnp.float32)      # (HW, C) f32, MXU

        new = act + z.reshape(H, W, C)                       # residual add (f32)
        if l == L - 1:
            new = jnp.maximum(new, 0.0)                      # fused final F.relu
        o_ref[0] = new


def residual_stack(x_nhwc, params):
    """ResidualStack.forward on NHWC activations.

    x_nhwc : (N, H, W, C) f32
    params : list of L tuples (w1, w2) with PyTorch conv weight shapes:
             w1: (CH, C, 3, 3)  [OIHW 3x3, bias-free]
             w2: (C, CH, 1, 1)  [OIHW 1x1, bias-free]
    """
    N, H, W, C = x_nhwc.shape
    L = len(params)
    assert L >= 1
    CH = params[0][0].shape[0]
    assert params[0][1].shape[0] == C, "residual add needs in_channels == num_hiddens"
    assert W % 8 == 0, "W must be a multiple of 8 (sublane-aligned row slabs)"

    # Matmul-form weights, stacked over layers, bf16 for the MXU (f32 accumulate
    # inside the kernel).  Constant index_map -> DMA'd once, resident in VMEM.
    w1_all = jnp.stack(
        [jnp.transpose(w1, (2, 3, 1, 0)).reshape(9, C, CH) for (w1, _) in params]
    ).reshape(L * 9, C, CH).astype(jnp.bfloat16)
    w2_all = jnp.stack(
        [jnp.transpose(w2[:, :, 0, 0], (1, 0)) for (_, w2) in params]
    ).astype(jnp.bfloat16)                                    # (L, CH, C)

    kernel = functools.partial(_residual_stack_kernel, H=H, W=W, C=C, CH=CH, L=L)

    flops = 2 * N * L * H * W * C * CH * 10                   # (9*C*CH + CH*C) MACs / px
    bytes_accessed = (2 * N * H * W * C * 4                   # read x + write out (f32)
                      + (L * 9 * C * CH + L * CH * C) * 2)    # bf16 weights

    out = pl.pallas_call(
        kernel,
        out_shape=jax.ShapeDtypeStruct((N, H, W, C), jnp.float32),
        grid_spec=pltpu.PrefetchScalarGridSpec(
            num_scalar_prefetch=0,
            grid=(N,),
            in_specs=[
                pl.BlockSpec((1, H, W, C), lambda n: (n, 0, 0, 0)),
                pl.BlockSpec((L * 9, C, CH), lambda n: (0, 0, 0)),
                pl.BlockSpec((L, CH, C), lambda n: (0, 0, 0)),
            ],
            out_specs=pl.BlockSpec((1, H, W, C), lambda n: (n, 0, 0, 0)),
            scratch_shapes=[
                pltpu.VMEM(((H + 2) * W, C), jnp.bfloat16),    # flat H-padded ReLU'd act
            ],
        ),
        compiler_params=pltpu.CompilerParams(
            dimension_semantics=("parallel",),                 # megacore sharding (v7x)
            vmem_limit_bytes=48 * 1024 * 1024,                 # explicit, with headroom
        ),
        cost_estimate=pl.CostEstimate(
            flops=flops, transcendentals=0, bytes_accessed=bytes_accessed),
    )(x_nhwc, w1_all, w2_all)
    return out


# ---------------- pure-JAX reference (for correctness check) ----------------
def residual_stack_ref(x_nhwc, params, mxu_bf16=False):
    """f32 reference.  mxu_bf16=True mimics the kernel's bf16 MXU operands
    (operands rounded to bf16, accumulation in f32)."""
    def q(a):
        return a.astype(jnp.bfloat16).astype(jnp.float32) if mxu_bf16 else a

    x = x_nhwc
    for w1, w2 in params:
        h = q(jax.nn.relu(x))
        k1 = q(jnp.transpose(w1, (2, 3, 1, 0)))               # OIHW -> HWIO
        y = lax.conv_general_dilated(
            h, k1, (1, 1), "SAME",
            dimension_numbers=("NHWC", "HWIO", "NHWC"),
            precision=lax.Precision.HIGHEST)
        y = q(jax.nn.relu(y))
        k2 = q(jnp.transpose(w2, (2, 3, 1, 0)))
        z = lax.conv_general_dilated(
            y, k2, (1, 1), "SAME",
            dimension_numbers=("NHWC", "HWIO", "NHWC"),
            precision=lax.Precision.HIGHEST)
        x = x + z
    return jax.nn.relu(x)


if __name__ == "__main__":
    # VQ-VAE-consistent channel counts (num_hiddens = 128, num_residual_hiddens
    # = 32, 2 residual layers) at a small batch / spatial size.  C = 128 keeps
    # the lane dimension dense, as in the real module.
    N, H, W = 2, 16, 16
    C = 128     # in_channels == num_hiddens (required by the residual add)
    CH = 32     # num_residual_hiddens
    n_layers = 2

    key = jax.random.PRNGKey(0)
    keys = jax.random.split(key, 1 + 2 * n_layers)

    # PyTorch-style NCHW input, transposed to NHWC for the kernel (glue).
    x_nchw = jax.random.normal(keys[0], (N, C, H, W), dtype=jnp.float32)
    x_nhwc = jnp.transpose(x_nchw, (0, 2, 3, 1))

    # Deterministic synthetic weights (shapes from nn.Conv2d in __init__).
    params = []
    for i in range(n_layers):
        w1 = 0.1 * jax.random.normal(keys[1 + 2 * i], (CH, C, 3, 3), jnp.float32)
        w2 = 0.1 * jax.random.normal(keys[2 + 2 * i], (C, CH, 1, 1), jnp.float32)
        params.append((w1, w2))

    out = jax.block_until_ready(residual_stack(x_nhwc, params))

    ref_bf16 = residual_stack_ref(x_nhwc, params, mxu_bf16=True)   # same operand rounding
    ref_f32 = residual_stack_ref(x_nhwc, params)                   # exact module semantics

    assert out.shape == (N, H, W, C)
    # Tight check vs a reference using the same bf16 MXU-operand rounding
    # (differences are f32 accumulation order only).
    assert jnp.allclose(out, ref_bf16, atol=2e-2, rtol=2e-2), \
        "mismatch vs bf16-operand reference"
    # Looser check vs the exact f32 module semantics (difference is just the
    # bf16 operand rounding introduced for MXU throughput).
    assert jnp.allclose(out, ref_f32, atol=2.5e-1, rtol=2.5e-1), \
        "mismatch vs f32 module reference"
    print("KERNEL_OK")
</pallas_src>

<mosaic_0001>
module attributes {stable_mosaic.version = 11 : i64} {
  func.func @_residual_stack_kernel(%arg0: i32, %arg1: memref<1x16x16x128xf32, #tpu.memory_space<vmem>>, %arg2: memref<18x128x32xbf16, #tpu.memory_space<vmem>>, %arg3: memref<2x32x128xbf16, #tpu.memory_space<vmem>>, %arg4: memref<1x16x16x128xf32, #tpu.memory_space<vmem>>, %arg5: memref<288x128xbf16, #tpu.memory_space<vmem>>) attributes {dimension_semantics = [#tpu.dimension_semantics<parallel>], iteration_bounds = array<i64: 2>, scalar_prefetch = 0 : i64, scratch_operands = 1 : i64, tpu.core_type = #tpu.core_type<tc>, window_params = [{transform_indices = @transform_0, window_bounds = array<i64: 1, 16, 16, 128>}, {pipeline_mode = #tpu.pipeline_mode<synchronous>, transform_indices = @transform_1, window_bounds = array<i64: 18, 128, 32>}, {pipeline_mode = #tpu.pipeline_mode<synchronous>, transform_indices = @transform_2, window_bounds = array<i64: 2, 32, 128>}, {transform_indices = @transform_3, window_bounds = array<i64: 1, 16, 16, 128>}]} {
    %cst = arith.constant 0.000000e+00 : bf16
    %0 = vector.broadcast %cst : bf16 to vector<16x128xbf16>
    %c0 = arith.constant 0 : index
    %c0_0 = arith.constant 0 : index
    %1 = vector.load %arg5[%c0, %c0_0] : memref<288x128xbf16, #tpu.memory_space<vmem>>, vector<16x128xbf16>
    tpu.vector_store %arg5[%c0, %c0_0], %0 {strides = array<i32>} : memref<288x128xbf16, #tpu.memory_space<vmem>>, vector<16x128xbf16>,
    %c272 = arith.constant 272 : index
    %c0_1 = arith.constant 0 : index
    %2 = vector.load %arg5[%c272, %c0_1] : memref<288x128xbf16, #tpu.memory_space<vmem>>, vector<16x128xbf16>
    tpu.vector_store %arg5[%c272, %c0_1], %0 {strides = array<i32>} : memref<288x128xbf16, #tpu.memory_space<vmem>>, vector<16x128xbf16>,
    %c0_2 = arith.constant 0 : index
    %c0_3 = arith.constant 0 : index
    %c0_4 = arith.constant 0 : index
    %c0_5 = arith.constant 0 : index
    %3 = vector.load %arg1[%c0_2, %c0_3, %c0_4, %c0_5] : memref<1x16x16x128xf32, #tpu.memory_space<vmem>>, vector<1x16x16x128xf32>
    %4 = vector.shape_cast %3 : vector<1x16x16x128xf32> to vector<16x16x128xf32>
    %cst_6 = arith.constant 0.000000e+00 : f32
    %5 = vector.broadcast %cst_6 : f32 to vector<16x16x128xf32>
    %6 = arith.maximumf %4, %5 : vector<16x16x128xf32>
    %7 = arith.truncf %6 : vector<16x16x128xf32> to vector<16x16x128xbf16>
    %8 = vector.shape_cast %7 : vector<16x16x128xbf16> to vector<256x128xbf16>
    %c16 = arith.constant 16 : index
    %c0_7 = arith.constant 0 : index
    %9 = vector.load %arg5[%c16, %c0_7] : memref<288x128xbf16, #tpu.memory_space<vmem>>, vector<256x128xbf16>
    tpu.vector_store %arg5[%c16, %c0_7], %8 {strides = array<i32>} : memref<288x128xbf16, #tpu.memory_space<vmem>>, vector<256x128xbf16>,
    %c0_8 = arith.constant 0 : index
    %c0_9 = arith.constant 0 : index
    %10 = vector.load %arg5[%c0_8, %c0_9] : memref<288x128xbf16, #tpu.memory_space<vmem>>, vector<256x128xbf16>
    %c0_10 = arith.constant 0 : index
    %c0_11 = arith.constant 0 : index
    %c0_12 = arith.constant 0 : index
    %11 = vector.load %arg2[%c0_10, %c0_11, %c0_12] : memref<18x128x32xbf16, #tpu.memory_space<vmem>>, vector<1x128x32xbf16>
    %12 = vector.shape_cast %11 : vector<1x128x32xbf16> to vector<128x32xbf16>
    %cst_13 = arith.constant dense<0.000000e+00> : vector<256x32xf32>
    %13 = tpu.matmul %10, %12, %cst_13 {dimension_numbers = #tpu.dot_dimension_numbers<[1], [0], [0], [1], [0, 0, 1, 1], [], []>} : vector<256x128xbf16>, vector<128x32xbf16>, vector<256x32xf32> -> vector<256x32xf32>
    %c1 = arith.constant 1 : index
    %c0_14 = arith.constant 0 : index
    %c0_15 = arith.constant 0 : index
    %14 = vector.load %arg2[%c1, %c0_14, %c0_15] : memref<18x128x32xbf16, #tpu.memory_space<vmem>>, vector<1x128x32xbf16>
    %15 = vector.shape_cast %14 : vector<1x128x32xbf16> to vector<128x32xbf16>
    %cst_16 = arith.constant dense<0.000000e+00> : vector<256x32xf32>
    %16 = tpu.matmul %10, %15, %cst_16 {dimension_numbers = #tpu.dot_dimension_numbers<[1], [0], [0], [1], [0, 0, 1, 1], [], []>} : vector<256x128xbf16>, vector<128x32xbf16>, vector<256x32xf32> -> vector<256x32xf32>
    %c2 = arith.constant 2 : index
    %c0_17 = arith.constant 0 : index
    %c0_18 = arith.constant 0 : index
    %17 = vector.load %arg2[%c2, %c0_17, %c0_18] : memref<18x128x32xbf16, #tpu.memory_space<vmem>>, vector<1x128x32xbf16>
    %18 = vector.shape_cast %17 : vector<1x128x32xbf16> to vector<128x32xbf16>
    %cst_19 = arith.constant dense<0.000000e+00> : vector<256x32xf32>
    %19 = tpu.matmul %10, %18, %cst_19 {dimension_numbers = #tpu.dot_dimension_numbers<[1], [0], [0], [1], [0, 0, 1, 1], [], []>} : vector<256x128xbf16>, vector<128x32xbf16>, vector<256x32xf32> -> vector<256x32xf32>
    %c16_20 = arith.constant 16 : index
    %c0_21 = arith.constant 0 : index
    %20 = vector.load %arg5[%c16_20, %c0_21] : memref<288x128xbf16, #tpu.memory_space<vmem>>, vector<256x128xbf16>
    %c3 = arith.constant 3 : index
    %c0_22 = arith.constant 0 : index
    %c0_23 = arith.constant 0 : index
    %21 = vector.load %arg2[%c3, %c0_22, %c0_23] : memref<18x128x32xbf16, #tpu.memory_space<vmem>>, vector<1x128x32xbf16>
    %22 = vector.shape_cast %21 : vector<1x128x32xbf16> to vector<128x32xbf16>
    %cst_24 = arith.constant dense<0.000000e+00> : vector<256x32xf32>
    %23 = tpu.matmul %20, %22, %cst_24 {dimension_numbers = #tpu.dot_dimension_numbers<[1], [0], [0], [1], [0, 0, 1, 1], [], []>} : vector<256x128xbf16>, vector<128x32xbf16>, vector<256x32xf32> -> vector<256x32xf32>
    %24 = arith.addf %13, %23 : vector<256x32xf32>
    %c4 = arith.constant 4 : index
    %c0_25 = arith.constant 0 : index
    %c0_26 = arith.constant 0 : index
    %25 = vector.load %arg2[%c4, %c0_25, %c0_26] : memref<18x128x32xbf16, #tpu.memory_space<vmem>>, vector<1x128x32xbf16>
    %26 = vector.shape_cast %25 : vector<1x128x32xbf16> to vector<128x32xbf16>
    %cst_27 = arith.constant dense<0.000000e+00> : vector<256x32xf32>
    %27 = tpu.matmul %20, %26, %cst_27 {dimension_numbers = #tpu.dot_dimension_numbers<[1], [0], [0], [1], [0, 0, 1, 1], [], []>} : vector<256x128xbf16>, vector<128x32xbf16>, vector<256x32xf32> -> vector<256x32xf32>
    %28 = arith.addf %16, %27 : vector<256x32xf32>
    %c5 = arith.constant 5 : index
    %c0_28 = arith.constant 0 : index
    %c0_29 = arith.constant 0 : index
    %29 = vector.load %arg2[%c5, %c0_28, %c0_29] : memref<18x128x32xbf16, #tpu.memory_space<vmem>>, vector<1x128x32xbf16>
    %30 = vector.shape_cast %29 : vector<1x128x32xbf16> to vector<128x32xbf16>
    %cst_30 = arith.constant dense<0.000000e+00> : vector<256x32xf32>
    %31 = tpu.matmul %20, %30, %cst_30 {dimension_numbers = #tpu.dot_dimension_numbers<[1], [0], [0], [1], [0, 0, 1, 1], [], []>} : vector<256x128xbf16>, vector<128x32xbf16>, vector<256x32xf32> -> vector<256x32xf32>
    %32 = arith.addf %19, %31 : vector<256x32xf32>
    %c32 = arith.constant 32 : index
    %c0_31 = arith.constant 0 : index
    %33 = vector.load %arg5[%c32, %c0_31] : memref<288x128xbf16, #tpu.memory_space<vmem>>, vector<256x128xbf16>
    %c6 = arith.constant 6 : index
    %c0_32 = arith.constant 0 : index
    %c0_33 = arith.constant 0 : index
    %34 = vector.load %arg2[%c6, %c0_32, %c0_33] : memref<18x128x32xbf16, #tpu.memory_space<vmem>>, vector<1x128x32xbf16>
    %35 = vector.shape_cast %34 : vector<1x128x32xbf16> to vector<128x32xbf16>
    %cst_34 = arith.constant dense<0.000000e+00> : vector<256x32xf32>
    %36 = tpu.matmul %33, %35, %cst_34 {dimension_numbers = #tpu.dot_dimension_numbers<[1], [0], [0], [1], [0, 0, 1, 1], [], []>} : vector<256x128xbf16>, vector<128x32xbf16>, vector<256x32xf32> -> vector<256x32xf32>
    %37 = arith.addf %24, %36 : vector<256x32xf32>
    %c7 = arith.constant 7 : index
    %c0_35 = arith.constant 0 : index
    %c0_36 = arith.constant 0 : index
    %38 = vector.load %arg2[%c7, %c0_35, %c0_36] : memref<18x128x32xbf16, #tpu.memory_space<vmem>>, vector<1x128x32xbf16>
    %39 = vector.shape_cast %38 : vector<1x128x32xbf16> to vector<128x32xbf16>
    %cst_37 = arith.constant dense<0.000000e+00> : vector<256x32xf32>
    %40 = tpu.matmul %33, %39, %cst_37 {dimension_numbers = #tpu.dot_dimension_numbers<[1], [0], [0], [1], [0, 0, 1, 1], [], []>} : vector<256x128xbf16>, vector<128x32xbf16>, vector<256x32xf32> -> vector<256x32xf32>
    %41 = arith.addf %28, %40 : vector<256x32xf32>
    %c8 = arith.constant 8 : index
    %c0_38 = arith.constant 0 : index
    %c0_39 = arith.constant 0 : index
    %42 = vector.load %arg2[%c8, %c0_38, %c0_39] : memref<18x128x32xbf16, #tpu.memory_space<vmem>>, vector<1x128x32xbf16>
    %43 = vector.shape_cast %42 : vector<1x128x32xbf16> to vector<128x32xbf16>
    %cst_40 = arith.constant dense<0.000000e+00> : vector<256x32xf32>
    %44 = tpu.matmul %33, %43, %cst_40 {dimension_numbers = #tpu.dot_dimension_numbers<[1], [0], [0], [1], [0, 0, 1, 1], [], []>} : vector<256x128xbf16>, vector<128x32xbf16>, vector<256x32xf32> -> vector<256x32xf32>
    %45 = arith.addf %32, %44 : vector<256x32xf32>
    %46 = vector.shape_cast %37 : vector<256x32xf32> to vector<16x16x32xf32>
    %47 = vector.shape_cast %41 : vector<256x32xf32> to vector<16x16x32xf32>
    %48 = vector.shape_cast %45 : vector<256x32xf32> to vector<16x16x32xf32>
    %cst_41 = arith.constant 0.000000e+00 : f32
    %49 = vector.broadcast %cst_41 : f32 to vector<16x1x32xf32>
    %50 = vector.extract_strided_slice %46 {offsets = [0, 0, 0], sizes = [16, 15, 32], strides = [1, 1, 1]} : vector<16x16x32xf32> to vector<16x15x32xf32>
    %51 = tpu.concatenate %49, %50 in 1 : vector<16x1x32xf32>, vector<16x15x32xf32> -> vector<16x16x32xf32>
    %52 = arith.addf %47, %51 : vector<16x16x32xf32>
    %53 = vector.extract_strided_slice %48 {offsets = [0, 1, 0], sizes = [16, 15, 32], strides = [1, 1, 1]} : vector<16x16x32xf32> to vector<16x15x32xf32>
    %54 = tpu.concatenate %53, %49 in 1 : vector<16x15x32xf32>, vector<16x1x32xf32> -> vector<16x16x32xf32>
    %55 = arith.addf %52, %54 : vector<16x16x32xf32>
    %cst_42 = arith.constant 0.000000e+00 : f32
    %56 = vector.broadcast %cst_42 : f32 to vector<16x16x32xf32>
    %57 = arith.maximumf %55, %56 : vector<16x16x32xf32>
    %58 = arith.truncf %57 : vector<16x16x32xf32> to vector<16x16x32xbf16>
    %59 = vector.shape_cast %58 : vector<16x16x32xbf16> to vector<256x32xbf16>
    %c0_43 = arith.constant 0 : index
    %c0_44 = arith.constant 0 : index
    %c0_45 = arith.constant 0 : index
    %60 = vector.load %arg3[%c0_43, %c0_44, %c0_45] : memref<2x32x128xbf16, #tpu.memory_space<vmem>>, vector<1x32x128xbf16>
    %61 = vector.shape_cast %60 : vector<1x32x128xbf16> to vector<32x128xbf16>
    %cst_46 = arith.constant dense<0.000000e+00> : vector<256x128xf32>
    %62 = tpu.matmul %59, %61, %cst_46 {dimension_numbers = #tpu.dot_dimension_numbers<[1], [0], [0], [1], [0, 0, 1, 1], [], []>} : vector<256x32xbf16>, vector<32x128xbf16>, vector<256x128xf32> -> vector<256x128xf32>
    %63 = vector.shape_cast %62 : vector<256x128xf32> to vector<16x16x128xf32>
    %64 = arith.addf %4, %63 : vector<16x16x128xf32>
    %c0_47 = arith.constant 0 : index
    %c0_48 = arith.constant 0 : index
    %c0_49 = arith.constant 0 : index
    %c0_50 = arith.constant 0 : index
    %65 = vector.load %arg4[%c0_47, %c0_48, %c0_49, %c0_50] : memref<1x16x16x128xf32, #tpu.memory_space<vmem>>, vector<1x16x16x128xf32>
    %66 = vector.shape_cast %65 : vector<1x16x16x128xf32> to vector<16x16x128xf32>
    %67 = vector.shape_cast %64 : vector<16x16x128xf32> to vector<1x16x16x128xf32>
    tpu.vector_store %arg4[%c0_47, %c0_48, %c0_49, %c0_50], %67 {strides = array<i32>} : memref<1x16x16x128xf32, #tpu.memory_space<vmem>>, vector<1x16x16x128xf32>,
    %c0_51 = arith.constant 0 : index
    %c0_52 = arith.constant 0 : index
    %c0_53 = arith.constant 0 : index
    %c0_54 = arith.constant 0 : index
    %68 = vector.load %arg4[%c0_51, %c0_52, %c0_53, %c0_54] : memref<1x16x16x128xf32, #tpu.memory_space<vmem>>, vector<1x16x16x128xf32>
    %69 = vector.shape_cast %68 : vector<1x16x16x128xf32> to vector<16x16x128xf32>
    %cst_55 = arith.constant 0.000000e+00 : f32
    %70 = vector.broadcast %cst_55 : f32 to vector<16x16x128xf32>
    %71 = arith.maximumf %69, %70 : vector<16x16x128xf32>
    %72 = arith.truncf %71 : vector<16x16x128xf32> to vector<16x16x128xbf16>
    %73 = vector.shape_cast %72 : vector<16x16x128xbf16> to vector<256x128xbf16>
    %c16_56 = arith.constant 16 : index
    %c0_57 = arith.constant 0 : index
    %74 = vector.load %arg5[%c16_56, %c0_57] : memref<288x128xbf16, #tpu.memory_space<vmem>>, vector<256x128xbf16>
    tpu.vector_store %arg5[%c16_56, %c0_57], %73 {strides = array<i32>} : memref<288x128xbf16, #tpu.memory_space<vmem>>, vector<256x128xbf16>,
    %c0_58 = arith.constant 0 : index
    %c0_59 = arith.constant 0 : index
    %75 = vector.load %arg5[%c0_58, %c0_59] : memref<288x128xbf16, #tpu.memory_space<vmem>>, vector<256x128xbf16>
    %c9 = arith.constant 9 : index
    %c0_60 = arith.constant 0 : index
    %c0_61 = arith.constant 0 : index
    %76 = vector.load %arg2[%c9, %c0_60, %c0_61] : memref<18x128x32xbf16, #tpu.memory_space<vmem>>, vector<1x128x32xbf16>
    %77 = vector.shape_cast %76 : vector<1x128x32xbf16> to vector<128x32xbf16>
    %cst_62 = arith.constant dense<0.000000e+00> : vector<256x32xf32>
    %78 = tpu.matmul %75, %77, %cst_62 {dimension_numbers = #tpu.dot_dimension_numbers<[1], [0], [0], [1], [0, 0, 1, 1], [], []>} : vector<256x128xbf16>, vector<128x32xbf16>, vector<256x32xf32> -> vector<256x32xf32>
    %c10 = arith.constant 10 : index
    %c0_63 = arith.constant 0 : index
    %c0_64 = arith.constant 0 : index
    %79 = vector.load %arg2[%c10, %c0_63, %c0_64] : memref<18x128x32xbf16, #tpu.memory_space<vmem>>, vector<1x128x32xbf16>
    %80 = vector.shape_cast %79 : vector<1x128x32xbf16> to vector<128x32xbf16>
    %cst_65 = arith.constant dense<0.000000e+00> : vector<256x32xf32>
    %81 = tpu.matmul %75, %80, %cst_65 {dimension_numbers = #tpu.dot_dimension_numbers<[1], [0], [0], [1], [0, 0, 1, 1], [], []>} : vector<256x128xbf16>, vector<128x32xbf16>, vector<256x32xf32> -> vector<256x32xf32>
    %c11 = arith.constant 11 : index
    %c0_66 = arith.constant 0 : index
    %c0_67 = arith.constant 0 : index
    %82 = vector.load %arg2[%c11, %c0_66, %c0_67] : memref<18x128x32xbf16, #tpu.memory_space<vmem>>, vector<1x128x32xbf16>
    %83 = vector.shape_cast %82 : vector<1x128x32xbf16> to vector<128x32xbf16>
    %cst_68 = arith.constant dense<0.000000e+00> : vector<256x32xf32>
    %84 = tpu.matmul %75, %83, %cst_68 {dimension_numbers = #tpu.dot_dimension_numbers<[1], [0], [0], [1], [0, 0, 1, 1], [], []>} : vector<256x128xbf16>, vector<128x32xbf16>, vector<256x32xf32> -> vector<256x32xf32>
    %c16_69 = arith.constant 16 : index
    %c0_70 = arith.constant 0 : index
    %85 = vector.load %arg5[%c16_69, %c0_70] : memref<288x128xbf16, #tpu.memory_space<vmem>>, vector<256x128xbf16>
    %c12 = arith.constant 12 : index
    %c0_71 = arith.constant 0 : index
    %c0_72 = arith.constant 0 : index
    %86 = vector.load %arg2[%c12, %c0_71, %c0_72] : memref<18x128x32xbf16, #tpu.memory_space<vmem>>, vector<1x128x32xbf16>
    %87 = vector.shape_cast %86 : vector<1x128x32xbf16> to vector<128x32xbf16>
    %cst_73 = arith.constant dense<0.000000e+00> : vector<256x32xf32>
    %88 = tpu.matmul %85, %87, %cst_73 {dimension_numbers = #tpu.dot_dimension_numbers<[1], [0], [0], [1], [0, 0, 1, 1], [], []>} : vector<256x128xbf16>, vector<128x32xbf16>, vector<256x32xf32> -> vector<256x32xf32>
    %89 = arith.addf %78, %88 : vector<256x32xf32>
    %c13 = arith.constant 13 : index
    %c0_74 = arith.constant 0 : index
    %c0_75 = arith.constant 0 : index
    %90 = vector.load %arg2[%c13, %c0_74, %c0_75] : memref<18x128x32xbf16, #tpu.memory_space<vmem>>, vector<1x128x32xbf16>
    %91 = vector.shape_cast %90 : vector<1x128x32xbf16> to vector<128x32xbf16>
    %cst_76 = arith.constant dense<0.000000e+00> : vector<256x32xf32>
    %92 = tpu.matmul %85, %91, %cst_76 {dimension_numbers = #tpu.dot_dimension_numbers<[1], [0], [0], [1], [0, 0, 1, 1], [], []>} : vector<256x128xbf16>, vector<128x32xbf16>, vector<256x32xf32> -> vector<256x32xf32>
    %93 = arith.addf %81, %92 : vector<256x32xf32>
    %c14 = arith.constant 14 : index
    %c0_77 = arith.constant 0 : index
    %c0_78 = arith.constant 0 : index
    %94 = vector.load %arg2[%c14, %c0_77, %c0_78] : memref<18x128x32xbf16, #tpu.memory_space<vmem>>, vector<1x128x32xbf16>
    %95 = vector.shape_cast %94 : vector<1x128x32xbf16> to vector<128x32xbf16>
    %cst_79 = arith.constant dense<0.000000e+00> : vector<256x32xf32>
    %96 = tpu.matmul %85, %95, %cst_79 {dimension_numbers = #tpu.dot_dimension_numbers<[1], [0], [0], [1], [0, 0, 1, 1], [], []>} : vector<256x128xbf16>, vector<128x32xbf16>, vector<256x32xf32> -> vector<256x32xf32>
    %97 = arith.addf %84, %96 : vector<256x32xf32>
    %c32_80 = arith.constant 32 : index
    %c0_81 = arith.constant 0 : index
    %98 = vector.load %arg5[%c32_80, %c0_81] : memref<288x128xbf16, #tpu.memory_space<vmem>>, vector<256x128xbf16>
    %c15 = arith.constant 15 : index
    %c0_82 = arith.constant 0 : index
    %c0_83 = arith.constant 0 : index
    %99 = vector.load %arg2[%c15, %c0_82, %c0_83] : memref<18x128x32xbf16, #tpu.memory_space<vmem>>, vector<1x128x32xbf16>
    %100 = vector.shape_cast %99 : vector<1x128x32xbf16> to vector<128x32xbf16>
    %cst_84 = arith.constant dense<0.000000e+00> : vector<256x32xf32>
    %101 = tpu.matmul %98, %100, %cst_84 {dimension_numbers = #tpu.dot_dimension_numbers<[1], [0], [0], [1], [0, 0, 1, 1], [], []>} : vector<256x128xbf16>, vector<128x32xbf16>, vector<256x32xf32> -> vector<256x32xf32>
    %102 = arith.addf %89, %101 : vector<256x32xf32>
    %c16_85 = arith.constant 16 : index
    %c0_86 = arith.constant 0 : index
    %c0_87 = arith.constant 0 : index
    %103 = vector.load %arg2[%c16_85, %c0_86, %c0_87] : memref<18x128x32xbf16, #tpu.memory_space<vmem>>, vector<1x128x32xbf16>
    %104 = vector.shape_cast %103 : vector<1x128x32xbf16> to vector<128x32xbf16>
    %cst_88 = arith.constant dense<0.000000e+00> : vector<256x32xf32>
    %105 = tpu.matmul %98, %104, %cst_88 {dimension_numbers = #tpu.dot_dimension_numbers<[1], [0], [0], [1], [0, 0, 1, 1], [], []>} : vector<256x128xbf16>, vector<128x32xbf16>, vector<256x32xf32> -> vector<256x32xf32>
    %106 = arith.addf %93, %105 : vector<256x32xf32>
    %c17 = arith.constant 17 : index
    %c0_89 = arith.constant 0 : index
    %c0_90 = arith.constant 0 : index
    %107 = vector.load %arg2[%c17, %c0_89, %c0_90] : memref<18x128x32xbf16, #tpu.memory_space<vmem>>, vector<1x128x32xbf16>
    %108 = vector.shape_cast %107 : vector<1x128x32xbf16> to vector<128x32xbf16>
    %cst_91 = arith.constant dense<0.000000e+00> : vector<256x32xf32>
    %109 = tpu.matmul %98, %108, %cst_91 {dimension_numbers = #tpu.dot_dimension_numbers<[1], [0], [0], [1], [0, 0, 1, 1], [], []>} : vector<256x128xbf16>, vector<128x32xbf16>, vector<256x32xf32> -> vector<256x32xf32>
    %110 = arith.addf %97, %109 : vector<256x32xf32>
    %111 = vector.shape_cast %102 : vector<256x32xf32> to vector<16x16x32xf32>
    %112 = vector.shape_cast %106 : vector<256x32xf32> to vector<16x16x32xf32>
    %113 = vector.shape_cast %110 : vector<256x32xf32> to vector<16x16x32xf32>
    %cst_92 = arith.constant 0.000000e+00 : f32
    %114 = vector.broadcast %cst_92 : f32 to vector<16x1x32xf32>
    %115 = vector.extract_strided_slice %111 {offsets = [0, 0, 0], sizes = [16, 15, 32], strides = [1, 1, 1]} : vector<16x16x32xf32> to vector<16x15x32xf32>
    %116 = tpu.concatenate %114, %115 in 1 : vector<16x1x32xf32>, vector<16x15x32xf32> -> vector<16x16x32xf32>
    %117 = arith.addf %112, %116 : vector<16x16x32xf32>
    %118 = vector.extract_strided_slice %113 {offsets = [0, 1, 0], sizes = [16, 15, 32], strides = [1, 1, 1]} : vector<16x16x32xf32> to vector<16x15x32xf32>
    %119 = tpu.concatenate %118, %114 in 1 : vector<16x15x32xf32>, vector<16x1x32xf32> -> vector<16x16x32xf32>
    %120 = arith.addf %117, %119 : vector<16x16x32xf32>
    %cst_93 = arith.constant 0.000000e+00 : f32
    %121 = vector.broadcast %cst_93 : f32 to vector<16x16x32xf32>
    %122 = arith.maximumf %120, %121 : vector<16x16x32xf32>
    %123 = arith.truncf %122 : vector<16x16x32xf32> to vector<16x16x32xbf16>
    %124 = vector.shape_cast %123 : vector<16x16x32xbf16> to vector<256x32xbf16>
    %c1_94 = arith.constant 1 : index
    %c0_95 = arith.constant 0 : index
    %c0_96 = arith.constant 0 : index
    %125 = vector.load %arg3[%c1_94, %c0_95, %c0_96] : memref<2x32x128xbf16, #tpu.memory_space<vmem>>, vector<1x32x128xbf16>
    %126 = vector.shape_cast %125 : vector<1x32x128xbf16> to vector<32x128xbf16>
    %cst_97 = arith.constant dense<0.000000e+00> : vector<256x128xf32>
    %127 = tpu.matmul %124, %126, %cst_97 {dimension_numbers = #tpu.dot_dimension_numbers<[1], [0], [0], [1], [0, 0, 1, 1], [], []>} : vector<256x32xbf16>, vector<32x128xbf16>, vector<256x128xf32> -> vector<256x128xf32>
    %128 = vector.shape_cast %127 : vector<256x128xf32> to vector<16x16x128xf32>
    %129 = arith.addf %69, %128 : vector<16x16x128xf32>
    %cst_98 = arith.constant 0.000000e+00 : f32
    %130 = vector.broadcast %cst_98 : f32 to vector<16x16x128xf32>
    %131 = arith.maximumf %129, %130 : vector<16x16x128xf32>
    %c0_99 = arith.constant 0 : index
    %c0_100 = arith.constant 0 : index
    %c0_101 = arith.constant 0 : index
    %c0_102 = arith.constant 0 : index
    %132 = vector.load %arg4[%c0_99, %c0_100, %c0_101, %c0_102] : memref<1x16x16x128xf32, #tpu.memory_space<vmem>>, vector<1x16x16x128xf32>
    %133 = vector.shape_cast %132 : vector<1x16x16x128xf32> to vector<16x16x128xf32>
    %134 = vector.shape_cast %131 : vector<16x16x128xf32> to vector<1x16x16x128xf32>
    tpu.vector_store %arg4[%c0_99, %c0_100, %c0_101, %c0_102], %134 {strides = array<i32>} : memref<1x16x16x128xf32, #tpu.memory_space<vmem>>, vector<1x16x16x128xf32>,
    return
  }
  func.func @transform_0(%arg0: i32) -> (i32, i32, i32, i32) {
    %c0_i32 = arith.constant 0 : i32
    %c0_i32_0 = arith.constant 0 : i32
    %c0_i32_1 = arith.constant 0 : i32
    %c0_i32_2 = arith.constant 0 : i32
    return %arg0, %c0_i32, %c0_i32_0, %c0_i32_1 : i32, i32, i32, i32
  }
  func.func @transform_1(%arg0: i32) -> (i32, i32, i32) {
    %c0_i32 = arith.constant 0 : i32
    %c0_i32_0 = arith.constant 0 : i32
    %c0_i32_1 = arith.constant 0 : i32
    %c0_i32_2 = arith.constant 0 : i32
    return %c0_i32, %c0_i32_0, %c0_i32_1 : i32, i32, i32
  }
  func.func @transform_2(%arg0: i32) -> (i32, i32, i32) {
    %c0_i32 = arith.constant 0 : i32
    %c0_i32_0 = arith.constant 0 : i32
    %c0_i32_1 = arith.constant 0 : i32
    %c0_i32_2 = arith.constant 0 : i32
    return %c0_i32, %c0_i32_0, %c0_i32_1 : i32, i32, i32
  }
  func.func @transform_3(%arg0: i32) -> (i32, i32, i32, i32) {
    %c0_i32 = arith.constant 0 : i32
    %c0_i32_0 = arith.constant 0 : i32
    %c0_i32_1 = arith.constant 0 : i32
    %c0_i32_2 = arith.constant 0 : i32
    return %arg0, %c0_i32, %c0_i32_0, %c0_i32_1 : i32, i32, i32, i32
  }
}

</mosaic_0001>

<llo_original>
// kernel: tpu_custom_call.1
$region0: #{tpu_custom_call.1}
  #allocation0 [shape = 'u32[]', space=smem, size = 0x4, offset = 0x4, fixed_abs, tag = 'smem constant byte address 0x4 - core index']
  #allocation1 [shape = 'u32[144,128]{1,0:T(1,128)}', space=vmem, size = 0x12000, scoped, tag = 'internal scratch']
  #allocation2 [shape = 'bf16[288,128]{1,0:T(16,128)(2,1)}', space=vmem, size = 0x12000, scoped, tag = 'scratch operand']
  %s0 = inlined_call_operand.vmem [shape: f32[2,16,16,128], index: 0, kind: input, shape index: {}]
  %s1 = inlined_call_operand.vmem [shape: bf16[18,128,32], index: 1, kind: input, shape index: {}]
  %s2 = inlined_call_operand.vmem [shape: bf16[2,32,128], index: 2, kind: input, shape index: {}]
  %s3 = inlined_call_operand.hbm [shape: f32[2,16,16,128], index: 3, kind: output, shape index: {}]
  %s4 = sld [smem:[#allocation0]]
  $region45: #{tpu_custom_call.1} parent=0
    _
  %s6 = ssub.s32 1, %s4
  %s7 = scalar_select 0, %s6, %s4
  $region1: #{tpu_custom_call.1} parent=0
    #allocation3 [shape = 'u8[262144]{0}', space=vmem, size = 0x40000, scoped, tag = 'output window, operand 0']
    #allocation4 [shape = 's32[2]{0}', space=sflag, size = 0x8, scoped, tag = 'scoped memory for tpu_custom_call.1']
    %8 = vsyncpa [#allocation4], 0
    %s9 = scalar_lea.sflag [#allocation4], 1
    %10 = vsyncpa %s9, 0
    loop: start=0, step=1, limit=4
    $region2: #{tpu_custom_call.1} parent=1 // loop_pre_header
      _
    $region3: #{tpu_custom_call.1} parent=1 // loop_header
      %s12 = sphi 0, %s16
      %p13 = scmp.ge.s32.totalorder %s12, 4
      %s22 = sphi 0, %s24
      %s25 = sphi 0, %s22
      %s26 = sphi 0, %s25
      %s42 = sphi 0, %s26
      %s46 = sphi 0, %s46
      %s48 = sphi 0, %s46
      %s49 = sphi 0, %s48
      %s63 = sphi 0, %s49
      %s67 = sphi 0, %s67
      %s69 = sphi 0, %s67
      %s70 = sphi 0, %s69
      %s84 = sphi 0, %s70
      %s90 = sphi 0, %s92
      %s93 = sphi 0, %s90
      %s94 = sphi 0, %s93
      %s110 = sphi 0, %s94
    $region4: #{tpu_custom_call.1} parent=1 // loop_header_branch
      %15 = sbr.rel (%p13) target = $region8
    $region5: #{tpu_custom_call.1} parent=1 // loop_body
      %s17 = ssub.s32 %s12, 1
      %s18 = ssub.s32 %s12, 2
      %s19 = sadd.s32 %s12, 1
      %s20 = ssub.s32 %s12, %s19
      %p21 = scmp.eq.s32.totalorder %s20, 0
      %s23 = sadd.s32 %s22, 1
      %s24 = scalar_select %p21, %s22, %s23
      %p27 = pneg %p21
      %p28 = scmp.eq.s32.totalorder %s12, 1
      %p29 = por %p27, %p28
      %p30 = scmp.ne.s32.totalorder %s22, %s25
      %p31 = scmp.eq.s32.totalorder %s12, 0
      %p32 = por %p30, %p31
      %p33 = scmp.ne.s32.totalorder %s22, %s25
      %p34 = scmp.eq.s32.totalorder %s17, 1
      %p35 = por %p33, %p34
      %p36 = scmp.ne.s32.totalorder %s25, %s26
      %p37 = scmp.eq.s32.totalorder %s17, 0
      %p38 = por %p36, %p37
      %p39 = scmp.ne.s32.totalorder %s25, %s26
      %p40 = scmp.eq.s32.totalorder %s18, 1
      %p41 = por %p39, %p40
      %p43 = scmp.ne.s32.totalorder %s26, %s42
      %p44 = scmp.eq.s32.totalorder %s18, 0
      %p45 = por %p43, %p44
      %s47 = sadd.s32 %s46, 1
      %p50 = scmp.eq.s32.totalorder %s12, 1
      %p51 = scmp.ne.s32.totalorder %s46, %s48
      %p52 = scmp.eq.s32.totalorder %s12, 0
      %p53 = por %p51, %p52
      %p54 = scmp.ne.s32.totalorder %s46, %s48
      %p55 = scmp.eq.s32.totalorder %s17, 1
      %p56 = por %p54, %p55
      %p57 = scmp.ne.s32.totalorder %s48, %s49
      %p58 = scmp.eq.s32.totalorder %s17, 0
      %p59 = por %p57, %p58
      %p60 = scmp.ne.s32.totalorder %s48, %s49
      %p61 = scmp.eq.s32.totalorder %s18, 1
      %p62 = por %p60, %p61
      %p64 = scmp.ne.s32.totalorder %s49, %s63
      %p65 = scmp.eq.s32.totalorder %s18, 0
      %p66 = por %p64, %p65
      %s68 = sadd.s32 %s67, 1
      %p71 = scmp.eq.s32.totalorder %s12, 1
      %p72 = scmp.ne.s32.totalorder %s67, %s69
      %p73 = scmp.eq.s32.totalorder %s12, 0
      %p74 = por %p72, %p73
      %p75 = scmp.ne.s32.totalorder %s67, %s69
      %p76 = scmp.eq.s32.totalorder %s17, 1
      %p77 = por %p75, %p76
      %p78 = scmp.ne.s32.totalorder %s69, %s70
      %p79 = scmp.eq.s32.totalorder %s17, 0
      %p80 = por %p78, %p79
      %p81 = scmp.ne.s32.totalorder %s69, %s70
      %p82 = scmp.eq.s32.totalorder %s18, 1
      %p83 = por %p81, %p82
      %p85 = scmp.ne.s32.totalorder %s70, %s84
      %p86 = scmp.eq.s32.totalorder %s18, 0
      %p87 = por %p85, %p86
      %s88 = ssub.s32 %s12, %s19
      %p89 = scmp.eq.s32.totalorder %s88, 0
      %s91 = sadd.s32 %s90, 1
      %s92 = scalar_select %p89, %s90, %s91
      %p95 = pneg %p89
      %p96 = scmp.eq.s32.totalorder %s12, 1
      %p97 = por %p95, %p96
      %p98 = scmp.ne.s32.totalorder %s90, %s93
      %p99 = scmp.eq.s32.totalorder %s12, 0
      %p100 = por %p98, %p99
      %p101 = scmp.ne.s32.totalorder %s90, %s93
      %p102 = scmp.eq.s32.totalorder %s17, 1
      %p103 = por %p101, %p102
      %p104 = scmp.ne.s32.totalorder %s93, %s94
      %p105 = scmp.eq.s32.totalorder %s17, 0
      %p106 = por %p104, %p105
      %p107 = scmp.ne.s32.totalorder %s93, %s94
      %p108 = scmp.eq.s32.totalorder %s18, 1
      %p109 = por %p107, %p108
      %p111 = scmp.ne.s32.totalorder %s94, %s110
      %p112 = scmp.eq.s32.totalorder %s18, 0
      %p113 = por %p111, %p112
      %p114 = scmp.le.s32.totalorder 1, %s12
      %p115 = scmp.lt.s32.totalorder %s12, 3
      %p116 = pnand %p114, %p115
      %p117 = pneg %p116
      // Predicated region
      $region9: #{tpu_custom_call.1} parent=5 // pred_check
        _
      $region10: #{tpu_custom_call.1} parent=5 // pred_check_branch
        %119 = sbr.rel (%p116) target = $region12
      $region11: #{tpu_custom_call.1} parent=5 // pred_region
        %s120 = ssub.s32 %s12, 1
        // Predicated region
        $region13: #{tpu_custom_call.1} parent=11 // pred_check
          %p121 = pneg %p59
        $region14: #{tpu_custom_call.1} parent=11 // pred_check_branch
          %123 = sbr.rel (%p121) target = $region16
        $region15: #{tpu_custom_call.1} parent=11 // pred_region
          _
        $region16: #{tpu_custom_call.1} parent=11 // pred_fallthru
          _
        // Predicated region
        $region17: #{tpu_custom_call.1} parent=11 // pred_check
          %p124 = pneg %p80
        $region18: #{tpu_custom_call.1} parent=11 // pred_check_branch
          %126 = sbr.rel (%p124) target = $region20
        $region19: #{tpu_custom_call.1} parent=11 // pred_region
          _
        $region20: #{tpu_custom_call.1} parent=11 // pred_fallthru
          _
      $region12: #{tpu_custom_call.1} parent=5 // pred_fallthru
        _
      %p127 = scmp.lt.s32.totalorder %s12, 2
      // Predicated region
      $region21: #{tpu_custom_call.1} parent=5 // pred_check
        %p128 = pneg %p127
      $region22: #{tpu_custom_call.1} parent=5 // pred_check_branch
        %130 = sbr.rel (%p128) target = $region24
      $region23: #{tpu_custom_call.1} parent=5 // pred_region
        // Predicated region
        $region25: #{tpu_custom_call.1} parent=23 // pred_check
          %p131 = pneg %p32
        $region26: #{tpu_custom_call.1} parent=23 // pred_check_branch
          %133 = sbr.rel (%p131) target = $region28
        $region27: #{tpu_custom_call.1} parent=23 // pred_region
          %p134 = scmp.lt.s32.totalorder %s12, 1
          %s135 = scalar_select %p134, %s12, 1
          %s136 = smul.addr %s135, 32
          %s137 = smul.addr %s136, 8
          %s138 = scalar_lea.vmem %s0, %s137
        $region28: #{tpu_custom_call.1} parent=23 // pred_fallthru
          _
      $region24: #{tpu_custom_call.1} parent=5 // pred_fallthru
        _
      %p139 = scmp.le.s32.totalorder 1, %s12
      %p140 = scmp.lt.s32.totalorder %s12, 3
      %p141 = pnand %p139, %p140
      %p142 = pneg %p141
      // Predicated region
      $region29: #{tpu_custom_call.1} parent=5 // pred_check
        _
      $region30: #{tpu_custom_call.1} parent=5 // pred_check_branch
        %144 = sbr.rel (%p141) target = $region32
      $region31: #{tpu_custom_call.1} parent=5 // pred_region
        %s145 = ssub.s32 %s12, 1
        %p146 = scmp.lt.s32.totalorder %s17, 1
        %s147 = scalar_select %p146, %s17, 1
        %s148 = smul.addr %s147, 32
        %s149 = smul.addr %s148, 8
        %s150 = scalar_lea.vmem %s0, %s149
        %p151 = pneg %p38
        %p152 = pneg %p35
        %p153 = pneg %p59
        %p154 = pneg %p56
        %p155 = pneg %p80
        %p156 = pneg %p77
        %p157 = pneg %p106
        %p158 = pneg %p103
        %s159 = sand.u32 %s93, 1
        %s160 = scalar_lea.sflag [#allocation4], %s159
        %s161 = sand.u32 %s93, 1
        %s162 = smul.addr %s161, 256
        %s163 = scalar_lea.vmem [#allocation3], %s162
        %p164 = scmp.lt.s32.totalorder %s17, 1
        %s165 = scalar_select %p164, %s17, 1
        %s166 = smul.addr %s165, 32
        %s167 = smul.addr %s166, 8
        %s168 = scalar_lea.vmem %s0, %s167
        %170 = vst [vmem:[#allocation2] sm:$0xff] 0
        %171 = vst [vmem:[#allocation2 + $0x88] sm:$0xff] 0
        %v172 = vld [vmem:[%s168] sm:$0xff]
        %v173 = vld [vmem:[%s168 + $0x8] sm:$0xff]
        %v174 = vld [vmem:[%s168 + $0x10] sm:$0xff]
        %v175 = vld [vmem:[%s168 + $0x18] sm:$0xff]
        %v176 = vld [vmem:[%s168 + $0x20] sm:$0xff]
        %v177 = vld [vmem:[%s168 + $0x28] sm:$0xff]
        %v178 = vld [vmem:[%s168 + $0x30] sm:$0xff]
        %v179 = vld [vmem:[%s168 + $0x38] sm:$0xff]
        %v180 = vld [vmem:[%s168 + $0x40] sm:$0xff]
        %v181 = vld [vmem:[%s168 + $0x48] sm:$0xff]
        %v182 = vld [vmem:[%s168 + $0x50] sm:$0xff]
        %v183 = vld [vmem:[%s168 + $0x58] sm:$0xff]
        %v184 = vld [vmem:[%s168 + $0x60] sm:$0xff]
        %v185 = vld [vmem:[%s168 + $0x68] sm:$0xff]
        %v186 = vld [vmem:[%s168 + $0x70] sm:$0xff]
        %v187 = vld [vmem:[%s168 + $0x78] sm:$0xff]
        %v188 = vld [vmem:[%s168 + $0x80] sm:$0xff]
        %v189 = vld [vmem:[%s168 + $0x88] sm:$0xff]
        %v190 = vld [vmem:[%s168 + $0x90] sm:$0xff]
        %v191 = vld [vmem:[%s168 + $0x98] sm:$0xff]
        %v192 = vld [vmem:[%s168 + $0xa0] sm:$0xff]
        %v193 = vld [vmem:[%s168 + $0xa8] sm:$0xff]
        %v194 = vld [vmem:[%s168 + $0xb0] sm:$0xff]
        %v195 = vld [vmem:[%s168 + $0xb8] sm:$0xff]
        %v196 = vld [vmem:[%s168 + $0xc0] sm:$0xff]
        %v197 = vld [vmem:[%s168 + $0xc8] sm:$0xff]
        %v198 = vld [vmem:[%s168 + $0xd0] sm:$0xff]
        %v199 = vld [vmem:[%s168 + $0xd8] sm:$0xff]
        %v200 = vld [vmem:[%s168 + $0xe0] sm:$0xff]
        %v201 = vld [vmem:[%s168 + $0xe8] sm:$0xff]
        %v202 = vld [vmem:[%s168 + $0xf0] sm:$0xff]
        %v203 = vld [vmem:[%s168 + $0xf8] sm:$0xff]
        %v204 = vmax.f32 %v172, 0.0
        %v205 = vmax.f32 %v173, 0.0
        %v206 = vmax.f32 %v174, 0.0
        %v207 = vmax.f32 %v175, 0.0
        %v208 = vmax.f32 %v176, 0.0
        %v209 = vmax.f32 %v177, 0.0
        %v210 = vmax.f32 %v178, 0.0
        %v211 = vmax.f32 %v179, 0.0
        %v212 = vmax.f32 %v180, 0.0
        %v213 = vmax.f32 %v181, 0.0
        %v214 = vmax.f32 %v182, 0.0
        %v215 = vmax.f32 %v183, 0.0
        %v216 = vmax.f32 %v184, 0.0
        %v217 = vmax.f32 %v185, 0.0
        %v218 = vmax.f32 %v186, 0.0
        %v219 = vmax.f32 %v187, 0.0
        %v220 = vmax.f32 %v188, 0.0
        %v221 = vmax.f32 %v189, 0.0
        %v222 = vmax.f32 %v190, 0.0
        %v223 = vmax.f32 %v191, 0.0
        %v224 = vmax.f32 %v192, 0.0
        %v225 = vmax.f32 %v193, 0.0
        %v226 = vmax.f32 %v194, 0.0
        %v227 = vmax.f32 %v195, 0.0
        %v228 = vmax.f32 %v196, 0.0
        %v229 = vmax.f32 %v197, 0.0
        %v230 = vmax.f32 %v198, 0.0
        %v231 = vmax.f32 %v199, 0.0
        %v232 = vmax.f32 %v200, 0.0
        %v233 = vmax.f32 %v201, 0.0
        %v234 = vmax.f32 %v202, 0.0
        %v235 = vmax.f32 %v203, 0.0
        %v236 = vpack.c.bf16 %v205, %v204
        %v237 = vpack.c.bf16 %v207, %v206
        %v238 = vpack.c.bf16 %v209, %v208
        %v239 = vpack.c.bf16 %v211, %v210
        %v240 = vpack.c.bf16 %v213, %v212
        %v241 = vpack.c.bf16 %v215, %v214
        %v242 = vpack.c.bf16 %v217, %v216
        %v243 = vpack.c.bf16 %v219, %v218
        %v244 = vpack.c.bf16 %v221, %v220
        %v245 = vpack.c.bf16 %v223, %v222
        %v246 = vpack.c.bf16 %v225, %v224
        %v247 = vpack.c.bf16 %v227, %v226
        %v248 = vpack.c.bf16 %v229, %v228
        %v249 = vpack.c.bf16 %v231, %v230
        %v250 = vpack.c.bf16 %v233, %v232
        %v251 = vpack.c.bf16 %v235, %v234
        %252 = vst [vmem:[#allocation2 + $0x8] sm:$0xff] %v236
        %253 = vst [vmem:[#allocation2 + $0x10] sm:$0xff] %v237
        %254 = vst [vmem:[#allocation2 + $0x18] sm:$0xff] %v238
        %255 = vst [vmem:[#allocation2 + $0x20] sm:$0xff] %v239
        %256 = vst [vmem:[#allocation2 + $0x28] sm:$0xff] %v240
        %257 = vst [vmem:[#allocation2 + $0x30] sm:$0xff] %v241
        %258 = vst [vmem:[#allocation2 + $0x38] sm:$0xff] %v242
        %259 = vst [vmem:[#allocation2 + $0x40] sm:$0xff] %v243
        %260 = vst [vmem:[#allocation2 + $0x48] sm:$0xff] %v244
        %261 = vst [vmem:[#allocation2 + $0x50] sm:$0xff] %v245
        %262 = vst [vmem:[#allocation2 + $0x58] sm:$0xff] %v246
        %263 = vst [vmem:[#allocation2 + $0x60] sm:$0xff] %v247
        %264 = vst [vmem:[#allocation2 + $0x68] sm:$0xff] %v248
        %265 = vst [vmem:[#allocation2 + $0x70] sm:$0xff] %v249
        %266 = vst [vmem:[#allocation2 + $0x78] sm:$0xff] %v250
        %267 = vst [vmem:[#allocation2 + $0x80] sm:$0xff] %v251
        %v268 = vld [vmem:[#allocation2] sm:$0xff]
        %v269 = vld [vmem:[#allocation2 + $0x8] sm:$0xff]
        %v270 = vld [vmem:[#allocation2 + $0x10] sm:$0xff]
        %v271 = vld [vmem:[#allocation2 + $0x18] sm:$0xff]
        %v272 = vld [vmem:[#allocation2 + $0x20] sm:$0xff]
        %v273 = vld [vmem:[#allocation2 + $0x28] sm:$0xff]
        %v274 = vld [vmem:[#allocation2 + $0x30] sm:$0xff]
        %v275 = vld [vmem:[#allocation2 + $0x38] sm:$0xff]
        %v276 = vld [vmem:[#allocation2 + $0x40] sm:$0xff]
        %v277 = vld [vmem:[#allocation2 + $0x48] sm:$0xff]
        %v278 = vld [vmem:[#allocation2 + $0x50] sm:$0xff]
        %v279 = vld [vmem:[#allocation2 + $0x58] sm:$0xff]
        %v280 = vld [vmem:[#allocation2 + $0x60] sm:$0xff]
        %v281 = vld [vmem:[#allocation2 + $0x68] sm:$0xff]
        %v282 = vld [vmem:[#allocation2 + $0x70] sm:$0xff]
        %v283 = vld [vmem:[#allocation2 + $0x78] sm:$0xff]
        %v284 = vld [vmem:[%s1] sm:$0xf]
        %v285 = vld [vmem:[%s1 + $0x4] sm:$0xf]
        %v286 = vld [vmem:[%s1 + $0x8] sm:$0xf]
        %v287 = vld [vmem:[%s1 + $0xc] sm:$0xf]
        %v288 = vld [vmem:[%s1 + $0x10] sm:$0xf]
        %v289 = vld [vmem:[%s1 + $0x14] sm:$0xf]
        %v290 = vld [vmem:[%s1 + $0x18] sm:$0xf]
        %v291 = vld [vmem:[%s1 + $0x1c] sm:$0xf]
        %v292 = vld [vmem:[%s1 + $0x20] sm:$0xf]
        %v293 = vld [vmem:[%s1 + $0x24] sm:$0xf]
        %v294 = vld [vmem:[%s1 + $0x28] sm:$0xf]
        %v295 = vld [vmem:[%s1 + $0x2c] sm:$0xf]
        %v296 = vld [vmem:[%s1 + $0x30] sm:$0xf]
        %v297 = vld [vmem:[%s1 + $0x34] sm:$0xf]
        %v298 = vld [vmem:[%s1 + $0x38] sm:$0xf]
        %v299 = vld [vmem:[%s1 + $0x3c] sm:$0xf]
        %s300 = scalar_lea.vmem %s1, 64
        %v301 = vld [vmem:[%s300] sm:$0xf]
        %v302 = vld [vmem:[%s300 + $0x4] sm:$0xf]
        %v303 = vld [vmem:[%s300 + $0x8] sm:$0xf]
        %v304 = vld [vmem:[%s300 + $0xc] sm:$0xf]
        %v305 = vld [vmem:[%s300 + $0x10] sm:$0xf]
        %v306 = vld [vmem:[%s300 + $0x14] sm:$0xf]
        %v307 = vld [vmem:[%s300 + $0x18] sm:$0xf]
        %v308 = vld [vmem:[%s300 + $0x1c] sm:$0xf]
        %v309 = vld [vmem:[%s300 + $0x20] sm:$0xf]
        %v310 = vld [vmem:[%s300 + $0x24] sm:$0xf]
        %v311 = vld [vmem:[%s300 + $0x28] sm:$0xf]
        %v312 = vld [vmem:[%s300 + $0x2c] sm:$0xf]
        %v313 = vld [vmem:[%s300 + $0x30] sm:$0xf]
        %v314 = vld [vmem:[%s300 + $0x34] sm:$0xf]
        %v315 = vld [vmem:[%s300 + $0x38] sm:$0xf]
        %v316 = vld [vmem:[%s300 + $0x3c] sm:$0xf]
        %s317 = scalar_lea.vmem %s1, 128
        %v318 = vld [vmem:[%s317] sm:$0xf]
        %v319 = vld [vmem:[%s317 + $0x4] sm:$0xf]
        %v320 = vld [vmem:[%s317 + $0x8] sm:$0xf]
        %v321 = vld [vmem:[%s317 + $0xc] sm:$0xf]
        %v322 = vld [vmem:[%s317 + $0x10] sm:$0xf]
        %v323 = vld [vmem:[%s317 + $0x14] sm:$0xf]
        %v324 = vld [vmem:[%s317 + $0x18] sm:$0xf]
        %v325 = vld [vmem:[%s317 + $0x1c] sm:$0xf]
        %v326 = vld [vmem:[%s317 + $0x20] sm:$0xf]
        %v327 = vld [vmem:[%s317 + $0x24] sm:$0xf]
        %v328 = vld [vmem:[%s317 + $0x28] sm:$0xf]
        %v329 = vld [vmem:[%s317 + $0x2c] sm:$0xf]
        %v330 = vld [vmem:[%s317 + $0x30] sm:$0xf]
        %v331 = vld [vmem:[%s317 + $0x34] sm:$0xf]
        %v332 = vld [vmem:[%s317 + $0x38] sm:$0xf]
        %v333 = vld [vmem:[%s317 + $0x3c] sm:$0xf]
        %v334 = vld [vmem:[#allocation2 + $0x80] sm:$0xff]
        %s335 = scalar_lea.vmem %s1, 192
        %v336 = vld [vmem:[%s335] sm:$0xf]
        %v337 = vld [vmem:[%s335 + $0x4] sm:$0xf]
        %v338 = vld [vmem:[%s335 + $0x8] sm:$0xf]
        %v339 = vld [vmem:[%s335 + $0xc] sm:$0xf]
        %v340 = vld [vmem:[%s335 + $0x10] sm:$0xf]
        %v341 = vld [vmem:[%s335 + $0x14] sm:$0xf]
        %v342 = vld [vmem:[%s335 + $0x18] sm:$0xf]
        %v343 = vld [vmem:[%s335 + $0x1c] sm:$0xf]
        %v344 = vld [vmem:[%s335 + $0x20] sm:$0xf]
        %v345 = vld [vmem:[%s335 + $0x24] sm:$0xf]
        %v346 = vld [vmem:[%s335 + $0x28] sm:$0xf]
        %v347 = vld [vmem:[%s335 + $0x2c] sm:$0xf]
        %v348 = vld [vmem:[%s335 + $0x30] sm:$0xf]
        %v349 = vld [vmem:[%s335 + $0x34] sm:$0xf]
        %v350 = vld [vmem:[%s335 + $0x38] sm:$0xf]
        %v351 = vld [vmem:[%s335 + $0x3c] sm:$0xf]
        %v368 = vunpack.c.l.b16 %v336
        %v369 = vunpack.c.l.b16 %v337
        %v370 = vunpack.c.l.b16 %v338
        %v371 = vunpack.c.l.b16 %v339
        %v372 = vunpack.c.l.b16 %v340
        %v373 = vunpack.c.l.b16 %v341
        %v374 = vunpack.c.l.b16 %v342
        %v375 = vunpack.c.l.b16 %v343
        %v376 = vunpack.c.l.b16 %v344
        %v377 = vunpack.c.l.b16 %v345
        %v378 = vunpack.c.l.b16 %v346
        %v379 = vunpack.c.l.b16 %v347
        %v380 = vunpack.c.l.b16 %v348
        %v381 = vunpack.c.l.b16 %v349
        %v382 = vunpack.c.l.b16 %v350
        %v383 = vunpack.c.l.b16 %v351
        %v384 = vpack.c.b16 %v369, %v368
        %v385 = vpack.c.b16 %v371, %v370
        %v386 = vpack.c.b16 %v373, %v372
        %v387 = vpack.c.b16 %v375, %v374
        %v388 = vpack.c.b16 %v377, %v376
        %v389 = vpack.c.b16 %v379, %v378
        %v390 = vpack.c.b16 %v381, %v380
        %v391 = vpack.c.b16 %v383, %v382
        %400 = vmatprep.subr.bf16.mxu0 0
        %401 = vmatpush1.bf16.msra.mxu0 %v384
        %402 = vmatprep.subr.bf16.mxu0 0
        %403 = vmatpush1.bf16.msra.mxu0 %v385
        %404 = vmatprep.subr.bf16.mxu0 0
        %405 = vmatpush1.bf16.msra.mxu0 %v386
        %406 = vmatprep.subr.bf16.mxu0 0
        %407 = vmatpush1.bf16.msra.mxu0 %v387
        %408 = vmatprep.subr.bf16.mxu0 0
        %409 = vmatpush1.bf16.msra.mxu0 %v388
        %410 = vmatprep.subr.bf16.mxu0 0
        %411 = vmatpush1.bf16.msra.mxu0 %v389
        %412 = vmatprep.subr.bf16.mxu0 0
        %413 = vmatpush1.bf16.msra.mxu0 %v390
        %414 = vmatprep.subr.bf16.mxu0 0
        %415 = vmatpush1.bf16.msra.mxu0 %v391
        %416 = vmatprep.subr.bf16.mxu0 0
        %417 = vmatpush1.bf16.msra.mxu0 0
        %418 = vmatprep.subr.bf16.mxu0 0
        %419 = vmatpush1.bf16.msra.mxu0 0
        %420 = vmatprep.subr.bf16.mxu0 0
        %421 = vmatpush1.bf16.msra.mxu0 0
        %422 = vmatprep.subr.bf16.mxu0 0
        %423 = vmatpush1.bf16.msra.mxu0 0
        %424 = vmatprep.subr.bf16.mxu0 0
        %425 = vmatpush1.bf16.msra.mxu0 0
        %426 = vmatprep.subr.bf16.mxu0 0
        %427 = vmatpush1.bf16.msra.mxu0 0
        %428 = vmatprep.subr.bf16.mxu0 0
        %429 = vmatpush1.bf16.msra.mxu0 0
        %430 = vmatprep.subr.bf16.mxu0 0
        %431 = vmatpush1.bf16.msra.mxu0 0
        %432 = vmatprep.mubr.bf16.mxu0 0
        %433 = vmatmul.mubr.bf16.gmra.mrb[0].mxu0 %v269
        %v434 = vpop.f32.mrb[0].mxu0
        %v435 = vadd.f32 0.0, %v434
        %v436 = vpop.f32.mrb[0].mxu0
        %v437 = vpop.f32.mrb[0].mxu0
        %v438 = vadd.f32 0.0, %v437
        %v439 = vpop.f32.mrb[0].mxu0
        %440 = vmatprep.mubr.bf16.mxu0 0
        %441 = vmatmul.mubr.bf16.gmra.mrb[0].mxu0 %v270
        %v442 = vpop.f32.mrb[0].mxu0
        %v443 = vadd.f32 0.0, %v442
        %v444 = vpop.f32.mrb[0].mxu0
        %v445 = vpop.f32.mrb[0].mxu0
        %v446 = vadd.f32 0.0, %v445
        %v447 = vpop.f32.mrb[0].mxu0
        %448 = vmatprep.mubr.bf16.mxu0 0
        %449 = vmatmul.mubr.bf16.gmra.mrb[0].mxu0 %v271
        %v450 = vpop.f32.mrb[0].mxu0
        %v451 = vadd.f32 0.0, %v450
        %v452 = vpop.f32.mrb[0].mxu0
        %v453 = vpop.f32.mrb[0].mxu0
        %v454 = vadd.f32 0.0, %v453
        %v455 = vpop.f32.mrb[0].mxu0
        %456 = vmatprep.mubr.bf16.mxu0 0
        %457 = vmatmul.mubr.bf16.gmra.mrb[0].mxu0 %v272
        %v458 = vpop.f32.mrb[0].mxu0
        %v459 = vadd.f32 0.0, %v458
        %v460 = vpop.f32.mrb[0].mxu0
        %v461 = vpop.f32.mrb[0].mxu0
        %v462 = vadd.f32 0.0, %v461
        %v463 = vpop.f32.mrb[0].mxu0
        %464 = vmatprep.mubr.bf16.mxu0 0
        %465 = vmatmul.mubr.bf16.gmra.mrb[0].mxu0 %v273
        %v466 = vpop.f32.mrb[0].mxu0
        %v467 = vadd.f32 0.0, %v466
        %v468 = vpop.f32.mrb[0].mxu0
        %v469 = vpop.f32.mrb[0].mxu0
        %v470 = vadd.f32 0.0, %v469
        %v471 = vpop.f32.mrb[0].mxu0
        %472 = vmatprep.mubr.bf16.mxu0 0
        %473 = vmatmul.mubr.bf16.gmra.mrb[0].mxu0 %v274
        %v474 = vpop.f32.mrb[0].mxu0
        %v475 = vadd.f32 0.0, %v474
        %v476 = vpop.f32.mrb[0].mxu0
        %v477 = vpop.f32.mrb[0].mxu0
        %v478 = vadd.f32 0.0, %v477
        %v479 = vpop.f32.mrb[0].mxu0
        %480 = vmatprep.mubr.bf16.mxu0 0
        %481 = vmatmul.mubr.bf16.gmra.mrb[0].mxu0 %v275
        %v482 = vpop.f32.mrb[0].mxu0
        %v483 = vadd.f32 0.0, %v482
        %v484 = vpop.f32.mrb[0].mxu0
        %v485 = vpop.f32.mrb[0].mxu0
        %v486 = vadd.f32 0.0, %v485
        %v487 = vpop.f32.mrb[0].mxu0
        %488 = vmatprep.mubr.bf16.mxu0 0
        %489 = vmatmul.mubr.bf16.gmra.mrb[0].mxu0 %v276
        %v490 = vpop.f32.mrb[0].mxu0
        %v491 = vadd.f32 0.0, %v490
        %v492 = vpop.f32.mrb[0].mxu0
        %v493 = vpop.f32.mrb[0].mxu0
        %v494 = vadd.f32 0.0, %v493
        %v495 = vpop.f32.mrb[0].mxu0
        %496 = vmatprep.mubr.bf16.mxu0 0
        %497 = vmatmul.mubr.bf16.gmra.mrb[0].mxu0 %v277
        %v498 = vpop.f32.mrb[0].mxu0
        %v499 = vadd.f32 0.0, %v498
        %v500 = vpop.f32.mrb[0].mxu0
        %v501 = vpop.f32.mrb[0].mxu0
        %v502 = vadd.f32 0.0, %v501
        %v503 = vpop.f32.mrb[0].mxu0
        %504 = vmatprep.mubr.bf16.mxu0 0
        %505 = vmatmul.mubr.bf16.gmra.mrb[0].mxu0 %v278
        %v506 = vpop.f32.mrb[0].mxu0
        %v507 = vadd.f32 0.0, %v506
        %v508 = vpop.f32.mrb[0].mxu0
        %v509 = vpop.f32.mrb[0].mxu0
        %v510 = vadd.f32 0.0, %v509
        %v511 = vpop.f32.mrb[0].mxu0
        %512 = vmatprep.mubr.bf16.mxu0 0
        %513 = vmatmul.mubr.bf16.gmra.mrb[0].mxu0 %v279
        %v514 = vpop.f32.mrb[0].mxu0
        %v515 = vadd.f32 0.0, %v514
        %v516 = vpop.f32.mrb[0].mxu0
        %v517 = vpop.f32.mrb[0].mxu0
        %v518 = vadd.f32 0.0, %v517
        %v519 = vpop.f32.mrb[0].mxu0
        %520 = vmatprep.mubr.bf16.mxu0 0
        %521 = vmatmul.mubr.bf16.gmra.mrb[0].mxu0 %v280
        %v522 = vpop.f32.mrb[0].mxu0
        %v523 = vadd.f32 0.0, %v522
        %v524 = vpop.f32.mrb[0].mxu0
        %v525 = vpop.f32.mrb[0].mxu0
        %v526 = vadd.f32 0.0, %v525
        %v527 = vpop.f32.mrb[0].mxu0
        %528 = vmatprep.mubr.bf16.mxu0 0
        %529 = vmatmul.mubr.bf16.gmra.mrb[0].mxu0 %v281
        %v530 = vpop.f32.mrb[0].mxu0
        %v531 = vadd.f32 0.0, %v530
        %v532 = vpop.f32.mrb[0].mxu0
        %v533 = vpop.f32.mrb[0].mxu0
        %v534 = vadd.f32 0.0, %v533
        %v535 = vpop.f32.mrb[0].mxu0
        %536 = vmatprep.mubr.bf16.mxu0 0
        %537 = vmatmul.mubr.bf16.gmra.mrb[0].mxu0 %v282
        %v538 = vpop.f32.mrb[0].mxu0
        %v539 = vadd.f32 0.0, %v538
        %v540 = vpop.f32.mrb[0].mxu0
        %v541 = vpop.f32.mrb[0].mxu0
        %v542 = vadd.f32 0.0, %v541
        %v543 = vpop.f32.mrb[0].mxu0
        %544 = vmatprep.mubr.bf16.mxu0 0
        %545 = vmatmul.mubr.bf16.gmra.mrb[0].mxu0 %v283
        %v546 = vpop.f32.mrb[0].mxu0
        %v547 = vadd.f32 0.0, %v546
        %v548 = vpop.f32.mrb[0].mxu0
        %v549 = vpop.f32.mrb[0].mxu0
        %v550 = vadd.f32 0.0, %v549
        %v551 = vpop.f32.mrb[0].mxu0
        %552 = vmatprep.mubr.bf16.mxu0 0
        %553 = vmatmul.mubr.bf16.gmra.mrb[0].mxu0 %v334
        %v554 = vpop.f32.mrb[0].mxu0
        %v555 = vadd.f32 0.0, %v554
        %v556 = vpop.f32.mrb[0].mxu0
        %v557 = vpop.f32.mrb[0].mxu0
        %v558 = vadd.f32 0.0, %v557
        %v559 = vpop.f32.mrb[0].mxu0
        %560 = vdwg.mxu0
        %v577 = vunpack.c.l.b16 %v284
        %v578 = vunpack.c.l.b16 %v285
        %v579 = vunpack.c.l.b16 %v286
        %v580 = vunpack.c.l.b16 %v287
        %v581 = vunpack.c.l.b16 %v288
        %v582 = vunpack.c.l.b16 %v289
        %v583 = vunpack.c.l.b16 %v290
        %v584 = vunpack.c.l.b16 %v291
        %v585 = vunpack.c.l.b16 %v292
        %v586 = vunpack.c.l.b16 %v293
        %v587 = vunpack.c.l.b16 %v294
        %v588 = vunpack.c.l.b16 %v295
        %v589 = vunpack.c.l.b16 %v296
        %v590 = vunpack.c.l.b16 %v297
        %v591 = vunpack.c.l.b16 %v298
        %v592 = vunpack.c.l.b16 %v299
        %v593 = vpack.c.b16 %v578, %v577
        %v594 = vpack.c.b16 %v580, %v579
        %v595 = vpack.c.b16 %v582, %v581
        %v596 = vpack.c.b16 %v584, %v583
        %v597 = vpack.c.b16 %v586, %v585
        %v598 = vpack.c.b16 %v588, %v587
        %v599 = vpack.c.b16 %v590, %v589
        %v600 = vpack.c.b16 %v592, %v591
        %609 = vmatprep.subr.bf16.mxu0 0
        %610 = vmatpush1.bf16.msra.mxu0 %v593
        %611 = vmatprep.subr.bf16.mxu0 0
        %612 = vmatpush1.bf16.msra.mxu0 %v594
        %613 = vmatprep.subr.bf16.mxu0 0
        %614 = vmatpush1.bf16.msra.mxu0 %v595
        %615 = vmatprep.subr.bf16.mxu0 0
        %616 = vmatpush1.bf16.msra.mxu0 %v596
        %617 = vmatprep.subr.bf16.mxu0 0
        %618 = vmatpush1.bf16.msra.mxu0 %v597
        %619 = vmatprep.subr.bf16.mxu0 0
        %620 = vmatpush1.bf16.msra.mxu0 %v598
        %621 = vmatprep.subr.bf16.mxu0 0
        %622 = vmatpush1.bf16.msra.mxu0 %v599
        %623 = vmatprep.subr.bf16.mxu0 0
        %624 = vmatpush1.bf16.msra.mxu0 %v600
        %625 = vmatprep.subr.bf16.mxu0 0
        %626 = vmatpush1.bf16.msra.mxu0 0
        %627 = vmatprep.subr.bf16.mxu0 0
        %628 = vmatpush1.bf16.msra.mxu0 0
        %629 = vmatprep.subr.bf16.mxu0 0
        %630 = vmatpush1.bf16.msra.mxu0 0
        %631 = vmatprep.subr.bf16.mxu0 0
        %632 = vmatpush1.bf16.msra.mxu0 0
        %633 = vmatprep.subr.bf16.mxu0 0
        %634 = vmatpush1.bf16.msra.mxu0 0
        %635 = vmatprep.subr.bf16.mxu0 0
        %636 = vmatpush1.bf16.msra.mxu0 0
        %637 = vmatprep.subr.bf16.mxu0 0
        %638 = vmatpush1.bf16.msra.mxu0 0
        %639 = vmatprep.subr.bf16.mxu0 0
        %640 = vmatpush1.bf16.msra.mxu0 0
        %641 = vmatprep.mubr.bf16.mxu0 0
        %642 = vmatmul.mubr.bf16.gmra.mrb[0].mxu0 %v268
        %v643 = vpop.f32.mrb[0].mxu0
        %v644 = vadd.f32 %v435, %v643
        %v645 = vpop.f32.mrb[0].mxu0
        %v646 = vpop.f32.mrb[0].mxu0
        %v647 = vadd.f32 %v438, %v646
        %v648 = vpop.f32.mrb[0].mxu0
        %649 = vmatprep.mubr.bf16.mxu0 0
        %650 = vmatmul.mubr.bf16.gmra.mrb[0].mxu0 %v269
        %v651 = vpop.f32.mrb[0].mxu0
        %v652 = vadd.f32 %v443, %v651
        %v653 = vpop.f32.mrb[0].mxu0
        %v654 = vpop.f32.mrb[0].mxu0
        %v655 = vadd.f32 %v446, %v654
        %v656 = vpop.f32.mrb[0].mxu0
        %657 = vmatprep.mubr.bf16.mxu0 0
        %658 = vmatmul.mubr.bf16.gmra.mrb[0].mxu0 %v270
        %v659 = vpop.f32.mrb[0].mxu0
        %v660 = vadd.f32 %v451, %v659
        %v661 = vpop.f32.mrb[0].mxu0
        %v662 = vpop.f32.mrb[0].mxu0
        %v663 = vadd.f32 %v454, %v662
        %v664 = vpop.f32.mrb[0].mxu0
        %665 = vmatprep.mubr.bf16.mxu0 0
        %666 = vmatmul.mubr.bf16.gmra.mrb[0].mxu0 %v271
        %v667 = vpop.f32.mrb[0].mxu0
        %v668 = vadd.f32 %v459, %v667
        %v669 = vpop.f32.mrb[0].mxu0
        %v670 = vpop.f32.mrb[0].mxu0
        %v671 = vadd.f32 %v462, %v670
        %v672 = vpop.f32.mrb[0].mxu0
        %673 = vmatprep.mubr.bf16.mxu0 0
        %674 = vmatmul.mubr.bf16.gmra.mrb[0].mxu0 %v272
        %v675 = vpop.f32.mrb[0].mxu0
        %v676 = vadd.f32 %v467, %v675
        %v677 = vpop.f32.mrb[0].mxu0
        %v678 = vpop.f32.mrb[0].mxu0
        %v679 = vadd.f32 %v470, %v678
        %v680 = vpop.f32.mrb[0].mxu0
        %681 = vmatprep.mubr.bf16.mxu0 0
        %682 = vmatmul.mubr.bf16.gmra.mrb[0].mxu0 %v273
        %v683 = vpop.f32.mrb[0].mxu0
        %v684 = vadd.f32 %v475, %v683
        %v685 = vpop.f32.mrb[0].mxu0
        %v686 = vpop.f32.mrb[0].mxu0
        %v687 = vadd.f32 %v478, %v686
        %v688 = vpop.f32.mrb[0].mxu0
        %689 = vmatprep.mubr.bf16.mxu0 0
        %690 = vmatmul.mubr.bf16.gmra.mrb[0].mxu0 %v274
        %v691 = vpop.f32.mrb[0].mxu0
        %v692 = vadd.f32 %v483, %v691
        %v693 = vpop.f32.mrb[0].mxu0
        %v694 = vpop.f32.mrb[0].mxu0
        %v695 = vadd.f32 %v486, %v694
        %v696 = vpop.f32.mrb[0].mxu0
        %697 = vmatprep.mubr.bf16.mxu0 0
        %698 = vmatmul.mubr.bf16.gmra.mrb[0].mxu0 %v275
        %v699 = vpop.f32.mrb[0].mxu0
        %v700 = vadd.f32 %v491, %v699
        %v701 = vpop.f32.mrb[0].mxu0
        %v702 = vpop.f32.mrb[0].mxu0
        %v703 = vadd.f32 %v494, %v702
        %v704 = vpop.f32.mrb[0].mxu0
        %705 = vmatprep.mubr.bf16.mxu0 0
        %706 = vmatmul.mubr.bf16.gmra.mrb[0].mxu0 %v276
        %v707 = vpop.f32.mrb[0].mxu0
        %v708 = vadd.f32 %v499, %v707
        %v709 = vpop.f32.mrb[0].mxu0
        %v710 = vpop.f32.mrb[0].mxu0
        %v711 = vadd.f32 %v502, %v710
        %v712 = vpop.f32.mrb[0].mxu0
        %713 = vmatprep.mubr.bf16.mxu0 0
        %714 = vmatmul.mubr.bf16.gmra.mrb[0].mxu0 %v277
        %v715 = vpop.f32.mrb[0].mxu0
        %v716 = vadd.f32 %v507, %v715
        %v717 = vpop.f32.mrb[0].mxu0
        %v718 = vpop.f32.mrb[0].mxu0
        %v719 = vadd.f32 %v510, %v718
        %v720 = vpop.f32.mrb[0].mxu0
        %721 = vmatprep.mubr.bf16.mxu0 0
        %722 = vmatmul.mubr.bf16.gmra.mrb[0].mxu0 %v278
        %v723 = vpop.f32.mrb[0].mxu0
        %v724 = vadd.f32 %v515, %v723
        %v725 = vpop.f32.mrb[0].mxu0
        %v726 = vpop.f32.mrb[0].mxu0
        %v727 = vadd.f32 %v518, %v726
        %v728 = vpop.f32.mrb[0].mxu0
        %729 = vmatprep.mubr.bf16.mxu0 0
        %730 = vmatmul.mubr.bf16.gmra.mrb[0].mxu0 %v279
        %v731 = vpop.f32.mrb[0].mxu0
        %v732 = vadd.f32 %v523, %v731
        %v733 = vpop.f32.mrb[0].mxu0
        %v734 = vpop.f32.mrb[0].mxu0
        %v735 = vadd.f32 %v526, %v734
        %v736 = vpop.f32.mrb[0].mxu0
        %737 = vmatprep.mubr.bf16.mxu0 0
        %738 = vmatmul.mubr.bf16.gmra.mrb[0].mxu0 %v280
        %v739 = vpop.f32.mrb[0].mxu0
        %v740 = vadd.f32 %v531, %v739
        %v741 = vpop.f32.mrb[0].mxu0
        %v742 = vpop.f32.mrb[0].mxu0
        %v743 = vadd.f32 %v534, %v742
        %v744 = vpop.f32.mrb[0].mxu0
        %745 = vmatprep.mubr.bf16.mxu0 0
        %746 = vmatmul.mubr.bf16.gmra.mrb[0].mxu0 %v281
        %v747 = vpop.f32.mrb[0].mxu0
        %v748 = vadd.f32 %v539, %v747
        %v749 = vpop.f32.mrb[0].mxu0
        %v750 = vpop.f32.mrb[0].mxu0
        %v751 = vadd.f32 %v542, %v750
        %v752 = vpop.f32.mrb[0].mxu0
        %753 = vmatprep.mubr.bf16.mxu0 0
        %754 = vmatmul.mubr.bf16.gmra.mrb[0].mxu0 %v282
        %v755 = vpop.f32.mrb[0].mxu0
        %v756 = vadd.f32 %v547, %v755
        %v757 = vpop.f32.mrb[0].mxu0
        %v758 = vpop.f32.mrb[0].mxu0
        %v759 = vadd.f32 %v550, %v758
        %v760 = vpop.f32.mrb[0].mxu0
        %761 = vmatprep.mubr.bf16.mxu0 0
        %762 = vmatmul.mubr.bf16.gmra.mrb[0].mxu0 %v283
        %v763 = vpop.f32.mrb[0].mxu0
        %v764 = vadd.f32 %v555, %v763
        %v765 = vpop.f32.mrb[0].mxu0
        %v766 = vpop.f32.mrb[0].mxu0
        %v767 = vadd.f32 %v558, %v766
        %v768 = vpop.f32.mrb[0].mxu0
        %769 = vdwg.mxu0
        %s770 = scalar_lea.vmem %s1, 256
        %v771 = vld [vmem:[%s770] sm:$0xf]
        %v772 = vld [vmem:[%s770 + $0x4] sm:$0xf]
        %v773 = vld [vmem:[%s770 + $0x8] sm:$0xf]
        %v774 = vld [vmem:[%s770 + $0xc] sm:$0xf]
        %v775 = vld [vmem:[%s770 + $0x10] sm:$0xf]
        %v776 = vld [vmem:[%s770 + $0x14] sm:$0xf]
        %v777 = vld [vmem:[%s770 + $0x18] sm:$0xf]
        %v778 = vld [vmem:[%s770 + $0x1c] sm:$0xf]
        %v779 = vld [vmem:[%s770 + $0x20] sm:$0xf]
        %v780 = vld [vmem:[%s770 + $0x24] sm:$0xf]
        %v781 = vld [vmem:[%s770 + $0x28] sm:$0xf]
        %v782 = vld [vmem:[%s770 + $0x2c] sm:$0xf]
        %v783 = vld [vmem:[%s770 + $0x30] sm:$0xf]
        %v784 = vld [vmem:[%s770 + $0x34] sm:$0xf]
        %v785 = vld [vmem:[%s770 + $0x38] sm:$0xf]
        %v786 = vld [vmem:[%s770 + $0x3c] sm:$0xf]
        %v803 = vunpack.c.l.b16 %v771
        %v804 = vunpack.c.l.b16 %v772
        %v805 = vunpack.c.l.b16 %v773
        %v806 = vunpack.c.l.b16 %v774
        %v807 = vunpack.c.l.b16 %v775
        %v808 = vunpack.c.l.b16 %v776
        %v809 = vunpack.c.l.b16 %v777
        %v810 = vunpack.c.l.b16 %v778
        %v811 = vunpack.c.l.b16 %v779
        %v812 = vunpack.c.l.b16 %v780
        %v813 = vunpack.c.l.b16 %v781
        %v814 = vunpack.c.l.b16 %v782
        %v815 = vunpack.c.l.b16 %v783
        %v816 = vunpack.c.l.b16 %v784
        %v817 = vunpack.c.l.b16 %v785
        %v818 = vunpack.c.l.b16 %v786
        %v819 = vpack.c.b16 %v804, %v803
        %v820 = vpack.c.b16 %v806, %v805
        %v821 = vpack.c.b16 %v808, %v807
        %v822 = vpack.c.b16 %v810, %v809
        %v823 = vpack.c.b16 %v812, %v811
        %v824 = vpack.c.b16 %v814, %v813
        %v825 = vpack.c.b16 %v816, %v815
        %v826 = vpack.c.b16 %v818, %v817
        %835 = vmatprep.subr.bf16.mxu0 0
        %836 = vmatpush1.bf16.msra.mxu0 %v819
        %837 = vmatprep.subr.bf16.mxu0 0
        %838 = vmatpush1.bf16.msra.mxu0 %v820
        %839 = vmatprep.subr.bf16.mxu0 0
        %840 = vmatpush1.bf16.msra.mxu0 %v821
        %841 = vmatprep.subr.bf16.mxu0 0
        %842 = vmatpush1.bf16.msra.mxu0 %v822
        %843 = vmatprep.subr.bf16.mxu0 0
        %844 = vmatpush1.bf16.msra.mxu0 %v823
        %845 = vmatprep.subr.bf16.mxu0 0
        %846 = vmatpush1.bf16.msra.mxu0 %v824
        %847 = vmatprep.subr.bf16.mxu0 0
        %848 = vmatpush1.bf16.msra.mxu0 %v825
        %849 = vmatprep.subr.bf16.mxu0 0
        %850 = vmatpush1.bf16.msra.mxu0 %v826
        %851 = vmatprep.subr.bf16.mxu0 0
        %852 = vmatpush1.bf16.msra.mxu0 0
        %853 = vmatprep.subr.bf16.mxu0 0
        %854 = vmatpush1.bf16.msra.mxu0 0
        %855 = vmatprep.subr.bf16.mxu0 0
        %856 = vmatpush1.bf16.msra.mxu0 0
        %857 = vmatprep.subr.bf16.mxu0 0
        %858 = vmatpush1.bf16.msra.mxu0 0
        %859 = vmatprep.subr.bf16.mxu0 0
        %860 = vmatpush1.bf16.msra.mxu0 0
        %861 = vmatprep.subr.bf16.mxu0 0
        %862 = vmatpush1.bf16.msra.mxu0 0
        %863 = vmatprep.subr.bf16.mxu0 0
        %864 = vmatpush1.bf16.msra.mxu0 0
        %865 = vmatprep.subr.bf16.mxu0 0
        %866 = vmatpush1.bf16.msra.mxu0 0
        %867 = vmatprep.mubr.bf16.mxu0 0
        %868 = vmatmul.mubr.bf16.gmra.mrb[0].mxu0 %v269
        %v869 = vpop.f32.mrb[0].mxu0
        %v870 = vadd.f32 0.0, %v869
        %v871 = vpop.f32.mrb[0].mxu0
        %v872 = vpop.f32.mrb[0].mxu0
        %v873 = vadd.f32 0.0, %v872
        %v874 = vpop.f32.mrb[0].mxu0
        %875 = vmatprep.mubr.bf16.mxu0 0
        %876 = vmatmul.mubr.bf16.gmra.mrb[0].mxu0 %v270
        %v877 = vpop.f32.mrb[0].mxu0
        %v878 = vadd.f32 0.0, %v877
        %v879 = vpop.f32.mrb[0].mxu0
        %v880 = vpop.f32.mrb[0].mxu0
        %v881 = vadd.f32 0.0, %v880
        %v882 = vpop.f32.mrb[0].mxu0
        %883 = vmatprep.mubr.bf16.mxu0 0
        %884 = vmatmul.mubr.bf16.gmra.mrb[0].mxu0 %v271
        %v885 = vpop.f32.mrb[0].mxu0
        %v886 = vadd.f32 0.0, %v885
        %v887 = vpop.f32.mrb[0].mxu0
        %v888 = vpop.f32.mrb[0].mxu0
        %v889 = vadd.f32 0.0, %v888
        %v890 = vpop.f32.mrb[0].mxu0
        %891 = vmatprep.mubr.bf16.mxu0 0
        %892 = vmatmul.mubr.bf16.gmra.mrb[0].mxu0 %v272
        %v893 = vpop.f32.mrb[0].mxu0
        %v894 = vadd.f32 0.0, %v893
        %v895 = vpop.f32.mrb[0].mxu0
        %v896 = vpop.f32.mrb[0].mxu0
        %v897 = vadd.f32 0.0, %v896
        %v898 = vpop.f32.mrb[0].mxu0
        %899 = vmatprep.mubr.bf16.mxu0 0
        %900 = vmatmul.mubr.bf16.gmra.mrb[0].mxu0 %v273
        %v901 = vpop.f32.mrb[0].mxu0
        %v902 = vadd.f32 0.0, %v901
        %v903 = vpop.f32.mrb[0].mxu0
        %v904 = vpop.f32.mrb[0].mxu0
        %v905 = vadd.f32 0.0, %v904
        %v906 = vpop.f32.mrb[0].mxu0
        %907 = vmatprep.mubr.bf16.mxu0 0
        %908 = vmatmul.mubr.bf16.gmra.mrb[0].mxu0 %v274
        %v909 = vpop.f32.mrb[0].mxu0
        %v910 = vadd.f32 0.0, %v909
        %v911 = vpop.f32.mrb[0].mxu0
        %v912 = vpop.f32.mrb[0].mxu0
        %v913 = vadd.f32 0.0, %v912
        %v914 = vpop.f32.mrb[0].mxu0
        %915 = vmatprep.mubr.bf16.mxu0 0
        %916 = vmatmul.mubr.bf16.gmra.mrb[0].mxu0 %v275
        %v917 = vpop.f32.mrb[0].mxu0
        %v918 = vadd.f32 0.0, %v917
        %v919 = vpop.f32.mrb[0].mxu0
        %v920 = vpop.f32.mrb[0].mxu0
        %v921 = vadd.f32 0.0, %v920
        %v922 = vpop.f32.mrb[0].mxu0
        %923 = vmatprep.mubr.bf16.mxu0 0
        %924 = vmatmul.mubr.bf16.gmra.mrb[0].mxu0 %v276
        %v925 = vpop.f32.mrb[0].mxu0
        %v926 = vadd.f32 0.0, %v925
        %v927 = vpop.f32.mrb[0].mxu0
        %v928 = vpop.f32.mrb[0].mxu0
        %v929 = vadd.f32 0.0, %v928
        %v930 = vpop.f32.mrb[0].mxu0
        %931 = vmatprep.mubr.bf16.mxu0 0
        %932 = vmatmul.mubr.bf16.gmra.mrb[0].mxu0 %v277
        %v933 = vpop.f32.mrb[0].mxu0
        %v934 = vadd.f32 0.0, %v933
        %v935 = vpop.f32.mrb[0].mxu0
        %v936 = vpop.f32.mrb[0].mxu0
        %v937 = vadd.f32 0.0, %v936
        %v938 = vpop.f32.mrb[0].mxu0
        %939 = vmatprep.mubr.bf16.mxu0 0
        %940 = vmatmul.mubr.bf16.gmra.mrb[0].mxu0 %v278
        %v941 = vpop.f32.mrb[0].mxu0
        %v942 = vadd.f32 0.0, %v941
        %v943 = vpop.f32.mrb[0].mxu0
        %v944 = vpop.f32.mrb[0].mxu0
        %v945 = vadd.f32 0.0, %v944
        %v946 = vpop.f32.mrb[0].mxu0
        %947 = vmatprep.mubr.bf16.mxu0 0
        %948 = vmatmul.mubr.bf16.gmra.mrb[0].mxu0 %v279
        %v949 = vpop.f32.mrb[0].mxu0
        %v950 = vadd.f32 0.0, %v949
        %v951 = vpop.f32.mrb[0].mxu0
        %v952 = vpop.f32.mrb[0].mxu0
        %v953 = vadd.f32 0.0, %v952
        %v954 = vpop.f32.mrb[0].mxu0
        %955 = vmatprep.mubr.bf16.mxu0 0
        %956 = vmatmul.mubr.bf16.gmra.mrb[0].mxu0 %v280
        %v957 = vpop.f32.mrb[0].mxu0
        %v958 = vadd.f32 0.0, %v957
        %v959 = vpop.f32.mrb[0].mxu0
        %v960 = vpop.f32.mrb[0].mxu0
        %v961 = vadd.f32 0.0, %v960
        %v962 = vpop.f32.mrb[0].mxu0
        %963 = vmatprep.mubr.bf16.mxu0 0
        %964 = vmatmul.mubr.bf16.gmra.mrb[0].mxu0 %v281
        %v965 = vpop.f32.mrb[0].mxu0
        %v966 = vadd.f32 0.0, %v965
        %v967 = vpop.f32.mrb[0].mxu0
        %v968 = vpop.f32.mrb[0].mxu0
        %v969 = vadd.f32 0.0, %v968
        %v970 = vpop.f32.mrb[0].mxu0
        %971 = vmatprep.mubr.bf16.mxu0 0
        %972 = vmatmul.mubr.bf16.gmra.mrb[0].mxu0 %v282
        %v973 = vpop.f32.mrb[0].mxu0
        %v974 = vadd.f32 0.0, %v973
        %v975 = vpop.f32.mrb[0].mxu0
        %v976 = vpop.f32.mrb[0].mxu0
        %v977 = vadd.f32 0.0, %v976
        %v978 = vpop.f32.mrb[0].mxu0
        %979 = vmatprep.mubr.bf16.mxu0 0
        %980 = vmatmul.mubr.bf16.gmra.mrb[0].mxu0 %v283
        %v981 = vpop.f32.mrb[0].mxu0
        %v982 = vadd.f32 0.0, %v981
        %v983 = vpop.f32.mrb[0].mxu0
        %v984 = vpop.f32.mrb[0].mxu0
        %v985 = vadd.f32 0.0, %v984
        %v986 = vpop.f32.mrb[0].mxu0
        %987 = vmatprep.mubr.bf16.mxu0 0
        %988 = vmatmul.mubr.bf16.gmra.mrb[0].mxu0 %v334
        %v989 = vpop.f32.mrb[0].mxu0
        %v990 = vadd.f32 0.0, %v989
        %v991 = vpop.f32.mrb[0].mxu0
        %v992 = vpop.f32.mrb[0].mxu0
        %v993 = vadd.f32 0.0, %v992
        %v994 = vpop.f32.mrb[0].mxu0
        %995 = vdwg.mxu0
        %v1012 = vunpack.c.l.b16 %v301
        %v1013 = vunpack.c.l.b16 %v302
        %v1014 = vunpack.c.l.b16 %v303
        %v1015 = vunpack.c.l.b16 %v304
        %v1016 = vunpack.c.l.b16 %v305
        %v1017 = vunpack.c.l.b16 %v306
        %v1018 = vunpack.c.l.b16 %v307
        %v1019 = vunpack.c.l.b16 %v308
        %v1020 = vunpack.c.l.b16 %v309
        %v1021 = vunpack.c.l.b16 %v310
        %v1022 = vunpack.c.l.b16 %v311
        %v1023 = vunpack.c.l.b16 %v312
        %v1024 = vunpack.c.l.b16 %v313
        %v1025 = vunpack.c.l.b16 %v314
        %v1026 = vunpack.c.l.b16 %v315
        %v1027 = vunpack.c.l.b16 %v316
        %v1028 = vpack.c.b16 %v1013, %v1012
        %v1029 = vpack.c.b16 %v1015, %v1014
        %v1030 = vpack.c.b16 %v1017, %v1016
        %v1031 = vpack.c.b16 %v1019, %v1018
        %v1032 = vpack.c.b16 %v1021, %v1020
        %v1033 = vpack.c.b16 %v1023, %v1022
        %v1034 = vpack.c.b16 %v1025, %v1024
        %v1035 = vpack.c.b16 %v1027, %v1026
        %1044 = vmatprep.subr.bf16.mxu0 0
        %1045 = vmatpush1.bf16.msra.mxu0 %v1028
        %1046 = vmatprep.subr.bf16.mxu0 0
        %1047 = vmatpush1.bf16.msra.mxu0 %v1029
        %1048 = vmatprep.subr.bf16.mxu0 0
        %1049 = vmatpush1.bf16.msra.mxu0 %v1030
        %1050 = vmatprep.subr.bf16.mxu0 0
        %1051 = vmatpush1.bf16.msra.mxu0 %v1031
        %1052 = vmatprep.subr.bf16.mxu0 0
        %1053 = vmatpush1.bf16.msra.mxu0 %v1032
        %1054 = vmatprep.subr.bf16.mxu0 0
        %1055 = vmatpush1.bf16.msra.mxu0 %v1033
        %1056 = vmatprep.subr.bf16.mxu0 0
        %1057 = vmatpush1.bf16.msra.mxu0 %v1034
        %1058 = vmatprep.subr.bf16.mxu0 0
        %1059 = vmatpush1.bf16.msra.mxu0 %v1035
        %1060 = vmatprep.subr.bf16.mxu0 0
        %1061 = vmatpush1.bf16.msra.mxu0 0
        %1062 = vmatprep.subr.bf16.mxu0 0
        %1063 = vmatpush1.bf16.msra.mxu0 0
        %1064 = vmatprep.subr.bf16.mxu0 0
        %1065 = vmatpush1.bf16.msra.mxu0 0
        %1066 = vmatprep.subr.bf16.mxu0 0
        %1067 = vmatpush1.bf16.msra.mxu0 0
        %1068 = vmatprep.subr.bf16.mxu0 0
        %1069 = vmatpush1.bf16.msra.mxu0 0
        %1070 = vmatprep.subr.bf16.mxu0 0
        %1071 = vmatpush1.bf16.msra.mxu0 0
        %1072 = vmatprep.subr.bf16.mxu0 0
        %1073 = vmatpush1.bf16.msra.mxu0 0
        %1074 = vmatprep.subr.bf16.mxu0 0
        %1075 = vmatpush1.bf16.msra.mxu0 0
        %1076 = vmatprep.mubr.bf16.mxu0 0
        %1077 = vmatmul.mubr.bf16.gmra.mrb[0].mxu0 %v268
        %v1078 = vpop.f32.mrb[0].mxu0
        %v1079 = vadd.f32 %v870, %v1078
        %v1080 = vpop.f32.mrb[0].mxu0
        %v1081 = vpop.f32.mrb[0].mxu0
        %v1082 = vadd.f32 %v873, %v1081
        %v1083 = vpop.f32.mrb[0].mxu0
        %1084 = vmatprep.mubr.bf16.mxu0 0
        %1085 = vmatmul.mubr.bf16.gmra.mrb[0].mxu0 %v269
        %v1086 = vpop.f32.mrb[0].mxu0
        %v1087 = vadd.f32 %v878, %v1086
        %v1088 = vpop.f32.mrb[0].mxu0
        %v1089 = vpop.f32.mrb[0].mxu0
        %v1090 = vadd.f32 %v881, %v1089
        %v1091 = vpop.f32.mrb[0].mxu0
        %1092 = vmatprep.mubr.bf16.mxu0 0
        %1093 = vmatmul.mubr.bf16.gmra.mrb[0].mxu0 %v270
        %v1094 = vpop.f32.mrb[0].mxu0
        %v1095 = vadd.f32 %v886, %v1094
        %v1096 = vpop.f32.mrb[0].mxu0
        %v1097 = vpop.f32.mrb[0].mxu0
        %v1098 = vadd.f32 %v889, %v1097
        %v1099 = vpop.f32.mrb[0].mxu0
        %1100 = vmatprep.mubr.bf16.mxu0 0
        %1101 = vmatmul.mubr.bf16.gmra.mrb[0].mxu0 %v271
        %v1102 = vpop.f32.mrb[0].mxu0
        %v1103 = vadd.f32 %v894, %v1102
        %v1104 = vpop.f32.mrb[0].mxu0
        %v1105 = vpop.f32.mrb[0].mxu0
        %v1106 = vadd.f32 %v897, %v1105
        %v1107 = vpop.f32.mrb[0].mxu0
        %1108 = vmatprep.mubr.bf16.mxu0 0
        %1109 = vmatmul.mubr.bf16.gmra.mrb[0].mxu0 %v272
        %v1110 = vpop.f32.mrb[0].mxu0
        %v1111 = vadd.f32 %v902, %v1110
        %v1112 = vpop.f32.mrb[0].mxu0
        %v1113 = vpop.f32.mrb[0].mxu0
        %v1114 = vadd.f32 %v905, %v1113
        %v1115 = vpop.f32.mrb[0].mxu0
        %1116 = vmatprep.mubr.bf16.mxu0 0
        %1117 = vmatmul.mubr.bf16.gmra.mrb[0].mxu0 %v273
        %v1118 = vpop.f32.mrb[0].mxu0
        %v1119 = vadd.f32 %v910, %v1118
        %v1120 = vpop.f32.mrb[0].mxu0
        %v1121 = vpop.f32.mrb[0].mxu0
        %v1122 = vadd.f32 %v913, %v1121
        %v1123 = vpop.f32.mrb[0].mxu0
        %1124 = vmatprep.mubr.bf16.mxu0 0
        %1125 = vmatmul.mubr.bf16.gmra.mrb[0].mxu0 %v274
        %v1126 = vpop.f32.mrb[0].mxu0
        %v1127 = vadd.f32 %v918, %v1126
        %v1128 = vpop.f32.mrb[0].mxu0
        %v1129 = vpop.f32.mrb[0].mxu0
        %v1130 = vadd.f32 %v921, %v1129
        %v1131 = vpop.f32.mrb[0].mxu0
        %1132 = vmatprep.mubr.bf16.mxu0 0
        %1133 = vmatmul.mubr.bf16.gmra.mrb[0].mxu0 %v275
        %v1134 = vpop.f32.mrb[0].mxu0
        %v1135 = vadd.f32 %v926, %v1134
        %v1136 = vpop.f32.mrb[0].mxu0
        %v1137 = vpop.f32.mrb[0].mxu0
        %v1138 = vadd.f32 %v929, %v1137
        %v1139 = vpop.f32.mrb[0].mxu0
        %1140 = vmatprep.mubr.bf16.mxu0 0
        %1141 = vmatmul.mubr.bf16.gmra.mrb[0].mxu0 %v276
        %v1142 = vpop.f32.mrb[0].mxu0
        %v1143 = vadd.f32 %v934, %v1142
        %v1144 = vpop.f32.mrb[0].mxu0
        %v1145 = vpop.f32.mrb[0].mxu0
        %v1146 = vadd.f32 %v937, %v1145
        %v1147 = vpop.f32.mrb[0].mxu0
        %1148 = vmatprep.mubr.bf16.mxu0 0
        %1149 = vmatmul.mubr.bf16.gmra.mrb[0].mxu0 %v277
        %v1150 = vpop.f32.mrb[0].mxu0
        %v1151 = vadd.f32 %v942, %v1150
        %v1152 = vpop.f32.mrb[0].mxu0
        %v1153 = vpop.f32.mrb[0].mxu0
        %v1154 = vadd.f32 %v945, %v1153
        %v1155 = vpop.f32.mrb[0].mxu0
        %1156 = vmatprep.mubr.bf16.mxu0 0
        %1157 = vmatmul.mubr.bf16.gmra.mrb[0].mxu0 %v278
        %v1158 = vpop.f32.mrb[0].mxu0
        %v1159 = vadd.f32 %v950, %v1158
        %v1160 = vpop.f32.mrb[0].mxu0
        %v1161 = vpop.f32.mrb[0].mxu0
        %v1162 = vadd.f32 %v953, %v1161
        %v1163 = vpop.f32.mrb[0].mxu0
        %1164 = vmatprep.mubr.bf16.mxu0 0
        %1165 = vmatmul.mubr.bf16.gmra.mrb[0].mxu0 %v279
        %v1166 = vpop.f32.mrb[0].mxu0
        %v1167 = vadd.f32 %v958, %v1166
        %v1168 = vpop.f32.mrb[0].mxu0
        %v1169 = vpop.f32.mrb[0].mxu0
        %v1170 = vadd.f32 %v961, %v1169
        %v1171 = vpop.f32.mrb[0].mxu0
        %1172 = vmatprep.mubr.bf16.mxu0 0
        %1173 = vmatmul.mubr.bf16.gmra.mrb[0].mxu0 %v280
        %v1174 = vpop.f32.mrb[0].mxu0
        %v1175 = vadd.f32 %v966, %v1174
        %v1176 = vpop.f32.mrb[0].mxu0
        %v1177 = vpop.f32.mrb[0].mxu0
        %v1178 = vadd.f32 %v969, %v1177
        %v1179 = vpop.f32.mrb[0].mxu0
        %1180 = vmatprep.mubr.bf16.mxu0 0
        %1181 = vmatmul.mubr.bf16.gmra.mrb[0].mxu0 %v281
        %v1182 = vpop.f32.mrb[0].mxu0
        %v1183 = vadd.f32 %v974, %v1182
        %v1184 = vpop.f32.mrb[0].mxu0
        %v1185 = vpop.f32.mrb[0].mxu0
        %v1186 = vadd.f32 %v977, %v1185
        %v1187 = vpop.f32.mrb[0].mxu0
        %1188 = vmatprep.mubr.bf16.mxu0 0
        %1189 = vmatmul.mubr.bf16.gmra.mrb[0].mxu0 %v282
        %v1190 = vpop.f32.mrb[0].mxu0
        %v1191 = vadd.f32 %v982, %v1190
        %v1192 = vpop.f32.mrb[0].mxu0
        %v1193 = vpop.f32.mrb[0].mxu0
        %v1194 = vadd.f32 %v985, %v1193
        %v1195 = vpop.f32.mrb[0].mxu0
        %1196 = vmatprep.mubr.bf16.mxu0 0
        %1197 = vmatmul.mubr.bf16.gmra.mrb[0].mxu0 %v283
        %v1198 = vpop.f32.mrb[0].mxu0
        %v1199 = vadd.f32 %v990, %v1198
        %v1200 = vpop.f32.mrb[0].mxu0
        %v1201 = vpop.f32.mrb[0].mxu0
        %v1202 = vadd.f32 %v993, %v1201
        %v1203 = vpop.f32.mrb[0].mxu0
        %1204 = vdwg.mxu0
        %s1205 = scalar_lea.vmem %s1, 320
        %v1206 = vld [vmem:[%s1205] sm:$0xf]
        %v1207 = vld [vmem:[%s1205 + $0x4] sm:$0xf]
        %v1208 = vld [vmem:[%s1205 + $0x8] sm:$0xf]
        %v1209 = vld [vmem:[%s1205 + $0xc] sm:$0xf]
        %v1210 = vld [vmem:[%s1205 + $0x10] sm:$0xf]
        %v1211 = vld [vmem:[%s1205 + $0x14] sm:$0xf]
        %v1212 = vld [vmem:[%s1205 + $0x18] sm:$0xf]
        %v1213 = vld [vmem:[%s1205 + $0x1c] sm:$0xf]
        %v1214 = vld [vmem:[%s1205 + $0x20] sm:$0xf]
        %v1215 = vld [vmem:[%s1205 + $0x24] sm:$0xf]
        %v1216 = vld [vmem:[%s1205 + $0x28] sm:$0xf]
        %v1217 = vld [vmem:[%s1205 + $0x2c] sm:$0xf]
        %v1218 = vld [vmem:[%s1205 + $0x30] sm:$0xf]
        %v1219 = vld [vmem:[%s1205 + $0x34] sm:$0xf]
        %v1220 = vld [vmem:[%s1205 + $0x38] sm:$0xf]
        %v1221 = vld [vmem:[%s1205 + $0x3c] sm:$0xf]
        %v1238 = vunpack.c.l.b16 %v1206
        %v1239 = vunpack.c.l.b16 %v1207
        %v1240 = vunpack.c.l.b16 %v1208
        %v1241 = vunpack.c.l.b16 %v1209
        %v1242 = vunpack.c.l.b16 %v1210
        %v1243 = vunpack.c.l.b16 %v1211
        %v1244 = vunpack.c.l.b16 %v1212
        %v1245 = vunpack.c.l.b16 %v1213
        %v1246 = vunpack.c.l.b16 %v1214
        %v1247 = vunpack.c.l.b16 %v1215
        %v1248 = vunpack.c.l.b16 %v1216
        %v1249 = vunpack.c.l.b16 %v1217
        %v1250 = vunpack.c.l.b16 %v1218
        %v1251 = vunpack.c.l.b16 %v1219
        %v1252 = vunpack.c.l.b16 %v1220
        %v1253 = vunpack.c.l.b16 %v1221
        %v1254 = vpack.c.b16 %v1239, %v1238
        %v1255 = vpack.c.b16 %v1241, %v1240
        %v1256 = vpack.c.b16 %v1243, %v1242
        %v1257 = vpack.c.b16 %v1245, %v1244
        %v1258 = vpack.c.b16 %v1247, %v1246
        %v1259 = vpack.c.b16 %v1249, %v1248
        %v1260 = vpack.c.b16 %v1251, %v1250
        %v1261 = vpack.c.b16 %v1253, %v1252
        %1270 = vmatprep.subr.bf16.mxu0 0
        %1271 = vmatpush1.bf16.msra.mxu0 %v1254
        %1272 = vmatprep.subr.bf16.mxu0 0
        %1273 = vmatpush1.bf16.msra.mxu0 %v1255
        %1274 = vmatprep.subr.bf16.mxu0 0
        %1275 = vmatpush1.bf16.msra.mxu0 %v1256
        %1276 = vmatprep.subr.bf16.mxu0 0
        %1277 = vmatpush1.bf16.msra.mxu0 %v1257
        %1278 = vmatprep.subr.bf16.mxu0 0
        %1279 = vmatpush1.bf16.msra.mxu0 %v1258
        %1280 = vmatprep.subr.bf16.mxu0 0
        %1281 = vmatpush1.bf16.msra.mxu0 %v1259
        %1282 = vmatprep.subr.bf16.mxu0 0
        %1283 = vmatpush1.bf16.msra.mxu0 %v1260
        %1284 = vmatprep.subr.bf16.mxu0 0
        %1285 = vmatpush1.bf16.msra.mxu0 %v1261
        %1286 = vmatprep.subr.bf16.mxu0 0
        %1287 = vmatpush1.bf16.msra.mxu0 0
        %1288 = vmatprep.subr.bf16.mxu0 0
        %1289 = vmatpush1.bf16.msra.mxu0 0
        %1290 = vmatprep.subr.bf16.mxu0 0
        %1291 = vmatpush1.bf16.msra.mxu0 0
        %1292 = vmatprep.subr.bf16.mxu0 0
        %1293 = vmatpush1.bf16.msra.mxu0 0
        %1294 = vmatprep.subr.bf16.mxu0 0
        %1295 = vmatpush1.bf16.msra.mxu0 0
        %1296 = vmatprep.subr.bf16.mxu0 0
        %1297 = vmatpush1.bf16.msra.mxu0 0
        %1298 = vmatprep.subr.bf16.mxu0 0
        %1299 = vmatpush1.bf16.msra.mxu0 0
        %1300 = vmatprep.subr.bf16.mxu0 0
        %1301 = vmatpush1.bf16.msra.mxu0 0
        %1302 = vmatprep.mubr.bf16.mxu0 0
        %1303 = vmatmul.mubr.bf16.gmra.mrb[0].mxu0 %v269
        %v1304 = vpop.f32.mrb[0].mxu0
        %v1305 = vadd.f32 0.0, %v1304
        %v1306 = vpop.f32.mrb[0].mxu0
        %v1307 = vpop.f32.mrb[0].mxu0
        %v1308 = vadd.f32 0.0, %v1307
        %v1309 = vpop.f32.mrb[0].mxu0
        %1310 = vmatprep.mubr.bf16.mxu0 0
        %1311 = vmatmul.mubr.bf16.gmra.mrb[0].mxu0 %v270
        %v1312 = vpop.f32.mrb[0].mxu0
        %v1313 = vadd.f32 0.0, %v1312
        %v1314 = vpop.f32.mrb[0].mxu0
        %v1315 = vpop.f32.mrb[0].mxu0
        %v1316 = vadd.f32 0.0, %v1315
        %v1317 = vpop.f32.mrb[0].mxu0
        %1318 = vmatprep.mubr.bf16.mxu0 0
        %1319 = vmatmul.mubr.bf16.gmra.mrb[0].mxu0 %v271
        %v1320 = vpop.f32.mrb[0].mxu0
        %v1321 = vadd.f32 0.0, %v1320
        %v1322 = vpop.f32.mrb[0].mxu0
        %v1323 = vpop.f32.mrb[0].mxu0
        %v1324 = vadd.f32 0.0, %v1323
        %v1325 = vpop.f32.mrb[0].mxu0
        %1326 = vmatprep.mubr.bf16.mxu0 0
        %1327 = vmatmul.mubr.bf16.gmra.mrb[0].mxu0 %v272
        %v1328 = vpop.f32.mrb[0].mxu0
        %v1329 = vadd.f32 0.0, %v1328
        %v1330 = vpop.f32.mrb[0].mxu0
        %v1331 = vpop.f32.mrb[0].mxu0
        %v1332 = vadd.f32 0.0, %v1331
        %v1333 = vpop.f32.mrb[0].mxu0
        %1334 = vmatprep.mubr.bf16.mxu0 0
        %1335 = vmatmul.mubr.bf16.gmra.mrb[0].mxu0 %v273
        %v1336 = vpop.f32.mrb[0].mxu0
        %v1337 = vadd.f32 0.0, %v1336
        %v1338 = vpop.f32.mrb[0].mxu0
        %v1339 = vpop.f32.mrb[0].mxu0
        %v1340 = vadd.f32 0.0, %v1339
        %v1341 = vpop.f32.mrb[0].mxu0
        %1342 = vmatprep.mubr.bf16.mxu0 0
        %1343 = vmatmul.mubr.bf16.gmra.mrb[0].mxu0 %v274
        %v1344 = vpop.f32.mrb[0].mxu0
        %v1345 = vadd.f32 0.0, %v1344
        %v1346 = vpop.f32.mrb[0].mxu0
        %v1347 = vpop.f32.mrb[0].mxu0
        %v1348 = vadd.f32 0.0, %v1347
        %v1349 = vpop.f32.mrb[0].mxu0
        %1350 = vmatprep.mubr.bf16.mxu0 0
        %1351 = vmatmul.mubr.bf16.gmra.mrb[0].mxu0 %v275
        %v1352 = vpop.f32.mrb[0].mxu0
        %v1353 = vadd.f32 0.0, %v1352
        %v1354 = vpop.f32.mrb[0].mxu0
        %v1355 = vpop.f32.mrb[0].mxu0
        %v1356 = vadd.f32 0.0, %v1355
        %v1357 = vpop.f32.mrb[0].mxu0
        %1358 = vmatprep.mubr.bf16.mxu0 0
        %1359 = vmatmul.mubr.bf16.gmra.mrb[0].mxu0 %v276
        %v1360 = vpop.f32.mrb[0].mxu0
        %v1361 = vadd.f32 0.0, %v1360
        %v1362 = vpop.f32.mrb[0].mxu0
        %v1363 = vpop.f32.mrb[0].mxu0
        %v1364 = vadd.f32 0.0, %v1363
        %v1365 = vpop.f32.mrb[0].mxu0
        %1366 = vmatprep.mubr.bf16.mxu0 0
        %1367 = vmatmul.mubr.bf16.gmra.mrb[0].mxu0 %v277
        %v1368 = vpop.f32.mrb[0].mxu0
        %v1369 = vadd.f32 0.0, %v1368
        %v1370 = vpop.f32.mrb[0].mxu0
        %v1371 = vpop.f32.mrb[0].mxu0
        %v1372 = vadd.f32 0.0, %v1371
        %v1373 = vpop.f32.mrb[0].mxu0
        %1374 = vmatprep.mubr.bf16.mxu0 0
        %1375 = vmatmul.mubr.bf16.gmra.mrb[0].mxu0 %v278
        %v1376 = vpop.f32.mrb[0].mxu0
        %v1377 = vadd.f32 0.0, %v1376
        %v1378 = vpop.f32.mrb[0].mxu0
        %v1379 = vpop.f32.mrb[0].mxu0
        %v1380 = vadd.f32 0.0, %v1379
        %v1381 = vpop.f32.mrb[0].mxu0
        %1382 = vmatprep.mubr.bf16.mxu0 0
        %1383 = vmatmul.mubr.bf16.gmra.mrb[0].mxu0 %v279
        %v1384 = vpop.f32.mrb[0].mxu0
        %v1385 = vadd.f32 0.0, %v1384
        %v1386 = vpop.f32.mrb[0].mxu0
        %v1387 = vpop.f32.mrb[0].mxu0
        %v1388 = vadd.f32 0.0, %v1387
        %v1389 = vpop.f32.mrb[0].mxu0
        %1390 = vmatprep.mubr.bf16.mxu0 0
        %1391 = vmatmul.mubr.bf16.gmra.mrb[0].mxu0 %v280
        %v1392 = vpop.f32.mrb[0].mxu0
        %v1393 = vadd.f32 0.0, %v1392
        %v1394 = vpop.f32.mrb[0].mxu0
        %v1395 = vpop.f32.mrb[0].mxu0
        %v1396 = vadd.f32 0.0, %v1395
        %v1397 = vpop.f32.mrb[0].mxu0
        %1398 = vmatprep.mubr.bf16.mxu0 0
        %1399 = vmatmul.mubr.bf16.gmra.mrb[0].mxu0 %v281
        %v1400 = vpop.f32.mrb[0].mxu0
        %v1401 = vadd.f32 0.0, %v1400
        %v1402 = vpop.f32.mrb[0].mxu0
        %v1403 = vpop.f32.mrb[0].mxu0
        %v1404 = vadd.f32 0.0, %v1403
        %v1405 = vpop.f32.mrb[0].mxu0
        %1406 = vmatprep.mubr.bf16.mxu0 0
        %1407 = vmatmul.mubr.bf16.gmra.mrb[0].mxu0 %v282
        %v1408 = vpop.f32.mrb[0].mxu0
        %v1409 = vadd.f32 0.0, %v1408
        %v1410 = vpop.f32.mrb[0].mxu0
        %v1411 = vpop.f32.mrb[0].mxu0
        %v1412 = vadd.f32 0.0, %v1411
        %v1413 = vpop.f32.mrb[0].mxu0
        %1414 = vmatprep.mubr.bf16.mxu0 0
        %1415 = vmatmul.mubr.bf16.gmra.mrb[0].mxu0 %v283
        %v1416 = vpop.f32.mrb[0].mxu0
        %v1417 = vadd.f32 0.0, %v1416
        %v1418 = vpop.f32.mrb[0].mxu0
        %v1419 = vpop.f32.mrb[0].mxu0
        %v1420 = vadd.f32 0.0, %v1419
        %v1421 = vpop.f32.mrb[0].mxu0
        %1422 = vmatprep.mubr.bf16.mxu0 0
        %1423 = vmatmul.mubr.bf16.gmra.mrb[0].mxu0 %v334
        %v1424 = vpop.f32.mrb[0].mxu0
        %v1425 = vadd.f32 0.0, %v1424
        %v1426 = vpop.f32.mrb[0].mxu0
        %v1427 = vpop.f32.mrb[0].mxu0
        %v1428 = vadd.f32 0.0, %v1427
        %v1429 = vpop.f32.mrb[0].mxu0
        %1430 = vdwg.mxu0
        %v1447 = vunpack.c.l.b16 %v318
        %v1448 = vunpack.c.l.b16 %v319
        %v1449 = vunpack.c.l.b16 %v320
        %v1450 = vunpack.c.l.b16 %v321
        %v1451 = vunpack.c.l.b16 %v322
        %v1452 = vunpack.c.l.b16 %v323
        %v1453 = vunpack.c.l.b16 %v324
        %v1454 = vunpack.c.l.b16 %v325
        %v1455 = vunpack.c.l.b16 %v326
        %v1456 = vunpack.c.l.b16 %v327
        %v1457 = vunpack.c.l.b16 %v328
        %v1458 = vunpack.c.l.b16 %v329
        %v1459 = vunpack.c.l.b16 %v330
        %v1460 = vunpack.c.l.b16 %v331
        %v1461 = vunpack.c.l.b16 %v332
        %v1462 = vunpack.c.l.b16 %v333
        %v1463 = vpack.c.b16 %v1448, %v1447
        %v1464 = vpack.c.b16 %v1450, %v1449
        %v1465 = vpack.c.b16 %v1452, %v1451
        %v1466 = vpack.c.b16 %v1454, %v1453
        %v1467 = vpack.c.b16 %v1456, %v1455
        %v1468 = vpack.c.b16 %v1458, %v1457
        %v1469 = vpack.c.b16 %v1460, %v1459
        %v1470 = vpack.c.b16 %v1462, %v1461
        %1479 = vmatprep.subr.bf16.mxu0 0
        %1480 = vmatpush1.bf16.msra.mxu0 %v1463
        %1481 = vmatprep.subr.bf16.mxu0 0
        %1482 = vmatpush1.bf16.msra.mxu0 %v1464
        %1483 = vmatprep.subr.bf16.mxu0 0
        %1484 = vmatpush1.bf16.msra.mxu0 %v1465
        %1485 = vmatprep.subr.bf16.mxu0 0
        %1486 = vmatpush1.bf16.msra.mxu0 %v1466
        %1487 = vmatprep.subr.bf16.mxu0 0
        %1488 = vmatpush1.bf16.msra.mxu0 %v1467
        %1489 = vmatprep.subr.bf16.mxu0 0
        %1490 = vmatpush1.bf16.msra.mxu0 %v1468
        %1491 = vmatprep.subr.bf16.mxu0 0
        %1492 = vmatpush1.bf16.msra.mxu0 %v1469
        %1493 = vmatprep.subr.bf16.mxu0 0
        %1494 = vmatpush1.bf16.msra.mxu0 %v1470
        %1495 = vmatprep.subr.bf16.mxu0 0
        %1496 = vmatpush1.bf16.msra.mxu0 0
        %1497 = vmatprep.subr.bf16.mxu0 0
        %1498 = vmatpush1.bf16.msra.mxu0 0
        %1499 = vmatprep.subr.bf16.mxu0 0
        %1500 = vmatpush1.bf16.msra.mxu0 0
        %1501 = vmatprep.subr.bf16.mxu0 0
        %1502 = vmatpush1.bf16.msra.mxu0 0
        %1503 = vmatprep.subr.bf16.mxu0 0
        %1504 = vmatpush1.bf16.msra.mxu0 0
        %1505 = vmatprep.subr.bf16.mxu0 0
        %1506 = vmatpush1.bf16.msra.mxu0 0
        %1507 = vmatprep.subr.bf16.mxu0 0
        %1508 = vmatpush1.bf16.msra.mxu0 0
        %1509 = vmatprep.subr.bf16.mxu0 0
        %1510 = vmatpush1.bf16.msra.mxu0 0
        %1511 = vmatprep.mubr.bf16.mxu0 0
        %1512 = vmatmul.mubr.bf16.gmra.mrb[0].mxu0 %v268
        %v1513 = vpop.f32.mrb[0].mxu0
        %v1514 = vadd.f32 %v1305, %v1513
        %v1515 = vpop.f32.mrb[0].mxu0
        %v1516 = vpop.f32.mrb[0].mxu0
        %v1517 = vadd.f32 %v1308, %v1516
        %v1518 = vpop.f32.mrb[0].mxu0
        %1519 = vmatprep.mubr.bf16.mxu0 0
        %1520 = vmatmul.mubr.bf16.gmra.mrb[0].mxu0 %v269
        %v1521 = vpop.f32.mrb[0].mxu0
        %v1522 = vadd.f32 %v1313, %v1521
        %v1523 = vpop.f32.mrb[0].mxu0
        %v1524 = vpop.f32.mrb[0].mxu0
        %v1525 = vadd.f32 %v1316, %v1524
        %v1526 = vpop.f32.mrb[0].mxu0
        %1527 = vmatprep.mubr.bf16.mxu0 0
        %1528 = vmatmul.mubr.bf16.gmra.mrb[0].mxu0 %v270
        %v1529 = vpop.f32.mrb[0].mxu0
        %v1530 = vadd.f32 %v1321, %v1529
        %v1531 = vpop.f32.mrb[0].mxu0
        %v1532 = vpop.f32.mrb[0].mxu0
        %v1533 = vadd.f32 %v1324, %v1532
        %v1534 = vpop.f32.mrb[0].mxu0
        %1535 = vmatprep.mubr.bf16.mxu0 0
        %1536 = vmatmul.mubr.bf16.gmra.mrb[0].mxu0 %v271
        %v1537 = vpop.f32.mrb[0].mxu0
        %v1538 = vadd.f32 %v1329, %v1537
        %v1539 = vpop.f32.mrb[0].mxu0
        %v1540 = vpop.f32.mrb[0].mxu0
        %v1541 = vadd.f32 %v1332, %v1540
        %v1542 = vpop.f32.mrb[0].mxu0
        %1543 = vmatprep.mubr.bf16.mxu0 0
        %1544 = vmatmul.mubr.bf16.gmra.mrb[0].mxu0 %v272
        %v1545 = vpop.f32.mrb[0].mxu0
        %v1546 = vadd.f32 %v1337, %v1545
        %v1547 = vpop.f32.mrb[0].mxu0
        %v1548 = vpop.f32.mrb[0].mxu0
        %v1549 = vadd.f32 %v1340, %v1548
        %v1550 = vpop.f32.mrb[0].mxu0
        %1551 = vmatprep.mubr.bf16.mxu0 0
        %1552 = vmatmul.mubr.bf16.gmra.mrb[0].mxu0 %v273
        %v1553 = vpop.f32.mrb[0].mxu0
        %v1554 = vadd.f32 %v1345, %v1553
        %v1555 = vpop.f32.mrb[0].mxu0
        %v1556 = vpop.f32.mrb[0].mxu0
        %v1557 = vadd.f32 %v1348, %v1556
        %v1558 = vpop.f32.mrb[0].mxu0
        %1559 = vmatprep.mubr.bf16.mxu0 0
        %1560 = vmatmul.mubr.bf16.gmra.mrb[0].mxu0 %v274
        %v1561 = vpop.f32.mrb[0].mxu0
        %v1562 = vadd.f32 %v1353, %v1561
        %v1563 = vpop.f32.mrb[0].mxu0
        %v1564 = vpop.f32.mrb[0].mxu0
        %v1565 = vadd.f32 %v1356, %v1564
        %v1566 = vpop.f32.mrb[0].mxu0
        %1567 = vmatprep.mubr.bf16.mxu0 0
        %1568 = vmatmul.mubr.bf16.gmra.mrb[0].mxu0 %v275
        %v1569 = vpop.f32.mrb[0].mxu0
        %v1570 = vadd.f32 %v1361, %v1569
        %v1571 = vpop.f32.mrb[0].mxu0
        %v1572 = vpop.f32.mrb[0].mxu0
        %v1573 = vadd.f32 %v1364, %v1572
        %v1574 = vpop.f32.mrb[0].mxu0
        %1575 = vmatprep.mubr.bf16.mxu0 0
        %1576 = vmatmul.mubr.bf16.gmra.mrb[0].mxu0 %v276
        %v1577 = vpop.f32.mrb[0].mxu0
        %v1578 = vadd.f32 %v1369, %v1577
        %v1579 = vpop.f32.mrb[0].mxu0
        %v1580 = vpop.f32.mrb[0].mxu0
        %v1581 = vadd.f32 %v1372, %v1580
        %v1582 = vpop.f32.mrb[0].mxu0
        %1583 = vmatprep.mubr.bf16.mxu0 0
        %1584 = vmatmul.mubr.bf16.gmra.mrb[0].mxu0 %v277
        %v1585 = vpop.f32.mrb[0].mxu0
        %v1586 = vadd.f32 %v1377, %v1585
        %v1587 = vpop.f32.mrb[0].mxu0
        %v1588 = vpop.f32.mrb[0].mxu0
        %v1589 = vadd.f32 %v1380, %v1588
        %v1590 = vpop.f32.mrb[0].mxu0
        %1591 = vmatprep.mubr.bf16.mxu0 0
        %1592 = vmatmul.mubr.bf16.gmra.mrb[0].mxu0 %v278
        %v1593 = vpop.f32.mrb[0].mxu0
        %v1594 = vadd.f32 %v1385, %v1593
        %v1595 = vpop.f32.mrb[0].mxu0
        %v1596 = vpop.f32.mrb[0].mxu0
        %v1597 = vadd.f32 %v1388, %v1596
        %v1598 = vpop.f32.mrb[0].mxu0
        %1599 = vmatprep.mubr.bf16.mxu0 0
        %1600 = vmatmul.mubr.bf16.gmra.mrb[0].mxu0 %v279
        %v1601 = vpop.f32.mrb[0].mxu0
        %v1602 = vadd.f32 %v1393, %v1601
        %v1603 = vpop.f32.mrb[0].mxu0
        %v1604 = vpop.f32.mrb[0].mxu0
        %v1605 = vadd.f32 %v1396, %v1604
        %v1606 = vpop.f32.mrb[0].mxu0
        %1607 = vmatprep.mubr.bf16.mxu0 0
        %1608 = vmatmul.mubr.bf16.gmra.mrb[0].mxu0 %v280
        %v1609 = vpop.f32.mrb[0].mxu0
        %v1610 = vadd.f32 %v1401, %v1609
        %v1611 = vpop.f32.mrb[0].mxu0
        %v1612 = vpop.f32.mrb[0].mxu0
        %v1613 = vadd.f32 %v1404, %v1612
        %v1614 = vpop.f32.mrb[0].mxu0
        %1615 = vmatprep.mubr.bf16.mxu0 0
        %1616 = vmatmul.mubr.bf16.gmra.mrb[0].mxu0 %v281
        %v1617 = vpop.f32.mrb[0].mxu0
        %v1618 = vadd.f32 %v1409, %v1617
        %v1619 = vpop.f32.mrb[0].mxu0
        %v1620 = vpop.f32.mrb[0].mxu0
        %v1621 = vadd.f32 %v1412, %v1620
        %v1622 = vpop.f32.mrb[0].mxu0
        %1623 = vmatprep.mubr.bf16.mxu0 0
        %1624 = vmatmul.mubr.bf16.gmra.mrb[0].mxu0 %v282
        %v1625 = vpop.f32.mrb[0].mxu0
        %v1626 = vadd.f32 %v1417, %v1625
        %v1627 = vpop.f32.mrb[0].mxu0
        %v1628 = vpop.f32.mrb[0].mxu0
        %v1629 = vadd.f32 %v1420, %v1628
        %v1630 = vpop.f32.mrb[0].mxu0
        %1631 = vmatprep.mubr.bf16.mxu0 0
        %1632 = vmatmul.mubr.bf16.gmra.mrb[0].mxu0 %v283
        %v1633 = vpop.f32.mrb[0].mxu0
        %v1634 = vadd.f32 %v1425, %v1633
        %v1635 = vpop.f32.mrb[0].mxu0
        %v1636 = vpop.f32.mrb[0].mxu0
        %v1637 = vadd.f32 %v1428, %v1636
        %v1638 = vpop.f32.mrb[0].mxu0
        %1639 = vdwg.mxu0
        %v1640 = vld [vmem:[#allocation2 + $0x10] sm:$0xff]
        %v1641 = vld [vmem:[#allocation2 + $0x18] sm:$0xff]
        %v1642 = vld [vmem:[#allocation2 + $0x20] sm:$0xff]
        %v1643 = vld [vmem:[#allocation2 + $0x28] sm:$0xff]
        %v1644 = vld [vmem:[#allocation2 + $0x30] sm:$0xff]
        %v1645 = vld [vmem:[#allocation2 + $0x38] sm:$0xff]
        %v1646 = vld [vmem:[#allocation2 + $0x40] sm:$0xff]
        %v1647 = vld [vmem:[#allocation2 + $0x48] sm:$0xff]
        %v1648 = vld [vmem:[#allocation2 + $0x50] sm:$0xff]
        %v1649 = vld [vmem:[#allocation2 + $0x58] sm:$0xff]
        %v1650 = vld [vmem:[#allocation2 + $0x60] sm:$0xff]
        %v1651 = vld [vmem:[#allocation2 + $0x68] sm:$0xff]
        %v1652 = vld [vmem:[#allocation2 + $0x70] sm:$0xff]
        %v1653 = vld [vmem:[#allocation2 + $0x78] sm:$0xff]
        %v1654 = vld [vmem:[#allocation2 + $0x80] sm:$0xff]
        %v1655 = vld [vmem:[#allocation2 + $0x88] sm:$0xff]
        %s1656 = scalar_lea.vmem %s1, 384
        %v1657 = vld [vmem:[%s1656] sm:$0xf]
        %v1658 = vld [vmem:[%s1656 + $0x4] sm:$0xf]
        %v1659 = vld [vmem:[%s1656 + $0x8] sm:$0xf]
        %v1660 = vld [vmem:[%s1656 + $0xc] sm:$0xf]
        %v1661 = vld [vmem:[%s1656 + $0x10] sm:$0xf]
        %v1662 = vld [vmem:[%s1656 + $0x14] sm:$0xf]
        %v1663 = vld [vmem:[%s1656 + $0x18] sm:$0xf]
        %v1664 = vld [vmem:[%s1656 + $0x1c] sm:$0xf]
        %v1665 = vld [vmem:[%s1656 + $0x20] sm:$0xf]
        %v1666 = vld [vmem:[%s1656 + $0x24] sm:$0xf]
        %v1667 = vld [vmem:[%s1656 + $0x28] sm:$0xf]
        %v1668 = vld [vmem:[%s1656 + $0x2c] sm:$0xf]
        %v1669 = vld [vmem:[%s1656 + $0x30] sm:$0xf]
        %v1670 = vld [vmem:[%s1656 + $0x34] sm:$0xf]
        %v1671 = vld [vmem:[%s1656 + $0x38] sm:$0xf]
        %v1672 = vld [vmem:[%s1656 + $0x3c] sm:$0xf]
        %v1689 = vunpack.c.l.b16 %v1657
        %v1690 = vunpack.c.l.b16 %v1658
        %v1691 = vunpack.c.l.b16 %v1659
        %v1692 = vunpack.c.l.b16 %v1660
        %v1693 = vunpack.c.l.b16 %v1661
        %v1694 = vunpack.c.l.b16 %v1662
        %v1695 = vunpack.c.l.b16 %v1663
        %v1696 = vunpack.c.l.b16 %v1664
        %v1697 = vunpack.c.l.b16 %v1665
        %v1698 = vunpack.c.l.b16 %v1666
        %v1699 = vunpack.c.l.b16 %v1667
        %v1700 = vunpack.c.l.b16 %v1668
        %v1701 = vunpack.c.l.b16 %v1669
        %v1702 = vunpack.c.l.b16 %v1670
        %v1703 = vunpack.c.l.b16 %v1671
        %v1704 = vunpack.c.l.b16 %v1672
        %v1705 = vpack.c.b16 %v1690, %v1689
        %v1706 = vpack.c.b16 %v1692, %v1691
        %v1707 = vpack.c.b16 %v1694, %v1693
        %v1708 = vpack.c.b16 %v1696, %v1695
        %v1709 = vpack.c.b16 %v1698, %v1697
        %v1710 = vpack.c.b16 %v1700, %v1699
        %v1711 = vpack.c.b16 %v1702, %v1701
        %v1712 = vpack.c.b16 %v1704, %v1703
        %1721 = vmatprep.subr.bf16.mxu0 0
        %1722 = vmatpush1.bf16.msra.mxu0 %v1705
        %1723 = vmatprep.subr.bf16.mxu0 0
        %1724 = vmatpush1.bf16.msra.mxu0 %v1706
        %1725 = vmatprep.subr.bf16.mxu0 0
        %1726 = vmatpush1.bf16.msra.mxu0 %v1707
        %1727 = vmatprep.subr.bf16.mxu0 0
        %1728 = vmatpush1.bf16.msra.mxu0 %v1708
        %1729 = vmatprep.subr.bf16.mxu0 0
        %1730 = vmatpush1.bf16.msra.mxu0 %v1709
        %1731 = vmatprep.subr.bf16.mxu0 0
        %1732 = vmatpush1.bf16.msra.mxu0 %v1710
        %1733 = vmatprep.subr.bf16.mxu0 0
        %1734 = vmatpush1.bf16.msra.mxu0 %v1711
        %1735 = vmatprep.subr.bf16.mxu0 0
        %1736 = vmatpush1.bf16.msra.mxu0 %v1712
        %1737 = vmatprep.subr.bf16.mxu0 0
        %1738 = vmatpush1.bf16.msra.mxu0 0
        %1739 = vmatprep.subr.bf16.mxu0 0
        %1740 = vmatpush1.bf16.msra.mxu0 0
        %1741 = vmatprep.subr.bf16.mxu0 0
        %1742 = vmatpush1.bf16.msra.mxu0 0
        %1743 = vmatprep.subr.bf16.mxu0 0
        %1744 = vmatpush1.bf16.msra.mxu0 0
        %1745 = vmatprep.subr.bf16.mxu0 0
        %1746 = vmatpush1.bf16.msra.mxu0 0
        %1747 = vmatprep.subr.bf16.mxu0 0
        %1748 = vmatpush1.bf16.msra.mxu0 0
        %1749 = vmatprep.subr.bf16.mxu0 0
        %1750 = vmatpush1.bf16.msra.mxu0 0
        %1751 = vmatprep.subr.bf16.mxu0 0
        %1752 = vmatpush1.bf16.msra.mxu0 0
        %1753 = vmatprep.mubr.bf16.mxu0 0
        %1754 = vmatmul.mubr.bf16.gmra.mrb[0].mxu0 %v1640
        %v1755 = vpop.f32.mrb[0].mxu0
        %v1756 = vadd.f32 0.0, %v1755
        %v1757 = vpop.f32.mrb[0].mxu0
        %v1758 = vpop.f32.mrb[0].mxu0
        %v1759 = vadd.f32 0.0, %v1758
        %v1760 = vpop.f32.mrb[0].mxu0
        %1761 = vmatprep.mubr.bf16.mxu0 0
        %1762 = vmatmul.mubr.bf16.gmra.mrb[0].mxu0 %v1641
        %v1763 = vpop.f32.mrb[0].mxu0
        %v1764 = vadd.f32 0.0, %v1763
        %v1765 = vpop.f32.mrb[0].mxu0
        %v1766 = vpop.f32.mrb[0].mxu0
        %v1767 = vadd.f32 0.0, %v1766
        %v1768 = vpop.f32.mrb[0].mxu0
        %1769 = vmatprep.mubr.bf16.mxu0 0
        %1770 = vmatmul.mubr.bf16.gmra.mrb[0].mxu0 %v1642
        %v1771 = vpop.f32.mrb[0].mxu0
        %v1772 = vadd.f32 0.0, %v1771
        %v1773 = vpop.f32.mrb[0].mxu0
        %v1774 = vpop.f32.mrb[0].mxu0
        %v1775 = vadd.f32 0.0, %v1774
        %v1776 = vpop.f32.mrb[0].mxu0
        %1777 = vmatprep.mubr.bf16.mxu0 0
        %1778 = vmatmul.mubr.bf16.gmra.mrb[0].mxu0 %v1643
        %v1779 = vpop.f32.mrb[0].mxu0
        %v1780 = vadd.f32 0.0, %v1779
        %v1781 = vpop.f32.mrb[0].mxu0
        %v1782 = vpop.f32.mrb[0].mxu0
        %v1783 = vadd.f32 0.0, %v1782
        %v1784 = vpop.f32.mrb[0].mxu0
        %1785 = vmatprep.mubr.bf16.mxu0 0
        %1786 = vmatmul.mubr.bf16.gmra.mrb[0].mxu0 %v1644
        %v1787 = vpop.f32.mrb[0].mxu0
        %v1788 = vadd.f32 0.0, %v1787
        %v1789 = vpop.f32.mrb[0].mxu0
        %v1790 = vpop.f32.mrb[0].mxu0
        %v1791 = vadd.f32 0.0, %v1790
        %v1792 = vpop.f32.mrb[0].mxu0
        %1793 = vmatprep.mubr.bf16.mxu0 0
        %1794 = vmatmul.mubr.bf16.gmra.mrb[0].mxu0 %v1645
        %v1795 = vpop.f32.mrb[0].mxu0
        %v1796 = vadd.f32 0.0, %v1795
        %v1797 = vpop.f32.mrb[0].mxu0
        %v1798 = vpop.f32.mrb[0].mxu0
        %v1799 = vadd.f32 0.0, %v1798
        %v1800 = vpop.f32.mrb[0].mxu0
        %1801 = vmatprep.mubr.bf16.mxu0 0
        %1802 = vmatmul.mubr.bf16.gmra.mrb[0].mxu0 %v1646
        %v1803 = vpop.f32.mrb[0].mxu0
        %v1804 = vadd.f32 0.0, %v1803
        %v1805 = vpop.f32.mrb[0].mxu0
        %v1806 = vpop.f32.mrb[0].mxu0
        %v1807 = vadd.f32 0.0, %v1806
        %v1808 = vpop.f32.mrb[0].mxu0
        %1809 = vmatprep.mubr.bf16.mxu0 0
        %1810 = vmatmul.mubr.bf16.gmra.mrb[0].mxu0 %v1647
        %v1811 = vpop.f32.mrb[0].mxu0
        %v1812 = vadd.f32 0.0, %v1811
        %v1813 = vpop.f32.mrb[0].mxu0
        %v1814 = vpop.f32.mrb[0].mxu0
        %v1815 = vadd.f32 0.0, %v1814
        %v1816 = vpop.f32.mrb[0].mxu0
        %1817 = vmatprep.mubr.bf16.mxu0 0
        %1818 = vmatmul.mubr.bf16.gmra.mrb[0].mxu0 %v1648
        %v1819 = vpop.f32.mrb[0].mxu0
        %v1820 = vadd.f32 0.0, %v1819
        %v1821 = vpop.f32.mrb[0].mxu0
        %v1822 = vpop.f32.mrb[0].mxu0
        %v1823 = vadd.f32 0.0, %v1822
        %v1824 = vpop.f32.mrb[0].mxu0
        %1825 = vmatprep.mubr.bf16.mxu0 0
        %1826 = vmatmul.mubr.bf16.gmra.mrb[0].mxu0 %v1649
        %v1827 = vpop.f32.mrb[0].mxu0
        %v1828 = vadd.f32 0.0, %v1827
        %v1829 = vpop.f32.mrb[0].mxu0
        %v1830 = vpop.f32.mrb[0].mxu0
        %v1831 = vadd.f32 0.0, %v1830
        %v1832 = vpop.f32.mrb[0].mxu0
        %1833 = vmatprep.mubr.bf16.mxu0 0
        %1834 = vmatmul.mubr.bf16.gmra.mrb[0].mxu0 %v1650
        %v1835 = vpop.f32.mrb[0].mxu0
        %v1836 = vadd.f32 0.0, %v1835
        %v1837 = vpop.f32.mrb[0].mxu0
        %v1838 = vpop.f32.mrb[0].mxu0
        %v1839 = vadd.f32 0.0, %v1838
        %v1840 = vpop.f32.mrb[0].mxu0
        %1841 = vmatprep.mubr.bf16.mxu0 0
        %1842 = vmatmul.mubr.bf16.gmra.mrb[0].mxu0 %v1651
        %v1843 = vpop.f32.mrb[0].mxu0
        %v1844 = vadd.f32 0.0, %v1843
        %v1845 = vpop.f32.mrb[0].mxu0
        %v1846 = vpop.f32.mrb[0].mxu0
        %v1847 = vadd.f32 0.0, %v1846
        %v1848 = vpop.f32.mrb[0].mxu0
        %1849 = vmatprep.mubr.bf16.mxu0 0
        %1850 = vmatmul.mubr.bf16.gmra.mrb[0].mxu0 %v1652
        %v1851 = vpop.f32.mrb[0].mxu0
        %v1852 = vadd.f32 0.0, %v1851
        %v1853 = vpop.f32.mrb[0].mxu0
        %v1854 = vpop.f32.mrb[0].mxu0
        %v1855 = vadd.f32 0.0, %v1854
        %v1856 = vpop.f32.mrb[0].mxu0
        %1857 = vmatprep.mubr.bf16.mxu0 0
        %1858 = vmatmul.mubr.bf16.gmra.mrb[0].mxu0 %v1653
        %v1859 = vpop.f32.mrb[0].mxu0
        %v1860 = vadd.f32 0.0, %v1859
        %v1861 = vpop.f32.mrb[0].mxu0
        %v1862 = vpop.f32.mrb[0].mxu0
        %v1863 = vadd.f32 0.0, %v1862
        %v1864 = vpop.f32.mrb[0].mxu0
        %1865 = vmatprep.mubr.bf16.mxu0 0
        %1866 = vmatmul.mubr.bf16.gmra.mrb[0].mxu0 %v1654
        %v1867 = vpop.f32.mrb[0].mxu0
        %v1868 = vadd.f32 0.0, %v1867
        %v1869 = vpop.f32.mrb[0].mxu0
        %v1870 = vpop.f32.mrb[0].mxu0
        %v1871 = vadd.f32 0.0, %v1870
        %v1872 = vpop.f32.mrb[0].mxu0
        %1873 = vmatprep.mubr.bf16.mxu0 0
        %1874 = vmatmul.mubr.bf16.gmra.mrb[0].mxu0 %v1655
        %v1875 = vpop.f32.mrb[0].mxu0
        %v1876 = vadd.f32 0.0, %v1875
        %v1877 = vpop.f32.mrb[0].mxu0
        %v1878 = vpop.f32.mrb[0].mxu0
        %v1879 = vadd.f32 0.0, %v1878
        %v1880 = vpop.f32.mrb[0].mxu0
        %1881 = vdwg.mxu0
        %v1882 = vadd.f32 %v644, %v1756
        %v1883 = vadd.f32 %v647, %v1759
        %v1884 = vadd.f32 %v652, %v1764
        %v1885 = vadd.f32 %v655, %v1767
        %v1886 = vadd.f32 %v660, %v1772
        %v1887 = vadd.f32 %v663, %v1775
        %v1888 = vadd.f32 %v668, %v1780
        %v1889 = vadd.f32 %v671, %v1783
        %v1890 = vadd.f32 %v676, %v1788
        %v1891 = vadd.f32 %v679, %v1791
        %v1892 = vadd.f32 %v684, %v1796
        %v1893 = vadd.f32 %v687, %v1799
        %v1894 = vadd.f32 %v692, %v1804
        %v1895 = vadd.f32 %v695, %v1807
        %v1896 = vadd.f32 %v700, %v1812
        %v1897 = vadd.f32 %v703, %v1815
        %v1898 = vadd.f32 %v708, %v1820
        %v1899 = vadd.f32 %v711, %v1823
        %v1900 = vadd.f32 %v716, %v1828
        %v1901 = vadd.f32 %v719, %v1831
        %v1902 = vadd.f32 %v724, %v1836
        %v1903 = vadd.f32 %v727, %v1839
        %v1904 = vadd.f32 %v732, %v1844
        %v1905 = vadd.f32 %v735, %v1847
        %v1906 = vadd.f32 %v740, %v1852
        %v1907 = vadd.f32 %v743, %v1855
        %v1908 = vadd.f32 %v748, %v1860
        %v1909 = vadd.f32 %v751, %v1863
        %v1910 = vadd.f32 %v756, %v1868
        %v1911 = vadd.f32 %v759, %v1871
        %v1912 = vadd.f32 %v764, %v1876
        %v1913 = vadd.f32 %v767, %v1879
        %s1914 = scalar_lea.vmem %s1, 448
        %v1915 = vld [vmem:[%s1914] sm:$0xf]
        %v1916 = vld [vmem:[%s1914 + $0x4] sm:$0xf]
        %v1917 = vld [vmem:[%s1914 + $0x8] sm:$0xf]
        %v1918 = vld [vmem:[%s1914 + $0xc] sm:$0xf]
        %v1919 = vld [vmem:[%s1914 + $0x10] sm:$0xf]
        %v1920 = vld [vmem:[%s1914 + $0x14] sm:$0xf]
        %v1921 = vld [vmem:[%s1914 + $0x18] sm:$0xf]
        %v1922 = vld [vmem:[%s1914 + $0x1c] sm:$0xf]
        %v1923 = vld [vmem:[%s1914 + $0x20] sm:$0xf]
        %v1924 = vld [vmem:[%s1914 + $0x24] sm:$0xf]
        %v1925 = vld [vmem:[%s1914 + $0x28] sm:$0xf]
        %v1926 = vld [vmem:[%s1914 + $0x2c] sm:$0xf]
        %v1927 = vld [vmem:[%s1914 + $0x30] sm:$0xf]
        %v1928 = vld [vmem:[%s1914 + $0x34] sm:$0xf]
        %v1929 = vld [vmem:[%s1914 + $0x38] sm:$0xf]
        %v1930 = vld [vmem:[%s1914 + $0x3c] sm:$0xf]
        %v1947 = vunpack.c.l.b16 %v1915
        %v1948 = vunpack.c.l.b16 %v1916
        %v1949 = vunpack.c.l.b16 %v1917
        %v1950 = vunpack.c.l.b16 %v1918
        %v1951 = vunpack.c.l.b16 %v1919
        %v1952 = vunpack.c.l.b16 %v1920
        %v1953 = vunpack.c.l.b16 %v1921
        %v1954 = vunpack.c.l.b16 %v1922
        %v1955 = vunpack.c.l.b16 %v1923
        %v1956 = vunpack.c.l.b16 %v1924
        %v1957 = vunpack.c.l.b16 %v1925
        %v1958 = vunpack.c.l.b16 %v1926
        %v1959 = vunpack.c.l.b16 %v1927
        %v1960 = vunpack.c.l.b16 %v1928
        %v1961 = vunpack.c.l.b16 %v1929
        %v1962 = vunpack.c.l.b16 %v1930
        %v1963 = vpack.c.b16 %v1948, %v1947
        %v1964 = vpack.c.b16 %v1950, %v1949
        %v1965 = vpack.c.b16 %v1952, %v1951
        %v1966 = vpack.c.b16 %v1954, %v1953
        %v1967 = vpack.c.b16 %v1956, %v1955
        %v1968 = vpack.c.b16 %v1958, %v1957
        %v1969 = vpack.c.b16 %v1960, %v1959
        %v1970 = vpack.c.b16 %v1962, %v1961
        %1979 = vmatprep.subr.bf16.mxu0 0
        %1980 = vmatpush1.bf16.msra.mxu0 %v1963
        %1981 = vmatprep.subr.bf16.mxu0 0
        %1982 = vmatpush1.bf16.msra.mxu0 %v1964
        %1983 = vmatprep.subr.bf16.mxu0 0
        %1984 = vmatpush1.bf16.msra.mxu0 %v1965
        %1985 = vmatprep.subr.bf16.mxu0 0
        %1986 = vmatpush1.bf16.msra.mxu0 %v1966
        %1987 = vmatprep.subr.bf16.mxu0 0
        %1988 = vmatpush1.bf16.msra.mxu0 %v1967
        %1989 = vmatprep.subr.bf16.mxu0 0
        %1990 = vmatpush1.bf16.msra.mxu0 %v1968
        %1991 = vmatprep.subr.bf16.mxu0 0
        %1992 = vmatpush1.bf16.msra.mxu0 %v1969
        %1993 = vmatprep.subr.bf16.mxu0 0
        %1994 = vmatpush1.bf16.msra.mxu0 %v1970
        %1995 = vmatprep.subr.bf16.mxu0 0
        %1996 = vmatpush1.bf16.msra.mxu0 0
        %1997 = vmatprep.subr.bf16.mxu0 0
        %1998 = vmatpush1.bf16.msra.mxu0 0
        %1999 = vmatprep.subr.bf16.mxu0 0
        %2000 = vmatpush1.bf16.msra.mxu0 0
        %2001 = vmatprep.subr.bf16.mxu0 0
        %2002 = vmatpush1.bf16.msra.mxu0 0
        %2003 = vmatprep.subr.bf16.mxu0 0
        %2004 = vmatpush1.bf16.msra.mxu0 0
        %2005 = vmatprep.subr.bf16.mxu0 0
        %2006 = vmatpush1.bf16.msra.mxu0 0
        %2007 = vmatprep.subr.bf16.mxu0 0
        %2008 = vmatpush1.bf16.msra.mxu0 0
        %2009 = vmatprep.subr.bf16.mxu0 0
        %2010 = vmatpush1.bf16.msra.mxu0 0
        %2011 = vmatprep.mubr.bf16.mxu0 0
        %2012 = vmatmul.mubr.bf16.gmra.mrb[0].mxu0 %v1640
        %v2013 = vpop.f32.mrb[0].mxu0
        %v2014 = vadd.f32 0.0, %v2013
        %v2015 = vpop.f32.mrb[0].mxu0
        %v2016 = vpop.f32.mrb[0].mxu0
        %v2017 = vadd.f32 0.0, %v2016
        %v2018 = vpop.f32.mrb[0].mxu0
        %2019 = vmatprep.mubr.bf16.mxu0 0
        %2020 = vmatmul.mubr.bf16.gmra.mrb[0].mxu0 %v1641
        %v2021 = vpop.f32.mrb[0].mxu0
        %v2022 = vadd.f32 0.0, %v2021
        %v2023 = vpop.f32.mrb[0].mxu0
        %v2024 = vpop.f32.mrb[0].mxu0
        %v2025 = vadd.f32 0.0, %v2024
        %v2026 = vpop.f32.mrb[0].mxu0
        %2027 = vmatprep.mubr.bf16.mxu0 0
        %2028 = vmatmul.mubr.bf16.gmra.mrb[0].mxu0 %v1642
        %v2029 = vpop.f32.mrb[0].mxu0
        %v2030 = vadd.f32 0.0, %v2029
        %v2031 = vpop.f32.mrb[0].mxu0
        %v2032 = vpop.f32.mrb[0].mxu0
        %v2033 = vadd.f32 0.0, %v2032
        %v2034 = vpop.f32.mrb[0].mxu0
        %2035 = vmatprep.mubr.bf16.mxu0 0
        %2036 = vmatmul.mubr.bf16.gmra.mrb[0].mxu0 %v1643
        %v2037 = vpop.f32.mrb[0].mxu0
        %v2038 = vadd.f32 0.0, %v2037
        %v2039 = vpop.f32.mrb[0].mxu0
        %v2040 = vpop.f32.mrb[0].mxu0
        %v2041 = vadd.f32 0.0, %v2040
        %v2042 = vpop.f32.mrb[0].mxu0
        %2043 = vmatprep.mubr.bf16.mxu0 0
        %2044 = vmatmul.mubr.bf16.gmra.mrb[0].mxu0 %v1644
        %v2045 = vpop.f32.mrb[0].mxu0
        %v2046 = vadd.f32 0.0, %v2045
        %v2047 = vpop.f32.mrb[0].mxu0
        %v2048 = vpop.f32.mrb[0].mxu0
        %v2049 = vadd.f32 0.0, %v2048
        %v2050 = vpop.f32.mrb[0].mxu0
        %2051 = vmatprep.mubr.bf16.mxu0 0
        %2052 = vmatmul.mubr.bf16.gmra.mrb[0].mxu0 %v1645
        %v2053 = vpop.f32.mrb[0].mxu0
        %v2054 = vadd.f32 0.0, %v2053
        %v2055 = vpop.f32.mrb[0].mxu0
        %v2056 = vpop.f32.mrb[0].mxu0
        %v2057 = vadd.f32 0.0, %v2056
        %v2058 = vpop.f32.mrb[0].mxu0
        %2059 = vmatprep.mubr.bf16.mxu0 0
        %2060 = vmatmul.mubr.bf16.gmra.mrb[0].mxu0 %v1646
        %v2061 = vpop.f32.mrb[0].mxu0
        %v2062 = vadd.f32 0.0, %v2061
        %v2063 = vpop.f32.mrb[0].mxu0
        %v2064 = vpop.f32.mrb[0].mxu0
        %v2065 = vadd.f32 0.0, %v2064
        %v2066 = vpop.f32.mrb[0].mxu0
        %2067 = vmatprep.mubr.bf16.mxu0 0
        %2068 = vmatmul.mubr.bf16.gmra.mrb[0].mxu0 %v1647
        %v2069 = vpop.f32.mrb[0].mxu0
        %v2070 = vadd.f32 0.0, %v2069
        %v2071 = vpop.f32.mrb[0].mxu0
        %v2072 = vpop.f32.mrb[0].mxu0
        %v2073 = vadd.f32 0.0, %v2072
        %v2074 = vpop.f32.mrb[0].mxu0
        %2075 = vmatprep.mubr.bf16.mxu0 0
        %2076 = vmatmul.mubr.bf16.gmra.mrb[0].mxu0 %v1648
        %v2077 = vpop.f32.mrb[0].mxu0
        %v2078 = vadd.f32 0.0, %v2077
        %v2079 = vpop.f32.mrb[0].mxu0
        %v2080 = vpop.f32.mrb[0].mxu0
        %v2081 = vadd.f32 0.0, %v2080
        %v2082 = vpop.f32.mrb[0].mxu0
        %2083 = vmatprep.mubr.bf16.mxu0 0
        %2084 = vmatmul.mubr.bf16.gmra.mrb[0].mxu0 %v1649
        %v2085 = vpop.f32.mrb[0].mxu0
        %v2086 = vadd.f32 0.0, %v2085
        %v2087 = vpop.f32.mrb[0].mxu0
        %v2088 = vpop.f32.mrb[0].mxu0
        %v2089 = vadd.f32 0.0, %v2088
        %v2090 = vpop.f32.mrb[0].mxu0
        %2091 = vmatprep.mubr.bf16.mxu0 0
        %2092 = vmatmul.mubr.bf16.gmra.mrb[0].mxu0 %v1650
        %v2093 = vpop.f32.mrb[0].mxu0
        %v2094 = vadd.f32 0.0, %v2093
        %v2095 = vpop.f32.mrb[0].mxu0
        %v2096 = vpop.f32.mrb[0].mxu0
        %v2097 = vadd.f32 0.0, %v2096
        %v2098 = vpop.f32.mrb[0].mxu0
        %2099 = vmatprep.mubr.bf16.mxu0 0
        %2100 = vmatmul.mubr.bf16.gmra.mrb[0].mxu0 %v1651
        %v2101 = vpop.f32.mrb[0].mxu0
        %v2102 = vadd.f32 0.0, %v2101
        %v2103 = vpop.f32.mrb[0].mxu0
        %v2104 = vpop.f32.mrb[0].mxu0
        %v2105 = vadd.f32 0.0, %v2104
        %v2106 = vpop.f32.mrb[0].mxu0
        %2107 = vmatprep.mubr.bf16.mxu0 0
        %2108 = vmatmul.mubr.bf16.gmra.mrb[0].mxu0 %v1652
        %v2109 = vpop.f32.mrb[0].mxu0
        %v2110 = vadd.f32 0.0, %v2109
        %v2111 = vpop.f32.mrb[0].mxu0
        %v2112 = vpop.f32.mrb[0].mxu0
        %v2113 = vadd.f32 0.0, %v2112
        %v2114 = vpop.f32.mrb[0].mxu0
        %2115 = vmatprep.mubr.bf16.mxu0 0
        %2116 = vmatmul.mubr.bf16.gmra.mrb[0].mxu0 %v1653
        %v2117 = vpop.f32.mrb[0].mxu0
        %v2118 = vadd.f32 0.0, %v2117
        %v2119 = vpop.f32.mrb[0].mxu0
        %v2120 = vpop.f32.mrb[0].mxu0
        %v2121 = vadd.f32 0.0, %v2120
        %v2122 = vpop.f32.mrb[0].mxu0
        %2123 = vmatprep.mubr.bf16.mxu0 0
        %2124 = vmatmul.mubr.bf16.gmra.mrb[0].mxu0 %v1654
        %v2125 = vpop.f32.mrb[0].mxu0
        %v2126 = vadd.f32 0.0, %v2125
        %v2127 = vpop.f32.mrb[0].mxu0
        %v2128 = vpop.f32.mrb[0].mxu0
        %v2129 = vadd.f32 0.0, %v2128
        %v2130 = vpop.f32.mrb[0].mxu0
        %2131 = vmatprep.mubr.bf16.mxu0 0
        %2132 = vmatmul.mubr.bf16.gmra.mrb[0].mxu0 %v1655
        %v2133 = vpop.f32.mrb[0].mxu0
        %v2134 = vadd.f32 0.0, %v2133
        %v2135 = vpop.f32.mrb[0].mxu0
        %v2136 = vpop.f32.mrb[0].mxu0
        %v2137 = vadd.f32 0.0, %v2136
        %v2138 = vpop.f32.mrb[0].mxu0
        %2139 = vdwg.mxu0
        %v2140 = vadd.f32 %v1079, %v2014
        %v2141 = vadd.f32 %v1082, %v2017
        %v2142 = vadd.f32 %v1087, %v2022
        %v2143 = vadd.f32 %v1090, %v2025
        %v2144 = vadd.f32 %v1095, %v2030
        %v2145 = vadd.f32 %v1098, %v2033
        %v2146 = vadd.f32 %v1103, %v2038
        %v2147 = vadd.f32 %v1106, %v2041
        %v2148 = vadd.f32 %v1111, %v2046
        %v2149 = vadd.f32 %v1114, %v2049
        %v2150 = vadd.f32 %v1119, %v2054
        %v2151 = vadd.f32 %v1122, %v2057
        %v2152 = vadd.f32 %v1127, %v2062
        %v2153 = vadd.f32 %v1130, %v2065
        %v2154 = vadd.f32 %v1135, %v2070
        %v2155 = vadd.f32 %v1138, %v2073
        %v2156 = vadd.f32 %v1143, %v2078
        %v2157 = vadd.f32 %v1146, %v2081
        %v2158 = vadd.f32 %v1151, %v2086
        %v2159 = vadd.f32 %v1154, %v2089
        %v2160 = vadd.f32 %v1159, %v2094
        %v2161 = vadd.f32 %v1162, %v2097
        %v2162 = vadd.f32 %v1167, %v2102
        %v2163 = vadd.f32 %v1170, %v2105
        %v2164 = vadd.f32 %v1175, %v2110
        %v2165 = vadd.f32 %v1178, %v2113
        %v2166 = vadd.f32 %v1183, %v2118
        %v2167 = vadd.f32 %v1186, %v2121
        %v2168 = vadd.f32 %v1191, %v2126
        %v2169 = vadd.f32 %v1194, %v2129
        %v2170 = vadd.f32 %v1199, %v2134
        %v2171 = vadd.f32 %v1202, %v2137
        %s2172 = scalar_lea.vmem %s1, 512
        %v2173 = vld [vmem:[%s2172] sm:$0xf]
        %v2174 = vld [vmem:[%s2172 + $0x4] sm:$0xf]
        %v2175 = vld [vmem:[%s2172 + $0x8] sm:$0xf]
        %v2176 = vld [vmem:[%s2172 + $0xc] sm:$0xf]
        %v2177 = vld [vmem:[%s2172 + $0x10] sm:$0xf]
        %v2178 = vld [vmem:[%s2172 + $0x14] sm:$0xf]
        %v2179 = vld [vmem:[%s2172 + $0x18] sm:$0xf]
        %v2180 = vld [vmem:[%s2172 + $0x1c] sm:$0xf]
        %v2181 = vld [vmem:[%s2172 + $0x20] sm:$0xf]
        %v2182 = vld [vmem:[%s2172 + $0x24] sm:$0xf]
        %v2183 = vld [vmem:[%s2172 + $0x28] sm:$0xf]
        %v2184 = vld [vmem:[%s2172 + $0x2c] sm:$0xf]
        %v2185 = vld [vmem:[%s2172 + $0x30] sm:$0xf]
        %v2186 = vld [vmem:[%s2172 + $0x34] sm:$0xf]
        %v2187 = vld [vmem:[%s2172 + $0x38] sm:$0xf]
        %v2188 = vld [vmem:[%s2172 + $0x3c] sm:$0xf]
        %v2205 = vunpack.c.l.b16 %v2173
        %v2206 = vunpack.c.l.b16 %v2174
        %v2207 = vunpack.c.l.b16 %v2175
        %v2208 = vunpack.c.l.b16 %v2176
        %v2209 = vunpack.c.l.b16 %v2177
        %v2210 = vunpack.c.l.b16 %v2178
        %v2211 = vunpack.c.l.b16 %v2179
        %v2212 = vunpack.c.l.b16 %v2180
        %v2213 = vunpack.c.l.b16 %v2181
        %v2214 = vunpack.c.l.b16 %v2182
        %v2215 = vunpack.c.l.b16 %v2183
        %v2216 = vunpack.c.l.b16 %v2184
        %v2217 = vunpack.c.l.b16 %v2185
        %v2218 = vunpack.c.l.b16 %v2186
        %v2219 = vunpack.c.l.b16 %v2187
        %v2220 = vunpack.c.l.b16 %v2188
        %v2221 = vpack.c.b16 %v2206, %v2205
        %v2222 = vpack.c.b16 %v2208, %v2207
        %v2223 = vpack.c.b16 %v2210, %v2209
        %v2224 = vpack.c.b16 %v2212, %v2211
        %v2225 = vpack.c.b16 %v2214, %v2213
        %v2226 = vpack.c.b16 %v2216, %v2215
        %v2227 = vpack.c.b16 %v2218, %v2217
        %v2228 = vpack.c.b16 %v2220, %v2219
        %2237 = vmatprep.subr.bf16.mxu0 0
        %2238 = vmatpush1.bf16.msra.mxu0 %v2221
        %2239 = vmatprep.subr.bf16.mxu0 0
        %2240 = vmatpush1.bf16.msra.mxu0 %v2222
        %2241 = vmatprep.subr.bf16.mxu0 0
        %2242 = vmatpush1.bf16.msra.mxu0 %v2223
        %2243 = vmatprep.subr.bf16.mxu0 0
        %2244 = vmatpush1.bf16.msra.mxu0 %v2224
        %2245 = vmatprep.subr.bf16.mxu0 0
        %2246 = vmatpush1.bf16.msra.mxu0 %v2225
        %2247 = vmatprep.subr.bf16.mxu0 0
        %2248 = vmatpush1.bf16.msra.mxu0 %v2226
        %2249 = vmatprep.subr.bf16.mxu0 0
        %2250 = vmatpush1.bf16.msra.mxu0 %v2227
        %2251 = vmatprep.subr.bf16.mxu0 0
        %2252 = vmatpush1.bf16.msra.mxu0 %v2228
        %2253 = vmatprep.subr.bf16.mxu0 0
        %2254 = vmatpush1.bf16.msra.mxu0 0
        %2255 = vmatprep.subr.bf16.mxu0 0
        %2256 = vmatpush1.bf16.msra.mxu0 0
        %2257 = vmatprep.subr.bf16.mxu0 0
        %2258 = vmatpush1.bf16.msra.mxu0 0
        %2259 = vmatprep.subr.bf16.mxu0 0
        %2260 = vmatpush1.bf16.msra.mxu0 0
        %2261 = vmatprep.subr.bf16.mxu0 0
        %2262 = vmatpush1.bf16.msra.mxu0 0
        %2263 = vmatprep.subr.bf16.mxu0 0
        %2264 = vmatpush1.bf16.msra.mxu0 0
        %2265 = vmatprep.subr.bf16.mxu0 0
        %2266 = vmatpush1.bf16.msra.mxu0 0
        %2267 = vmatprep.subr.bf16.mxu0 0
        %2268 = vmatpush1.bf16.msra.mxu0 0
        %2269 = vmatprep.mubr.bf16.mxu0 0
        %2270 = vmatmul.mubr.bf16.gmra.mrb[0].mxu0 %v1640
        %v2271 = vpop.f32.mrb[0].mxu0
        %v2272 = vadd.f32 0.0, %v2271
        %v2273 = vpop.f32.mrb[0].mxu0
        %v2274 = vpop.f32.mrb[0].mxu0
        %v2275 = vadd.f32 0.0, %v2274
        %v2276 = vpop.f32.mrb[0].mxu0
        %2277 = vmatprep.mubr.bf16.mxu0 0
        %2278 = vmatmul.mubr.bf16.gmra.mrb[0].mxu0 %v1641
        %v2279 = vpop.f32.mrb[0].mxu0
        %v2280 = vadd.f32 0.0, %v2279
        %v2281 = vpop.f32.mrb[0].mxu0
        %v2282 = vpop.f32.mrb[0].mxu0
        %v2283 = vadd.f32 0.0, %v2282
        %v2284 = vpop.f32.mrb[0].mxu0
        %2285 = vmatprep.mubr.bf16.mxu0 0
        %2286 = vmatmul.mubr.bf16.gmra.mrb[0].mxu0 %v1642
        %v2287 = vpop.f32.mrb[0].mxu0
        %v2288 = vadd.f32 0.0, %v2287
        %v2289 = vpop.f32.mrb[0].mxu0
        %v2290 = vpop.f32.mrb[0].mxu0
        %v2291 = vadd.f32 0.0, %v2290
        %v2292 = vpop.f32.mrb[0].mxu0
        %2293 = vmatprep.mubr.bf16.mxu0 0
        %2294 = vmatmul.mubr.bf16.gmra.mrb[0].mxu0 %v1643
        %v2295 = vpop.f32.mrb[0].mxu0
        %v2296 = vadd.f32 0.0, %v2295
        %v2297 = vpop.f32.mrb[0].mxu0
        %v2298 = vpop.f32.mrb[0].mxu0
        %v2299 = vadd.f32 0.0, %v2298
        %v2300 = vpop.f32.mrb[0].mxu0
        %2301 = vmatprep.mubr.bf16.mxu0 0
        %2302 = vmatmul.mubr.bf16.gmra.mrb[0].mxu0 %v1644
        %v2303 = vpop.f32.mrb[0].mxu0
        %v2304 = vadd.f32 0.0, %v2303
        %v2305 = vpop.f32.mrb[0].mxu0
        %v2306 = vpop.f32.mrb[0].mxu0
        %v2307 = vadd.f32 0.0, %v2306
        %v2308 = vpop.f32.mrb[0].mxu0
        %2309 = vmatprep.mubr.bf16.mxu0 0
        %2310 = vmatmul.mubr.bf16.gmra.mrb[0].mxu0 %v1645
        %v2311 = vpop.f32.mrb[0].mxu0
        %v2312 = vadd.f32 0.0, %v2311
        %v2313 = vpop.f32.mrb[0].mxu0
        %v2314 = vpop.f32.mrb[0].mxu0
        %v2315 = vadd.f32 0.0, %v2314
        %v2316 = vpop.f32.mrb[0].mxu0
        %2317 = vmatprep.mubr.bf16.mxu0 0
        %2318 = vmatmul.mubr.bf16.gmra.mrb[0].mxu0 %v1646
        %v2319 = vpop.f32.mrb[0].mxu0
        %v2320 = vadd.f32 0.0, %v2319
        %v2321 = vpop.f32.mrb[0].mxu0
        %v2322 = vpop.f32.mrb[0].mxu0
        %v2323 = vadd.f32 0.0, %v2322
        %v2324 = vpop.f32.mrb[0].mxu0
        %2325 = vmatprep.mubr.bf16.mxu0 0
        %2326 = vmatmul.mubr.bf16.gmra.mrb[0].mxu0 %v1647
        %v2327 = vpop.f32.mrb[0].mxu0
        %v2328 = vadd.f32 0.0, %v2327
        %v2329 = vpop.f32.mrb[0].mxu0
        %v2330 = vpop.f32.mrb[0].mxu0
        %v2331 = vadd.f32 0.0, %v2330
        %v2332 = vpop.f32.mrb[0].mxu0
        %2333 = vmatprep.mubr.bf16.mxu0 0
        %2334 = vmatmul.mubr.bf16.gmra.mrb[0].mxu0 %v1648
        %v2335 = vpop.f32.mrb[0].mxu0
        %v2336 = vadd.f32 0.0, %v2335
        %v2337 = vpop.f32.mrb[0].mxu0
        %v2338 = vpop.f32.mrb[0].mxu0
        %v2339 = vadd.f32 0.0, %v2338
        %v2340 = vpop.f32.mrb[0].mxu0
        %2341 = vmatprep.mubr.bf16.mxu0 0
        %2342 = vmatmul.mubr.bf16.gmra.mrb[0].mxu0 %v1649
        %v2343 = vpop.f32.mrb[0].mxu0
        %v2344 = vadd.f32 0.0, %v2343
        %v2345 = vpop.f32.mrb[0].mxu0
        %v2346 = vpop.f32.mrb[0].mxu0
        %v2347 = vadd.f32 0.0, %v2346
        %v2348 = vpop.f32.mrb[0].mxu0
        %2349 = vmatprep.mubr.bf16.mxu0 0
        %2350 = vmatmul.mubr.bf16.gmra.mrb[0].mxu0 %v1650
        %v2351 = vpop.f32.mrb[0].mxu0
        %v2352 = vadd.f32 0.0, %v2351
        %v2353 = vpop.f32.mrb[0].mxu0
        %v2354 = vpop.f32.mrb[0].mxu0
        %v2355 = vadd.f32 0.0, %v2354
        %v2356 = vpop.f32.mrb[0].mxu0
        %2357 = vmatprep.mubr.bf16.mxu0 0
        %2358 = vmatmul.mubr.bf16.gmra.mrb[0].mxu0 %v1651
        %v2359 = vpop.f32.mrb[0].mxu0
        %v2360 = vadd.f32 0.0, %v2359
        %v2361 = vpop.f32.mrb[0].mxu0
        %v2362 = vpop.f32.mrb[0].mxu0
        %v2363 = vadd.f32 0.0, %v2362
        %v2364 = vpop.f32.mrb[0].mxu0
        %2365 = vmatprep.mubr.bf16.mxu0 0
        %2366 = vmatmul.mubr.bf16.gmra.mrb[0].mxu0 %v1652
        %v2367 = vpop.f32.mrb[0].mxu0
        %v2368 = vadd.f32 0.0, %v2367
        %v2369 = vpop.f32.mrb[0].mxu0
        %v2370 = vpop.f32.mrb[0].mxu0
        %v2371 = vadd.f32 0.0, %v2370
        %v2372 = vpop.f32.mrb[0].mxu0
        %2373 = vmatprep.mubr.bf16.mxu0 0
        %2374 = vmatmul.mubr.bf16.gmra.mrb[0].mxu0 %v1653
        %v2375 = vpop.f32.mrb[0].mxu0
        %v2376 = vadd.f32 0.0, %v2375
        %v2377 = vpop.f32.mrb[0].mxu0
        %v2378 = vpop.f32.mrb[0].mxu0
        %v2379 = vadd.f32 0.0, %v2378
        %v2380 = vpop.f32.mrb[0].mxu0
        %2381 = vmatprep.mubr.bf16.mxu0 0
        %2382 = vmatmul.mubr.bf16.gmra.mrb[0].mxu0 %v1654
        %v2383 = vpop.f32.mrb[0].mxu0
        %v2384 = vadd.f32 0.0, %v2383
        %v2385 = vpop.f32.mrb[0].mxu0
        %v2386 = vpop.f32.mrb[0].mxu0
        %v2387 = vadd.f32 0.0, %v2386
        %v2388 = vpop.f32.mrb[0].mxu0
        %2389 = vmatprep.mubr.bf16.mxu0 0
        %2390 = vmatmul.mubr.bf16.gmra.mrb[0].mxu0 %v1655
        %v2391 = vpop.f32.mrb[0].mxu0
        %v2392 = vadd.f32 0.0, %v2391
        %v2393 = vpop.f32.mrb[0].mxu0
        %v2394 = vpop.f32.mrb[0].mxu0
        %v2395 = vadd.f32 0.0, %v2394
        %v2396 = vpop.f32.mrb[0].mxu0
        %2397 = vdwg.mxu0
        %v2398 = vadd.f32 %v1514, %v2272
        %v2399 = vadd.f32 %v1517, %v2275
        %v2400 = vadd.f32 %v1522, %v2280
        %v2401 = vadd.f32 %v1525, %v2283
        %v2402 = vadd.f32 %v1530, %v2288
        %v2403 = vadd.f32 %v1533, %v2291
        %v2404 = vadd.f32 %v1538, %v2296
        %v2405 = vadd.f32 %v1541, %v2299
        %v2406 = vadd.f32 %v1546, %v2304
        %v2407 = vadd.f32 %v1549, %v2307
        %v2408 = vadd.f32 %v1554, %v2312
        %v2409 = vadd.f32 %v1557, %v2315
        %v2410 = vadd.f32 %v1562, %v2320
        %v2411 = vadd.f32 %v1565, %v2323
        %v2412 = vadd.f32 %v1570, %v2328
        %v2413 = vadd.f32 %v1573, %v2331
        %v2414 = vadd.f32 %v1578, %v2336
        %v2415 = vadd.f32 %v1581, %v2339
        %v2416 = vadd.f32 %v1586, %v2344
        %v2417 = vadd.f32 %v1589, %v2347
        %v2418 = vadd.f32 %v1594, %v2352
        %v2419 = vadd.f32 %v1597, %v2355
        %v2420 = vadd.f32 %v1602, %v2360
        %v2421 = vadd.f32 %v1605, %v2363
        %v2422 = vadd.f32 %v1610, %v2368
        %v2423 = vadd.f32 %v1613, %v2371
        %v2424 = vadd.f32 %v1618, %v2376
        %v2425 = vadd.f32 %v1621, %v2379
        %v2426 = vadd.f32 %v1626, %v2384
        %v2427 = vadd.f32 %v1629, %v2387
        %v2428 = vadd.f32 %v1634, %v2392
        %v2429 = vadd.f32 %v1637, %v2395
        %vm2462 = vcmask 1040384
        %v2463 = vrot.slane %v1882, 7
        %v2464 = vrot.slane %v1883, 7
        %v2465 = vsel %vm2462, %v2463, %v2464
        %v2466 = vrot.slane %v1884, 7
        %v2467 = vrot.slane %v1885, 7
        %v2468 = vsel %vm2462, %v2466, %v2467
        %v2469 = vrot.slane %v1886, 7
        %v2470 = vrot.slane %v1887, 7
        %v2471 = vsel %vm2462, %v2469, %v2470
        %v2472 = vrot.slane %v1888, 7
        %v2473 = vrot.slane %v1889, 7
        %v2474 = vsel %vm2462, %v2472, %v2473
        %v2475 = vrot.slane %v1890, 7
        %v2476 = vrot.slane %v1891, 7
        %v2477 = vsel %vm2462, %v2475, %v2476
        %v2478 = vrot.slane %v1892, 7
        %v2479 = vrot.slane %v1893, 7
        %v2480 = vsel %vm2462, %v2478, %v2479
        %v2481 = vrot.slane %v1894, 7
        %v2482 = vrot.slane %v1895, 7
        %v2483 = vsel %vm2462, %v2481, %v2482
        %v2484 = vrot.slane %v1896, 7
        %v2485 = vrot.slane %v1897, 7
        %v2486 = vsel %vm2462, %v2484, %v2485
        %v2487 = vrot.slane %v1898, 7
        %v2488 = vrot.slane %v1899, 7
        %v2489 = vsel %vm2462, %v2487, %v2488
        %v2490 = vrot.slane %v1900, 7
        %v2491 = vrot.slane %v1901, 7
        %v2492 = vsel %vm2462, %v2490, %v2491
        %v2493 = vrot.slane %v1902, 7
        %v2494 = vrot.slane %v1903, 7
        %v2495 = vsel %vm2462, %v2493, %v2494
        %v2496 = vrot.slane %v1904, 7
        %v2497 = vrot.slane %v1905, 7
        %v2498 = vsel %vm2462, %v2496, %v2497
        %v2499 = vrot.slane %v1906, 7
        %v2500 = vrot.slane %v1907, 7
        %v2501 = vsel %vm2462, %v2499, %v2500
        %v2502 = vrot.slane %v1908, 7
        %v2503 = vrot.slane %v1909, 7
        %v2504 = vsel %vm2462, %v2502, %v2503
        %v2505 = vrot.slane %v1910, 7
        %v2506 = vrot.slane %v1911, 7
        %v2507 = vsel %vm2462, %v2505, %v2506
        %v2508 = vrot.slane %v1912, 7
        %v2509 = vrot.slane %v1913, 7
        %v2510 = vsel %vm2462, %v2508, %v2509
        %v2543 = vsel %vm2462, 0.0, %v2463
        %v2544 = vsel %vm2462, 0.0, %v2466
        %v2545 = vsel %vm2462, 0.0, %v2469
        %v2546 = vsel %vm2462, 0.0, %v2472
        %v2547 = vsel %vm2462, 0.0, %v2475
        %v2548 = vsel %vm2462, 0.0, %v2478
        %v2549 = vsel %vm2462, 0.0, %v2481
        %v2550 = vsel %vm2462, 0.0, %v2484
        %v2551 = vsel %vm2462, 0.0, %v2487
        %v2552 = vsel %vm2462, 0.0, %v2490
        %v2553 = vsel %vm2462, 0.0, %v2493
        %v2554 = vsel %vm2462, 0.0, %v2496
        %v2555 = vsel %vm2462, 0.0, %v2499
        %v2556 = vsel %vm2462, 0.0, %v2502
        %v2557 = vsel %vm2462, 0.0, %v2505
        %v2558 = vsel %vm2462, 0.0, %v2508
        %v2559 = vadd.f32 %v2140, %v2543
        %v2560 = vadd.f32 %v2141, %v2465
        %v2561 = vadd.f32 %v2142, %v2544
        %v2562 = vadd.f32 %v2143, %v2468
        %v2563 = vadd.f32 %v2144, %v2545
        %v2564 = vadd.f32 %v2145, %v2471
        %v2565 = vadd.f32 %v2146, %v2546
        %v2566 = vadd.f32 %v2147, %v2474
        %v2567 = vadd.f32 %v2148, %v2547
        %v2568 = vadd.f32 %v2149, %v2477
        %v2569 = vadd.f32 %v2150, %v2548
        %v2570 = vadd.f32 %v2151, %v2480
        %v2571 = vadd.f32 %v2152, %v2549
        %v2572 = vadd.f32 %v2153, %v2483
        %v2573 = vadd.f32 %v2154, %v2550
        %v2574 = vadd.f32 %v2155, %v2486
        %v2575 = vadd.f32 %v2156, %v2551
        %v2576 = vadd.f32 %v2157, %v2489
        %v2577 = vadd.f32 %v2158, %v2552
        %v2578 = vadd.f32 %v2159, %v2492
        %v2579 = vadd.f32 %v2160, %v2553
        %v2580 = vadd.f32 %v2161, %v2495
        %v2581 = vadd.f32 %v2162, %v2554
        %v2582 = vadd.f32 %v2163, %v2498
        %v2583 = vadd.f32 %v2164, %v2555
        %v2584 = vadd.f32 %v2165, %v2501
        %v2585 = vadd.f32 %v2166, %v2556
        %v2586 = vadd.f32 %v2167, %v2504
        %v2587 = vadd.f32 %v2168, %v2557
        %v2588 = vadd.f32 %v2169, %v2507
        %v2589 = vadd.f32 %v2170, %v2558
        %v2590 = vadd.f32 %v2171, %v2510
        %vm2623 = vcmask 1046528
        %v2624 = vrot.slane %v2398, 1
        %v2625 = vrot.slane %v2399, 1
        %v2626 = vsel %vm2623, %v2624, %v2625
        %v2627 = vrot.slane %v2400, 1
        %v2628 = vrot.slane %v2401, 1
        %v2629 = vsel %vm2623, %v2627, %v2628
        %v2630 = vrot.slane %v2402, 1
        %v2631 = vrot.slane %v2403, 1
        %v2632 = vsel %vm2623, %v2630, %v2631
        %v2633 = vrot.slane %v2404, 1
        %v2634 = vrot.slane %v2405, 1
        %v2635 = vsel %vm2623, %v2633, %v2634
        %v2636 = vrot.slane %v2406, 1
        %v2637 = vrot.slane %v2407, 1
        %v2638 = vsel %vm2623, %v2636, %v2637
        %v2639 = vrot.slane %v2408, 1
        %v2640 = vrot.slane %v2409, 1
        %v2641 = vsel %vm2623, %v2639, %v2640
        %v2642 = vrot.slane %v2410, 1
        %v2643 = vrot.slane %v2411, 1
        %v2644 = vsel %vm2623, %v2642, %v2643
        %v2645 = vrot.slane %v2412, 1
        %v2646 = vrot.slane %v2413, 1
        %v2647 = vsel %vm2623, %v2645, %v2646
        %v2648 = vrot.slane %v2414, 1
        %v2649 = vrot.slane %v2415, 1
        %v2650 = vsel %vm2623, %v2648, %v2649
        %v2651 = vrot.slane %v2416, 1
        %v2652 = vrot.slane %v2417, 1
        %v2653 = vsel %vm2623, %v2651, %v2652
        %v2654 = vrot.slane %v2418, 1
        %v2655 = vrot.slane %v2419, 1
        %v2656 = vsel %vm2623, %v2654, %v2655
        %v2657 = vrot.slane %v2420, 1
        %v2658 = vrot.slane %v2421, 1
        %v2659 = vsel %vm2623, %v2657, %v2658
        %v2660 = vrot.slane %v2422, 1
        %v2661 = vrot.slane %v2423, 1
        %v2662 = vsel %vm2623, %v2660, %v2661
        %v2663 = vrot.slane %v2424, 1
        %v2664 = vrot.slane %v2425, 1
        %v2665 = vsel %vm2623, %v2663, %v2664
        %v2666 = vrot.slane %v2426, 1
        %v2667 = vrot.slane %v2427, 1
        %v2668 = vsel %vm2623, %v2666, %v2667
        %v2669 = vrot.slane %v2428, 1
        %v2670 = vrot.slane %v2429, 1
        %v2671 = vsel %vm2623, %v2669, %v2670
        %v2704 = vsel %vm2623, %v2625, 0.0
        %v2705 = vsel %vm2623, %v2628, 0.0
        %v2706 = vsel %vm2623, %v2631, 0.0
        %v2707 = vsel %vm2623, %v2634, 0.0
        %v2708 = vsel %vm2623, %v2637, 0.0
        %v2709 = vsel %vm2623, %v2640, 0.0
        %v2710 = vsel %vm2623, %v2643, 0.0
        %v2711 = vsel %vm2623, %v2646, 0.0
        %v2712 = vsel %vm2623, %v2649, 0.0
        %v2713 = vsel %vm2623, %v2652, 0.0
        %v2714 = vsel %vm2623, %v2655, 0.0
        %v2715 = vsel %vm2623, %v2658, 0.0
        %v2716 = vsel %vm2623, %v2661, 0.0
        %v2717 = vsel %vm2623, %v2664, 0.0
        %v2718 = vsel %vm2623, %v2667, 0.0
        %v2719 = vsel %vm2623, %v2670, 0.0
        %v2720 = vadd.f32 %v2559, %v2626
        %v2721 = vadd.f32 %v2560, %v2704
        %v2722 = vadd.f32 %v2561, %v2629
        %v2723 = vadd.f32 %v2562, %v2705
        %v2724 = vadd.f32 %v2563, %v2632
        %v2725 = vadd.f32 %v2564, %v2706
        %v2726 = vadd.f32 %v2565, %v2635
        %v2727 = vadd.f32 %v2566, %v2707
        %v2728 = vadd.f32 %v2567, %v2638
        %v2729 = vadd.f32 %v2568, %v2708
        %v2730 = vadd.f32 %v2569, %v2641
        %v2731 = vadd.f32 %v2570, %v2709
        %v2732 = vadd.f32 %v2571, %v2644
        %v2733 = vadd.f32 %v2572, %v2710
        %v2734 = vadd.f32 %v2573, %v2647
        %v2735 = vadd.f32 %v2574, %v2711
        %v2736 = vadd.f32 %v2575, %v2650
        %v2737 = vadd.f32 %v2576, %v2712
        %v2738 = vadd.f32 %v2577, %v2653
        %v2739 = vadd.f32 %v2578, %v2713
        %v2740 = vadd.f32 %v2579, %v2656
        %v2741 = vadd.f32 %v2580, %v2714
        %v2742 = vadd.f32 %v2581, %v2659
        %v2743 = vadd.f32 %v2582, %v2715
        %v2744 = vadd.f32 %v2583, %v2662
        %v2745 = vadd.f32 %v2584, %v2716
        %v2746 = vadd.f32 %v2585, %v2665
        %v2747 = vadd.f32 %v2586, %v2717
        %v2748 = vadd.f32 %v2587, %v2668
        %v2749 = vadd.f32 %v2588, %v2718
        %v2750 = vadd.f32 %v2589, %v2671
        %v2751 = vadd.f32 %v2590, %v2719
        %v2752 = vmax.f32 %v2720, 0.0
        %v2753 = vmax.f32 %v2721, 0.0
        %v2754 = vmax.f32 %v2722, 0.0
        %v2755 = vmax.f32 %v2723, 0.0
        %v2756 = vmax.f32 %v2724, 0.0
        %v2757 = vmax.f32 %v2725, 0.0
        %v2758 = vmax.f32 %v2726, 0.0
        %v2759 = vmax.f32 %v2727, 0.0
        %v2760 = vmax.f32 %v2728, 0.0
        %v2761 = vmax.f32 %v2729, 0.0
        %v2762 = vmax.f32 %v2730, 0.0
        %v2763 = vmax.f32 %v2731, 0.0
        %v2764 = vmax.f32 %v2732, 0.0
        %v2765 = vmax.f32 %v2733, 0.0
        %v2766 = vmax.f32 %v2734, 0.0
        %v2767 = vmax.f32 %v2735, 0.0
        %v2768 = vmax.f32 %v2736, 0.0
        %v2769 = vmax.f32 %v2737, 0.0
        %v2770 = vmax.f32 %v2738, 0.0
        %v2771 = vmax.f32 %v2739, 0.0
        %v2772 = vmax.f32 %v2740, 0.0
        %v2773 = vmax.f32 %v2741, 0.0
        %v2774 = vmax.f32 %v2742, 0.0
        %v2775 = vmax.f32 %v2743, 0.0
        %v2776 = vmax.f32 %v2744, 0.0
        %v2777 = vmax.f32 %v2745, 0.0
        %v2778 = vmax.f32 %v2746, 0.0
        %v2779 = vmax.f32 %v2747, 0.0
        %v2780 = vmax.f32 %v2748, 0.0
        %v2781 = vmax.f32 %v2749, 0.0
        %v2782 = vmax.f32 %v2750, 0.0
        %v2783 = vmax.f32 %v2751, 0.0
        %v2784 = vpack.c.bf16 %v2753, %v2752
        %v2785 = vpack.c.bf16 %v2755, %v2754
        %v2786 = vpack.c.bf16 %v2757, %v2756
        %v2787 = vpack.c.bf16 %v2759, %v2758
        %v2788 = vpack.c.bf16 %v2761, %v2760
        %v2789 = vpack.c.bf16 %v2763, %v2762
        %v2790 = vpack.c.bf16 %v2765, %v2764
        %v2791 = vpack.c.bf16 %v2767, %v2766
        %v2792 = vpack.c.bf16 %v2769, %v2768
        %v2793 = vpack.c.bf16 %v2771, %v2770
        %v2794 = vpack.c.bf16 %v2773, %v2772
        %v2795 = vpack.c.bf16 %v2775, %v2774
        %v2796 = vpack.c.bf16 %v2777, %v2776
        %v2797 = vpack.c.bf16 %v2779, %v2778
        %v2798 = vpack.c.bf16 %v2781, %v2780
        %v2799 = vpack.c.bf16 %v2783, %v2782
        %v2800 = vld [vmem:[%s2] sm:$0xf]
        %v2801 = vld [vmem:[%s2 + $0x4] sm:$0xf]
        %v2802 = vld [vmem:[%s2 + $0x8] sm:$0xf]
        %v2803 = vld [vmem:[%s2 + $0xc] sm:$0xf]
        %v2808 = vunpack.c.l.b16 %v2800
        %v2809 = vunpack.c.l.b16 %v2801
        %v2810 = vunpack.c.l.b16 %v2802
        %v2811 = vunpack.c.l.b16 %v2803
        %v2812 = vpack.c.b16 %v2809, %v2808
        %v2813 = vpack.c.b16 %v2811, %v2810
        %vm2816 = vcmask 261120
        %v2818 = vsel %vm2816, %v2784, 0
        %v2821 = vsel %vm2816, %v2785, 0
        %v2824 = vsel %vm2816, %v2786, 0
        %v2827 = vsel %vm2816, %v2787, 0
        %v2830 = vsel %vm2816, %v2788, 0
        %v2833 = vsel %vm2816, %v2789, 0
        %v2836 = vsel %vm2816, %v2790, 0
        %v2839 = vsel %vm2816, %v2791, 0
        %v2842 = vsel %vm2816, %v2792, 0
        %v2845 = vsel %vm2816, %v2793, 0
        %v2848 = vsel %vm2816, %v2794, 0
        %v2851 = vsel %vm2816, %v2795, 0
        %v2854 = vsel %vm2816, %v2796, 0
        %v2857 = vsel %vm2816, %v2797, 0
        %v2860 = vsel %vm2816, %v2798, 0
        %v2863 = vsel %vm2816, %v2799, 0
        %2865 = vmatprep.subr.bf16.mxu0 0
        %2866 = vmatpush1.bf16.msra.mxu0 %v2812
        %2867 = vmatprep.subr.bf16.mxu0 0
        %2868 = vmatpush1.bf16.msra.mxu0 %v2813
        %2869 = vmatprep.subr.bf16.mxu0 0
        %2870 = vmatpush1.bf16.msra.mxu0 0
        %2871 = vmatprep.subr.bf16.mxu0 0
        %2872 = vmatpush1.bf16.msra.mxu0 0
        %2873 = vmatprep.subr.bf16.mxu0 0
        %2874 = vmatpush1.bf16.msra.mxu0 0
        %2875 = vmatprep.subr.bf16.mxu0 0
        %2876 = vmatpush1.bf16.msra.mxu0 0
        %2877 = vmatprep.subr.bf16.mxu0 0
        %2878 = vmatpush1.bf16.msra.mxu0 0
        %2879 = vmatprep.subr.bf16.mxu0 0
        %2880 = vmatpush1.bf16.msra.mxu0 0
        %2881 = vmatprep.subr.bf16.mxu0 0
        %2882 = vmatpush1.bf16.msra.mxu0 0
        %2883 = vmatprep.subr.bf16.mxu0 0
        %2884 = vmatpush1.bf16.msra.mxu0 0
        %2885 = vmatprep.subr.bf16.mxu0 0
        %2886 = vmatpush1.bf16.msra.mxu0 0
        %2887 = vmatprep.subr.bf16.mxu0 0
        %2888 = vmatpush1.bf16.msra.mxu0 0
        %2889 = vmatprep.subr.bf16.mxu0 0
        %2890 = vmatpush1.bf16.msra.mxu0 0
        %2891 = vmatprep.subr.bf16.mxu0 0
        %2892 = vmatpush1.bf16.msra.mxu0 0
        %2893 = vmatprep.subr.bf16.mxu0 0
        %2894 = vmatpush1.bf16.msra.mxu0 0
        %2895 = vmatprep.subr.bf16.mxu0 0
        %2896 = vmatpush1.bf16.msra.mxu0 0
        %2897 = vmatprep.mubr.bf16.mxu0 0
        %2898 = vmatmul.mubr.bf16.gmra.mrb[0].mxu0 %v2818
        %v2899 = vpop.f32.mrb[0].mxu0
        %v2900 = vadd.f32 0.0, %v2899
        %v2901 = vpop.f32.mrb[0].mxu0
        %v2902 = vpop.f32.mrb[0].mxu0
        %v2903 = vadd.f32 0.0, %v2902
        %v2904 = vpop.f32.mrb[0].mxu0
        %2905 = vmatprep.mubr.bf16.mxu0 0
        %2906 = vmatmul.mubr.bf16.gmra.mrb[0].mxu0 %v2821
        %v2907 = vpop.f32.mrb[0].mxu0
        %v2908 = vadd.f32 0.0, %v2907
        %v2909 = vpop.f32.mrb[0].mxu0
        %v2910 = vpop.f32.mrb[0].mxu0
        %v2911 = vadd.f32 0.0, %v2910
        %v2912 = vpop.f32.mrb[0].mxu0
        %2913 = vmatprep.mubr.bf16.mxu0 0
        %2914 = vmatmul.mubr.bf16.gmra.mrb[0].mxu0 %v2824
        %v2915 = vpop.f32.mrb[0].mxu0
        %v2916 = vadd.f32 0.0, %v2915
        %v2917 = vpop.f32.mrb[0].mxu0
        %v2918 = vpop.f32.mrb[0].mxu0
        %v2919 = vadd.f32 0.0, %v2918
        %v2920 = vpop.f32.mrb[0].mxu0
        %2921 = vmatprep.mubr.bf16.mxu0 0
        %2922 = vmatmul.mubr.bf16.gmra.mrb[0].mxu0 %v2827
        %v2923 = vpop.f32.mrb[0].mxu0
        %v2924 = vadd.f32 0.0, %v2923
        %v2925 = vpop.f32.mrb[0].mxu0
        %v2926 = vpop.f32.mrb[0].mxu0
        %v2927 = vadd.f32 0.0, %v2926
        %v2928 = vpop.f32.mrb[0].mxu0
        %2929 = vmatprep.mubr.bf16.mxu0 0
        %2930 = vmatmul.mubr.bf16.gmra.mrb[0].mxu0 %v2830
        %v2931 = vpop.f32.mrb[0].mxu0
        %v2932 = vadd.f32 0.0, %v2931
        %v2933 = vpop.f32.mrb[0].mxu0
        %v2934 = vpop.f32.mrb[0].mxu0
        %v2935 = vadd.f32 0.0, %v2934
        %v2936 = vpop.f32.mrb[0].mxu0
        %2937 = vmatprep.mubr.bf16.mxu0 0
        %2938 = vmatmul.mubr.bf16.gmra.mrb[0].mxu0 %v2833
        %v2939 = vpop.f32.mrb[0].mxu0
        %v2940 = vadd.f32 0.0, %v2939
        %v2941 = vpop.f32.mrb[0].mxu0
        %v2942 = vpop.f32.mrb[0].mxu0
        %v2943 = vadd.f32 0.0, %v2942
        %v2944 = vpop.f32.mrb[0].mxu0
        %2945 = vmatprep.mubr.bf16.mxu0 0
        %2946 = vmatmul.mubr.bf16.gmra.mrb[0].mxu0 %v2836
        %v2947 = vpop.f32.mrb[0].mxu0
        %v2948 = vadd.f32 0.0, %v2947
        %v2949 = vpop.f32.mrb[0].mxu0
        %v2950 = vpop.f32.mrb[0].mxu0
        %v2951 = vadd.f32 0.0, %v2950
        %v2952 = vpop.f32.mrb[0].mxu0
        %2953 = vmatprep.mubr.bf16.mxu0 0
        %2954 = vmatmul.mubr.bf16.gmra.mrb[0].mxu0 %v2839
        %v2955 = vpop.f32.mrb[0].mxu0
        %v2956 = vadd.f32 0.0, %v2955
        %v2957 = vpop.f32.mrb[0].mxu0
        %v2958 = vpop.f32.mrb[0].mxu0
        %v2959 = vadd.f32 0.0, %v2958
        %v2960 = vpop.f32.mrb[0].mxu0
        %2961 = vmatprep.mubr.bf16.mxu0 0
        %2962 = vmatmul.mubr.bf16.gmra.mrb[0].mxu0 %v2842
        %v2963 = vpop.f32.mrb[0].mxu0
        %v2964 = vadd.f32 0.0, %v2963
        %v2965 = vpop.f32.mrb[0].mxu0
        %v2966 = vpop.f32.mrb[0].mxu0
        %v2967 = vadd.f32 0.0, %v2966
        %v2968 = vpop.f32.mrb[0].mxu0
        %2969 = vmatprep.mubr.bf16.mxu0 0
        %2970 = vmatmul.mubr.bf16.gmra.mrb[0].mxu0 %v2845
        %v2971 = vpop.f32.mrb[0].mxu0
        %v2972 = vadd.f32 0.0, %v2971
        %v2973 = vpop.f32.mrb[0].mxu0
        %v2974 = vpop.f32.mrb[0].mxu0
        %v2975 = vadd.f32 0.0, %v2974
        %v2976 = vpop.f32.mrb[0].mxu0
        %2977 = vmatprep.mubr.bf16.mxu0 0
        %2978 = vmatmul.mubr.bf16.gmra.mrb[0].mxu0 %v2848
        %v2979 = vpop.f32.mrb[0].mxu0
        %v2980 = vadd.f32 0.0, %v2979
        %v2981 = vpop.f32.mrb[0].mxu0
        %v2982 = vpop.f32.mrb[0].mxu0
        %v2983 = vadd.f32 0.0, %v2982
        %v2984 = vpop.f32.mrb[0].mxu0
        %2985 = vmatprep.mubr.bf16.mxu0 0
        %2986 = vmatmul.mubr.bf16.gmra.mrb[0].mxu0 %v2851
        %v2987 = vpop.f32.mrb[0].mxu0
        %v2988 = vadd.f32 0.0, %v2987
        %v2989 = vpop.f32.mrb[0].mxu0
        %v2990 = vpop.f32.mrb[0].mxu0
        %v2991 = vadd.f32 0.0, %v2990
        %v2992 = vpop.f32.mrb[0].mxu0
        %2993 = vmatprep.mubr.bf16.mxu0 0
        %2994 = vmatmul.mubr.bf16.gmra.mrb[0].mxu0 %v2854
        %v2995 = vpop.f32.mrb[0].mxu0
        %v2996 = vadd.f32 0.0, %v2995
        %v2997 = vpop.f32.mrb[0].mxu0
        %v2998 = vpop.f32.mrb[0].mxu0
        %v2999 = vadd.f32 0.0, %v2998
        %v3000 = vpop.f32.mrb[0].mxu0
        %3001 = vmatprep.mubr.bf16.mxu0 0
        %3002 = vmatmul.mubr.bf16.gmra.mrb[0].mxu0 %v2857
        %v3003 = vpop.f32.mrb[0].mxu0
        %v3004 = vadd.f32 0.0, %v3003
        %v3005 = vpop.f32.mrb[0].mxu0
        %v3006 = vpop.f32.mrb[0].mxu0
        %v3007 = vadd.f32 0.0, %v3006
        %v3008 = vpop.f32.mrb[0].mxu0
        %3009 = vmatprep.mubr.bf16.mxu0 0
        %3010 = vmatmul.mubr.bf16.gmra.mrb[0].mxu0 %v2860
        %v3011 = vpop.f32.mrb[0].mxu0
        %v3012 = vadd.f32 0.0, %v3011
        %v3013 = vpop.f32.mrb[0].mxu0
        %v3014 = vpop.f32.mrb[0].mxu0
        %v3015 = vadd.f32 0.0, %v3014
        %v3016 = vpop.f32.mrb[0].mxu0
        %3017 = vmatprep.mubr.bf16.mxu0 0
        %3018 = vmatmul.mubr.bf16.gmra.mrb[0].mxu0 %v2863
        %v3019 = vpop.f32.mrb[0].mxu0
        %v3020 = vadd.f32 0.0, %v3019
        %v3021 = vpop.f32.mrb[0].mxu0
        %v3022 = vpop.f32.mrb[0].mxu0
        %v3023 = vadd.f32 0.0, %v3022
        %v3024 = vpop.f32.mrb[0].mxu0
        %3025 = vdwg.mxu0
        %v3026 = vadd.f32 %v172, %v2900
        %v3027 = vadd.f32 %v173, %v2903
        %v3028 = vadd.f32 %v174, %v2908
        %v3029 = vadd.f32 %v175, %v2911
        %v3030 = vadd.f32 %v176, %v2916
        %v3031 = vadd.f32 %v177, %v2919
        %v3032 = vadd.f32 %v178, %v2924
        %v3033 = vadd.f32 %v179, %v2927
        %v3034 = vadd.f32 %v180, %v2932
        %v3035 = vadd.f32 %v181, %v2935
        %v3036 = vadd.f32 %v182, %v2940
        %v3037 = vadd.f32 %v183, %v2943
        %v3038 = vadd.f32 %v184, %v2948
        %v3039 = vadd.f32 %v185, %v2951
        %v3040 = vadd.f32 %v186, %v2956
        %v3041 = vadd.f32 %v187, %v2959
        %v3042 = vadd.f32 %v188, %v2964
        %v3043 = vadd.f32 %v189, %v2967
        %v3044 = vadd.f32 %v190, %v2972
        %v3045 = vadd.f32 %v191, %v2975
        %v3046 = vadd.f32 %v192, %v2980
        %v3047 = vadd.f32 %v193, %v2983
        %v3048 = vadd.f32 %v194, %v2988
        %v3049 = vadd.f32 %v195, %v2991
        %v3050 = vadd.f32 %v196, %v2996
        %v3051 = vadd.f32 %v197, %v2999
        %v3052 = vadd.f32 %v198, %v3004
        %v3053 = vadd.f32 %v199, %v3007
        %v3054 = vadd.f32 %v200, %v3012
        %v3055 = vadd.f32 %v201, %v3015
        %v3056 = vadd.f32 %v202, %v3020
        %v3057 = vadd.f32 %v203, %v3023
        %3058 = vst [vmem:[%s163] sm:$0xff] %v3026
        %3059 = vst [vmem:[%s163 + $0x8] sm:$0xff] %v3027
        %3060 = vst [vmem:[%s163 + $0x10] sm:$0xff] %v3028
        %3061 = vst [vmem:[%s163 + $0x18] sm:$0xff] %v3029
        %3062 = vst [vmem:[%s163 + $0x20] sm:$0xff] %v3030
        %3063 = vst [vmem:[%s163 + $0x28] sm:$0xff] %v3031
        %3064 = vst [vmem:[%s163 + $0x30] sm:$0xff] %v3032
        %3065 = vst [vmem:[%s163 + $0x38] sm:$0xff] %v3033
        %3066 = vst [vmem:[%s163 + $0x40] sm:$0xff] %v3034
        %3067 = vst [vmem:[%s163 + $0x48] sm:$0xff] %v3035
        %3068 = vst [vmem:[%s163 + $0x50] sm:$0xff] %v3036
        %3069 = vst [vmem:[%s163 + $0x58] sm:$0xff] %v3037
        %3070 = vst [vmem:[%s163 + $0x60] sm:$0xff] %v3038
        %3071 = vst [vmem:[%s163 + $0x68] sm:$0xff] %v3039
        %3072 = vst [vmem:[%s163 + $0x70] sm:$0xff] %v3040
        %3073 = vst [vmem:[%s163 + $0x78] sm:$0xff] %v3041
        %3074 = vst [vmem:[%s163 + $0x80] sm:$0xff] %v3042
        %3075 = vst [vmem:[%s163 + $0x88] sm:$0xff] %v3043
        %3076 = vst [vmem:[%s163 + $0x90] sm:$0xff] %v3044
        %3077 = vst [vmem:[%s163 + $0x98] sm:$0xff] %v3045
        %3078 = vst [vmem:[%s163 + $0xa0] sm:$0xff] %v3046
        %3079 = vst [vmem:[%s163 + $0xa8] sm:$0xff] %v3047
        %3080 = vst [vmem:[%s163 + $0xb0] sm:$0xff] %v3048
        %3081 = vst [vmem:[%s163 + $0xb8] sm:$0xff] %v3049
        %3082 = vst [vmem:[%s163 + $0xc0] sm:$0xff] %v3050
        %3083 = vst [vmem:[%s163 + $0xc8] sm:$0xff] %v3051
        %3084 = vst [vmem:[%s163 + $0xd0] sm:$0xff] %v3052
        %3085 = vst [vmem:[%s163 + $0xd8] sm:$0xff] %v3053
        %3086 = vst [vmem:[%s163 + $0xe0] sm:$0xff] %v3054
        %3087 = vst [vmem:[%s163 + $0xe8] sm:$0xff] %v3055
        %3088 = vst [vmem:[%s163 + $0xf0] sm:$0xff] %v3056
        %3089 = vst [vmem:[%s163 + $0xf8] sm:$0xff] %v3057
        %v3090 = vld [vmem:[%s163] sm:$0xff]
        %v3091 = vld [vmem:[%s163 + $0x8] sm:$0xff]
        %v3092 = vld [vmem:[%s163 + $0x10] sm:$0xff]
        %v3093 = vld [vmem:[%s163 + $0x18] sm:$0xff]
        %v3094 = vld [vmem:[%s163 + $0x20] sm:$0xff]
        %v3095 = vld [vmem:[%s163 + $0x28] sm:$0xff]
        %v3096 = vld [vmem:[%s163 + $0x30] sm:$0xff]
        %v3097 = vld [vmem:[%s163 + $0x38] sm:$0xff]
        %v3098 = vld [vmem:[%s163 + $0x40] sm:$0xff]
        %v3099 = vld [vmem:[%s163 + $0x48] sm:$0xff]
        %v3100 = vld [vmem:[%s163 + $0x50] sm:$0xff]
        %v3101 = vld [vmem:[%s163 + $0x58] sm:$0xff]
        %v3102 = vld [vmem:[%s163 + $0x60] sm:$0xff]
        %v3103 = vld [vmem:[%s163 + $0x68] sm:$0xff]
        %v3104 = vld [vmem:[%s163 + $0x70] sm:$0xff]
        %v3105 = vld [vmem:[%s163 + $0x78] sm:$0xff]
        %v3106 = vld [vmem:[%s163 + $0x80] sm:$0xff]
        %v3107 = vld [vmem:[%s163 + $0x88] sm:$0xff]
        %v3108 = vld [vmem:[%s163 + $0x90] sm:$0xff]
        %v3109 = vld [vmem:[%s163 + $0x98] sm:$0xff]
        %v3110 = vld [vmem:[%s163 + $0xa0] sm:$0xff]
        %v3111 = vld [vmem:[%s163 + $0xa8] sm:$0xff]
        %v3112 = vld [vmem:[%s163 + $0xb0] sm:$0xff]
        %v3113 = vld [vmem:[%s163 + $0xb8] sm:$0xff]
        %v3114 = vld [vmem:[%s163 + $0xc0] sm:$0xff]
        %v3115 = vld [vmem:[%s163 + $0xc8] sm:$0xff]
        %v3116 = vld [vmem:[%s163 + $0xd0] sm:$0xff]
        %v3117 = vld [vmem:[%s163 + $0xd8] sm:$0xff]
        %v3118 = vld [vmem:[%s163 + $0xe0] sm:$0xff]
        %v3119 = vld [vmem:[%s163 + $0xe8] sm:$0xff]
        %v3120 = vld [vmem:[%s163 + $0xf0] sm:$0xff]
        %v3121 = vld [vmem:[%s163 + $0xf8] sm:$0xff]
        %v3122 = vmax.f32 %v3090, 0.0
        %v3123 = vmax.f32 %v3091, 0.0
        %v3124 = vmax.f32 %v3092, 0.0
        %v3125 = vmax.f32 %v3093, 0.0
        %v3126 = vmax.f32 %v3094, 0.0
        %v3127 = vmax.f32 %v3095, 0.0
        %v3128 = vmax.f32 %v3096, 0.0
        %v3129 = vmax.f32 %v3097, 0.0
        %v3130 = vmax.f32 %v3098, 0.0
        %v3131 = vmax.f32 %v3099, 0.0
        %v3132 = vmax.f32 %v3100, 0.0
        %v3133 = vmax.f32 %v3101, 0.0
        %v3134 = vmax.f32 %v3102, 0.0
        %v3135 = vmax.f32 %v3103, 0.0
        %v3136 = vmax.f32 %v3104, 0.0
        %v3137 = vmax.f32 %v3105, 0.0
        %v3138 = vmax.f32 %v3106, 0.0
        %v3139 = vmax.f32 %v3107, 0.0
        %v3140 = vmax.f32 %v3108, 0.0
        %v3141 = vmax.f32 %v3109, 0.0
        %v3142 = vmax.f32 %v3110, 0.0
        %v3143 = vmax.f32 %v3111, 0.0
        %v3144 = vmax.f32 %v3112, 0.0
        %v3145 = vmax.f32 %v3113, 0.0
        %v3146 = vmax.f32 %v3114, 0.0
        %v3147 = vmax.f32 %v3115, 0.0
        %v3148 = vmax.f32 %v3116, 0.0
        %v3149 = vmax.f32 %v3117, 0.0
        %v3150 = vmax.f32 %v3118, 0.0
        %v3151 = vmax.f32 %v3119, 0.0
        %v3152 = vmax.f32 %v3120, 0.0
        %v3153 = vmax.f32 %v3121, 0.0
        %v3154 = vpack.c.bf16 %v3123, %v3122
        %v3155 = vpack.c.bf16 %v3125, %v3124
        %v3156 = vpack.c.bf16 %v3127, %v3126
        %v3157 = vpack.c.bf16 %v3129, %v3128
        %v3158 = vpack.c.bf16 %v3131, %v3130
        %v3159 = vpack.c.bf16 %v3133, %v3132
        %v3160 = vpack.c.bf16 %v3135, %v3134
        %v3161 = vpack.c.bf16 %v3137, %v3136
        %v3162 = vpack.c.bf16 %v3139, %v3138
        %v3163 = vpack.c.bf16 %v3141, %v3140
        %v3164 = vpack.c.bf16 %v3143, %v3142
        %v3165 = vpack.c.bf16 %v3145, %v3144
        %v3166 = vpack.c.bf16 %v3147, %v3146
        %v3167 = vpack.c.bf16 %v3149, %v3148
        %v3168 = vpack.c.bf16 %v3151, %v3150
        %v3169 = vpack.c.bf16 %v3153, %v3152
        %3170 = vst [vmem:[#allocation2 + $0x8] sm:$0xff] %v3154
        %3171 = vst [vmem:[#allocation2 + $0x10] sm:$0xff] %v3155
        %3172 = vst [vmem:[#allocation2 + $0x18] sm:$0xff] %v3156
        %3173 = vst [vmem:[#allocation2 + $0x20] sm:$0xff] %v3157
        %3174 = vst [vmem:[#allocation2 + $0x28] sm:$0xff] %v3158
        %3175 = vst [vmem:[#allocation2 + $0x30] sm:$0xff] %v3159
        %3176 = vst [vmem:[#allocation2 + $0x38] sm:$0xff] %v3160
        %3177 = vst [vmem:[#allocation2 + $0x40] sm:$0xff] %v3161
        %3178 = vst [vmem:[#allocation2 + $0x48] sm:$0xff] %v3162
        %3179 = vst [vmem:[#allocation2 + $0x50] sm:$0xff] %v3163
        %3180 = vst [vmem:[#allocation2 + $0x58] sm:$0xff] %v3164
        %3181 = vst [vmem:[#allocation2 + $0x60] sm:$0xff] %v3165
        %3182 = vst [vmem:[#allocation2 + $0x68] sm:$0xff] %v3166
        %3183 = vst [vmem:[#allocation2 + $0x70] sm:$0xff] %v3167
        %3184 = vst [vmem:[#allocation2 + $0x78] sm:$0xff] %v3168
        %3185 = vst [vmem:[#allocation2 + $0x80] sm:$0xff] %v3169
        %v3186 = vld [vmem:[#allocation2] sm:$0xff]
        %v3187 = vld [vmem:[#allocation2 + $0x8] sm:$0xff]
        %v3188 = vld [vmem:[#allocation2 + $0x10] sm:$0xff]
        %v3189 = vld [vmem:[#allocation2 + $0x18] sm:$0xff]
        %v3190 = vld [vmem:[#allocation2 + $0x20] sm:$0xff]
        %v3191 = vld [vmem:[#allocation2 + $0x28] sm:$0xff]
        %v3192 = vld [vmem:[#allocation2 + $0x30] sm:$0xff]
        %v3193 = vld [vmem:[#allocation2 + $0x38] sm:$0xff]
        %v3194 = vld [vmem:[#allocation2 + $0x40] sm:$0xff]
        %v3195 = vld [vmem:[#allocation2 + $0x48] sm:$0xff]
        %v3196 = vld [vmem:[#allocation2 + $0x50] sm:$0xff]
        %v3197 = vld [vmem:[#allocation2 + $0x58] sm:$0xff]
        %v3198 = vld [vmem:[#allocation2 + $0x60] sm:$0xff]
        %v3199 = vld [vmem:[#allocation2 + $0x68] sm:$0xff]
        %v3200 = vld [vmem:[#allocation2 + $0x70] sm:$0xff]
        %v3201 = vld [vmem:[#allocation2 + $0x78] sm:$0xff]
        %s3202 = scalar_lea.vmem %s1, 576
        %v3203 = vld [vmem:[%s3202] sm:$0xf]
        %v3204 = vld [vmem:[%s3202 + $0x4] sm:$0xf]
        %v3205 = vld [vmem:[%s3202 + $0x8] sm:$0xf]
        %v3206 = vld [vmem:[%s3202 + $0xc] sm:$0xf]
        %v3207 = vld [vmem:[%s3202 + $0x10] sm:$0xf]
        %v3208 = vld [vmem:[%s3202 + $0x14] sm:$0xf]
        %v3209 = vld [vmem:[%s3202 + $0x18] sm:$0xf]
        %v3210 = vld [vmem:[%s3202 + $0x1c] sm:$0xf]
        %v3211 = vld [vmem:[%s3202 + $0x20] sm:$0xf]
        %v3212 = vld [vmem:[%s3202 + $0x24] sm:$0xf]
        %v3213 = vld [vmem:[%s3202 + $0x28] sm:$0xf]
        %v3214 = vld [vmem:[%s3202 + $0x2c] sm:$0xf]
        %v3215 = vld [vmem:[%s3202 + $0x30] sm:$0xf]
        %v3216 = vld [vmem:[%s3202 + $0x34] sm:$0xf]
        %v3217 = vld [vmem:[%s3202 + $0x38] sm:$0xf]
        %v3218 = vld [vmem:[%s3202 + $0x3c] sm:$0xf]
        %s3219 = scalar_lea.vmem %s1, 640
        %v3220 = vld [vmem:[%s3219] sm:$0xf]
        %v3221 = vld [vmem:[%s3219 + $0x4] sm:$0xf]
        %v3222 = vld [vmem:[%s3219 + $0x8] sm:$0xf]
        %v3223 = vld [vmem:[%s3219 + $0xc] sm:$0xf]
        %v3224 = vld [vmem:[%s3219 + $0x10] sm:$0xf]
        %v3225 = vld [vmem:[%s3219 + $0x14] sm:$0xf]
        %v3226 = vld [vmem:[%s3219 + $0x18] sm:$0xf]
        %v3227 = vld [vmem:[%s3219 + $0x1c] sm:$0xf]
        %v3228 = vld [vmem:[%s3219 + $0x20] sm:$0xf]
        %v3229 = vld [vmem:[%s3219 + $0x24] sm:$0xf]
        %v3230 = vld [vmem:[%s3219 + $0x28] sm:$0xf]
        %v3231 = vld [vmem:[%s3219 + $0x2c] sm:$0xf]
        %v3232 = vld [vmem:[%s3219 + $0x30] sm:$0xf]
        %v3233 = vld [vmem:[%s3219 + $0x34] sm:$0xf]
        %v3234 = vld [vmem:[%s3219 + $0x38] sm:$0xf]
        %v3235 = vld [vmem:[%s3219 + $0x3c] sm:$0xf]
        %s3236 = scalar_lea.vmem %s1, 704
        %v3237 = vld [vmem:[%s3236] sm:$0xf]
        %v3238 = vld [vmem:[%s3236 + $0x4] sm:$0xf]
        %v3239 = vld [vmem:[%s3236 + $0x8] sm:$0xf]
        %v3240 = vld [vmem:[%s3236 + $0xc] sm:$0xf]
        %v3241 = vld [vmem:[%s3236 + $0x10] sm:$0xf]
        %v3242 = vld [vmem:[%s3236 + $0x14] sm:$0xf]
        %v3243 = vld [vmem:[%s3236 + $0x18] sm:$0xf]
        %v3244 = vld [vmem:[%s3236 + $0x1c] sm:$0xf]
        %v3245 = vld [vmem:[%s3236 + $0x20] sm:$0xf]
        %v3246 = vld [vmem:[%s3236 + $0x24] sm:$0xf]
        %v3247 = vld [vmem:[%s3236 + $0x28] sm:$0xf]
        %v3248 = vld [vmem:[%s3236 + $0x2c] sm:$0xf]
        %v3249 = vld [vmem:[%s3236 + $0x30] sm:$0xf]
        %v3250 = vld [vmem:[%s3236 + $0x34] sm:$0xf]
        %v3251 = vld [vmem:[%s3236 + $0x38] sm:$0xf]
        %v3252 = vld [vmem:[%s3236 + $0x3c] sm:$0xf]
        %v3253 = vld [vmem:[#allocation2 + $0x80] sm:$0xff]
        %s3254 = scalar_lea.vmem %s1, 768
        %v3255 = vld [vmem:[%s3254] sm:$0xf]
        %v3256 = vld [vmem:[%s3254 + $0x4] sm:$0xf]
        %v3257 = vld [vmem:[%s3254 + $0x8] sm:$0xf]
        %v3258 = vld [vmem:[%s3254 + $0xc] sm:$0xf]
        %v3259 = vld [vmem:[%s3254 + $0x10] sm:$0xf]
        %v3260 = vld [vmem:[%s3254 + $0x14] sm:$0xf]
        %v3261 = vld [vmem:[%s3254 + $0x18] sm:$0xf]
        %v3262 = vld [vmem:[%s3254 + $0x1c] sm:$0xf]
        %v3263 = vld [vmem:[%s3254 + $0x20] sm:$0xf]
        %v3264 = vld [vmem:[%s3254 + $0x24] sm:$0xf]
        %v3265 = vld [vmem:[%s3254 + $0x28] sm:$0xf]
        %v3266 = vld [vmem:[%s3254 + $0x2c] sm:$0xf]
        %v3267 = vld [vmem:[%s3254 + $0x30] sm:$0xf]
        %v3268 = vld [vmem:[%s3254 + $0x34] sm:$0xf]
        %v3269 = vld [vmem:[%s3254 + $0x38] sm:$0xf]
        %v3270 = vld [vmem:[%s3254 + $0x3c] sm:$0xf]
        %v3287 = vunpack.c.l.b16 %v3255
        %v3288 = vunpack.c.l.b16 %v3256
        %v3289 = vunpack.c.l.b16 %v3257
        %v3290 = vunpack.c.l.b16 %v3258
        %v3291 = vunpack.c.l.b16 %v3259
        %v3292 = vunpack.c.l.b16 %v3260
        %v3293 = vunpack.c.l.b16 %v3261
        %v3294 = vunpack.c.l.b16 %v3262
        %v3295 = vunpack.c.l.b16 %v3263
        %v3296 = vunpack.c.l.b16 %v3264
        %v3297 = vunpack.c.l.b16 %v3265
        %v3298 = vunpack.c.l.b16 %v3266
        %v3299 = vunpack.c.l.b16 %v3267
        %v3300 = vunpack.c.l.b16 %v3268
        %v3301 = vunpack.c.l.b16 %v3269
        %v3302 = vunpack.c.l.b16 %v3270
        %v3303 = vpack.c.b16 %v3288, %v3287
        %v3304 = vpack.c.b16 %v3290, %v3289
        %v3305 = vpack.c.b16 %v3292, %v3291
        %v3306 = vpack.c.b16 %v3294, %v3293
        %v3307 = vpack.c.b16 %v3296, %v3295
        %v3308 = vpack.c.b16 %v3298, %v3297
        %v3309 = vpack.c.b16 %v3300, %v3299
        %v3310 = vpack.c.b16 %v3302, %v3301
        %3319 = vmatprep.subr.bf16.mxu0 0
        %3320 = vmatpush1.bf16.msra.mxu0 %v3303
        %3321 = vmatprep.subr.bf16.mxu0 0
        %3322 = vmatpush1.bf16.msra.mxu0 %v3304
        %3323 = vmatprep.subr.bf16.mxu0 0
        %3324 = vmatpush1.bf16.msra.mxu0 %v3305
        %3325 = vmatprep.subr.bf16.mxu0 0
        %3326 = vmatpush1.bf16.msra.mxu0 %v3306
        %3327 = vmatprep.subr.bf16.mxu0 0
        %3328 = vmatpush1.bf16.msra.mxu0 %v3307
        %3329 = vmatprep.subr.bf16.mxu0 0
        %3330 = vmatpush1.bf16.msra.mxu0 %v3308
        %3331 = vmatprep.subr.bf16.mxu0 0
        %3332 = vmatpush1.bf16.msra.mxu0 %v3309
        %3333 = vmatprep.subr.bf16.mxu0 0
        %3334 = vmatpush1.bf16.msra.mxu0 %v3310
        %3335 = vmatprep.subr.bf16.mxu0 0
        %3336 = vmatpush1.bf16.msra.mxu0 0
        %3337 = vmatprep.subr.bf16.mxu0 0
        %3338 = vmatpush1.bf16.msra.mxu0 0
        %3339 = vmatprep.subr.bf16.mxu0 0
        %3340 = vmatpush1.bf16.msra.mxu0 0
        %3341 = vmatprep.subr.bf16.mxu0 0
        %3342 = vmatpush1.bf16.msra.mxu0 0
        %3343 = vmatprep.subr.bf16.mxu0 0
        %3344 = vmatpush1.bf16.msra.mxu0 0
        %3345 = vmatprep.subr.bf16.mxu0 0
        %3346 = vmatpush1.bf16.msra.mxu0 0
        %3347 = vmatprep.subr.bf16.mxu0 0
        %3348 = vmatpush1.bf16.msra.mxu0 0
        %3349 = vmatprep.subr.bf16.mxu0 0
        %3350 = vmatpush1.bf16.msra.mxu0 0
        %3351 = vmatprep.mubr.bf16.mxu0 0
        %3352 = vmatmul.mubr.bf16.gmra.mrb[0].mxu0 %v3187
        %v3353 = vpop.f32.mrb[0].mxu0
        %v3354 = vadd.f32 0.0, %v3353
        %v3355 = vpop.f32.mrb[0].mxu0
        %v3356 = vpop.f32.mrb[0].mxu0
        %v3357 = vadd.f32 0.0, %v3356
        %v3358 = vpop.f32.mrb[0].mxu0
        %3359 = vmatprep.mubr.bf16.mxu0 0
        %3360 = vmatmul.mubr.bf16.gmra.mrb[0].mxu0 %v3188
        %v3361 = vpop.f32.mrb[0].mxu0
        %v3362 = vadd.f32 0.0, %v3361
        %v3363 = vpop.f32.mrb[0].mxu0
        %v3364 = vpop.f32.mrb[0].mxu0
        %v3365 = vadd.f32 0.0, %v3364
        %v3366 = vpop.f32.mrb[0].mxu0
        %3367 = vmatprep.mubr.bf16.mxu0 0
        %3368 = vmatmul.mubr.bf16.gmra.mrb[0].mxu0 %v3189
        %v3369 = vpop.f32.mrb[0].mxu0
        %v3370 = vadd.f32 0.0, %v3369
        %v3371 = vpop.f32.mrb[0].mxu0
        %v3372 = vpop.f32.mrb[0].mxu0
        %v3373 = vadd.f32 0.0, %v3372
        %v3374 = vpop.f32.mrb[0].mxu0
        %3375 = vmatprep.mubr.bf16.mxu0 0
        %3376 = vmatmul.mubr.bf16.gmra.mrb[0].mxu0 %v3190
        %v3377 = vpop.f32.mrb[0].mxu0
        %v3378 = vadd.f32 0.0, %v3377
        %v3379 = vpop.f32.mrb[0].mxu0
        %v3380 = vpop.f32.mrb[0].mxu0
        %v3381 = vadd.f32 0.0, %v3380
        %v3382 = vpop.f32.mrb[0].mxu0
        %3383 = vmatprep.mubr.bf16.mxu0 0
        %3384 = vmatmul.mubr.bf16.gmra.mrb[0].mxu0 %v3191
        %v3385 = vpop.f32.mrb[0].mxu0
        %v3386 = vadd.f32 0.0, %v3385
        %v3387 = vpop.f32.mrb[0].mxu0
        %v3388 = vpop.f32.mrb[0].mxu0
        %v3389 = vadd.f32 0.0, %v3388
        %v3390 = vpop.f32.mrb[0].mxu0
        %3391 = vmatprep.mubr.bf16.mxu0 0
        %3392 = vmatmul.mubr.bf16.gmra.mrb[0].mxu0 %v3192
        %v3393 = vpop.f32.mrb[0].mxu0
        %v3394 = vadd.f32 0.0, %v3393
        %v3395 = vpop.f32.mrb[0].mxu0
        %v3396 = vpop.f32.mrb[0].mxu0
        %v3397 = vadd.f32 0.0, %v3396
        %v3398 = vpop.f32.mrb[0].mxu0
        %3399 = vmatprep.mubr.bf16.mxu0 0
        %3400 = vmatmul.mubr.bf16.gmra.mrb[0].mxu0 %v3193
        %v3401 = vpop.f32.mrb[0].mxu0
        %v3402 = vadd.f32 0.0, %v3401
        %v3403 = vpop.f32.mrb[0].mxu0
        %v3404 = vpop.f32.mrb[0].mxu0
        %v3405 = vadd.f32 0.0, %v3404
        %v3406 = vpop.f32.mrb[0].mxu0
        %3407 = vmatprep.mubr.bf16.mxu0 0
        %3408 = vmatmul.mubr.bf16.gmra.mrb[0].mxu0 %v3194
        %v3409 = vpop.f32.mrb[0].mxu0
        %v3410 = vadd.f32 0.0, %v3409
        %v3411 = vpop.f32.mrb[0].mxu0
        %v3412 = vpop.f32.mrb[0].mxu0
        %v3413 = vadd.f32 0.0, %v3412
        %v3414 = vpop.f32.mrb[0].mxu0
        %3415 = vmatprep.mubr.bf16.mxu0 0
        %3416 = vmatmul.mubr.bf16.gmra.mrb[0].mxu0 %v3195
        %v3417 = vpop.f32.mrb[0].mxu0
        %v3418 = vadd.f32 0.0, %v3417
        %v3419 = vpop.f32.mrb[0].mxu0
        %v3420 = vpop.f32.mrb[0].mxu0
        %v3421 = vadd.f32 0.0, %v3420
        %v3422 = vpop.f32.mrb[0].mxu0
        %3423 = vmatprep.mubr.bf16.mxu0 0
        %3424 = vmatmul.mubr.bf16.gmra.mrb[0].mxu0 %v3196
        %v3425 = vpop.f32.mrb[0].mxu0
        %v3426 = vadd.f32 0.0, %v3425
        %v3427 = vpop.f32.mrb[0].mxu0
        %v3428 = vpop.f32.mrb[0].mxu0
        %v3429 = vadd.f32 0.0, %v3428
        %v3430 = vpop.f32.mrb[0].mxu0
        %3431 = vmatprep.mubr.bf16.mxu0 0
        %3432 = vmatmul.mubr.bf16.gmra.mrb[0].mxu0 %v3197
        %v3433 = vpop.f32.mrb[0].mxu0
        %v3434 = vadd.f32 0.0, %v3433
        %v3435 = vpop.f32.mrb[0].mxu0
        %v3436 = vpop.f32.mrb[0].mxu0
        %v3437 = vadd.f32 0.0, %v3436
        %v3438 = vpop.f32.mrb[0].mxu0
        %3439 = vmatprep.mubr.bf16.mxu0 0
        %3440 = vmatmul.mubr.bf16.gmra.mrb[0].mxu0 %v3198
        %v3441 = vpop.f32.mrb[0].mxu0
        %v3442 = vadd.f32 0.0, %v3441
        %v3443 = vpop.f32.mrb[0].mxu0
        %v3444 = vpop.f32.mrb[0].mxu0
        %v3445 = vadd.f32 0.0, %v3444
        %v3446 = vpop.f32.mrb[0].mxu0
        %3447 = vmatprep.mubr.bf16.mxu0 0
        %3448 = vmatmul.mubr.bf16.gmra.mrb[0].mxu0 %v3199
        %v3449 = vpop.f32.mrb[0].mxu0
        %v3450 = vadd.f32 0.0, %v3449
        %v3451 = vpop.f32.mrb[0].mxu0
        %v3452 = vpop.f32.mrb[0].mxu0
        %v3453 = vadd.f32 0.0, %v3452
        %v3454 = vpop.f32.mrb[0].mxu0
        %3455 = vmatprep.mubr.bf16.mxu0 0
        %3456 = vmatmul.mubr.bf16.gmra.mrb[0].mxu0 %v3200
        %v3457 = vpop.f32.mrb[0].mxu0
        %v3458 = vadd.f32 0.0, %v3457
        %v3459 = vpop.f32.mrb[0].mxu0
        %v3460 = vpop.f32.mrb[0].mxu0
        %v3461 = vadd.f32 0.0, %v3460
        %v3462 = vpop.f32.mrb[0].mxu0
        %3463 = vmatprep.mubr.bf16.mxu0 0
        %3464 = vmatmul.mubr.bf16.gmra.mrb[0].mxu0 %v3201
        %v3465 = vpop.f32.mrb[0].mxu0
        %v3466 = vadd.f32 0.0, %v3465
        %v3467 = vpop.f32.mrb[0].mxu0
        %v3468 = vpop.f32.mrb[0].mxu0
        %v3469 = vadd.f32 0.0, %v3468
        %v3470 = vpop.f32.mrb[0].mxu0
        %3471 = vmatprep.mubr.bf16.mxu0 0
        %3472 = vmatmul.mubr.bf16.gmra.mrb[0].mxu0 %v3253
        %v3473 = vpop.f32.mrb[0].mxu0
        %v3474 = vadd.f32 0.0, %v3473
        %v3475 = vpop.f32.mrb[0].mxu0
        %v3476 = vpop.f32.mrb[0].mxu0
        %v3477 = vadd.f32 0.0, %v3476
        %v3478 = vpop.f32.mrb[0].mxu0
        %3479 = vdwg.mxu0
        %v3496 = vunpack.c.l.b16 %v3203
        %v3497 = vunpack.c.l.b16 %v3204
        %v3498 = vunpack.c.l.b16 %v3205
        %v3499 = vunpack.c.l.b16 %v3206
        %v3500 = vunpack.c.l.b16 %v3207
        %v3501 = vunpack.c.l.b16 %v3208
        %v3502 = vunpack.c.l.b16 %v3209
        %v3503 = vunpack.c.l.b16 %v3210
        %v3504 = vunpack.c.l.b16 %v3211
        %v3505 = vunpack.c.l.b16 %v3212
        %v3506 = vunpack.c.l.b16 %v3213
        %v3507 = vunpack.c.l.b16 %v3214
        %v3508 = vunpack.c.l.b16 %v3215
        %v3509 = vunpack.c.l.b16 %v3216
        %v3510 = vunpack.c.l.b16 %v3217
        %v3511 = vunpack.c.l.b16 %v3218
        %v3512 = vpack.c.b16 %v3497, %v3496
        %v3513 = vpack.c.b16 %v3499, %v3498
        %v3514 = vpack.c.b16 %v3501, %v3500
        %v3515 = vpack.c.b16 %v3503, %v3502
        %v3516 = vpack.c.b16 %v3505, %v3504
        %v3517 = vpack.c.b16 %v3507, %v3506
        %v3518 = vpack.c.b16 %v3509, %v3508
        %v3519 = vpack.c.b16 %v3511, %v3510
        %3528 = vmatprep.subr.bf16.mxu0 0
        %3529 = vmatpush1.bf16.msra.mxu0 %v3512
        %3530 = vmatprep.subr.bf16.mxu0 0
        %3531 = vmatpush1.bf16.msra.mxu0 %v3513
        %3532 = vmatprep.subr.bf16.mxu0 0
        %3533 = vmatpush1.bf16.msra.mxu0 %v3514
        %3534 = vmatprep.subr.bf16.mxu0 0
        %3535 = vmatpush1.bf16.msra.mxu0 %v3515
        %3536 = vmatprep.subr.bf16.mxu0 0
        %3537 = vmatpush1.bf16.msra.mxu0 %v3516
        %3538 = vmatprep.subr.bf16.mxu0 0
        %3539 = vmatpush1.bf16.msra.mxu0 %v3517
        %3540 = vmatprep.subr.bf16.mxu0 0
        %3541 = vmatpush1.bf16.msra.mxu0 %v3518
        %3542 = vmatprep.subr.bf16.mxu0 0
        %3543 = vmatpush1.bf16.msra.mxu0 %v3519
        %3544 = vmatprep.subr.bf16.mxu0 0
        %3545 = vmatpush1.bf16.msra.mxu0 0
        %3546 = vmatprep.subr.bf16.mxu0 0
        %3547 = vmatpush1.bf16.msra.mxu0 0
        %3548 = vmatprep.subr.bf16.mxu0 0
        %3549 = vmatpush1.bf16.msra.mxu0 0
        %3550 = vmatprep.subr.bf16.mxu0 0
        %3551 = vmatpush1.bf16.msra.mxu0 0
        %3552 = vmatprep.subr.bf16.mxu0 0
        %3553 = vmatpush1.bf16.msra.mxu0 0
        %3554 = vmatprep.subr.bf16.mxu0 0
        %3555 = vmatpush1.bf16.msra.mxu0 0
        %3556 = vmatprep.subr.bf16.mxu0 0
        %3557 = vmatpush1.bf16.msra.mxu0 0
        %3558 = vmatprep.subr.bf16.mxu0 0
        %3559 = vmatpush1.bf16.msra.mxu0 0
        %3560 = vmatprep.mubr.bf16.mxu0 0
        %3561 = vmatmul.mubr.bf16.gmra.mrb[0].mxu0 %v3186
        %v3562 = vpop.f32.mrb[0].mxu0
        %v3563 = vadd.f32 %v3354, %v3562
        %v3564 = vpop.f32.mrb[0].mxu0
        %v3565 = vpop.f32.mrb[0].mxu0
        %v3566 = vadd.f32 %v3357, %v3565
        %v3567 = vpop.f32.mrb[0].mxu0
        %3568 = vmatprep.mubr.bf16.mxu0 0
        %3569 = vmatmul.mubr.bf16.gmra.mrb[0].mxu0 %v3187
        %v3570 = vpop.f32.mrb[0].mxu0
        %v3571 = vadd.f32 %v3362, %v3570
        %v3572 = vpop.f32.mrb[0].mxu0
        %v3573 = vpop.f32.mrb[0].mxu0
        %v3574 = vadd.f32 %v3365, %v3573
        %v3575 = vpop.f32.mrb[0].mxu0
        %3576 = vmatprep.mubr.bf16.mxu0 0
        %3577 = vmatmul.mubr.bf16.gmra.mrb[0].mxu0 %v3188
        %v3578 = vpop.f32.mrb[0].mxu0
        %v3579 = vadd.f32 %v3370, %v3578
        %v3580 = vpop.f32.mrb[0].mxu0
        %v3581 = vpop.f32.mrb[0].mxu0
        %v3582 = vadd.f32 %v3373, %v3581
        %v3583 = vpop.f32.mrb[0].mxu0
        %3584 = vmatprep.mubr.bf16.mxu0 0
        %3585 = vmatmul.mubr.bf16.gmra.mrb[0].mxu0 %v3189
        %v3586 = vpop.f32.mrb[0].mxu0
        %v3587 = vadd.f32 %v3378, %v3586
        %v3588 = vpop.f32.mrb[0].mxu0
        %v3589 = vpop.f32.mrb[0].mxu0
        %v3590 = vadd.f32 %v3381, %v3589
        %v3591 = vpop.f32.mrb[0].mxu0
        %3592 = vmatprep.mubr.bf16.mxu0 0
        %3593 = vmatmul.mubr.bf16.gmra.mrb[0].mxu0 %v3190
        %v3594 = vpop.f32.mrb[0].mxu0
        %v3595 = vadd.f32 %v3386, %v3594
        %v3596 = vpop.f32.mrb[0].mxu0
        %v3597 = vpop.f32.mrb[0].mxu0
        %v3598 = vadd.f32 %v3389, %v3597
        %v3599 = vpop.f32.mrb[0].mxu0
        %3600 = vmatprep.mubr.bf16.mxu0 0
        %3601 = vmatmul.mubr.bf16.gmra.mrb[0].mxu0 %v3191
        %v3602 = vpop.f32.mrb[0].mxu0
        %v3603 = vadd.f32 %v3394, %v3602
        %v3604 = vpop.f32.mrb[0].mxu0
        %v3605 = vpop.f32.mrb[0].mxu0
        %v3606 = vadd.f32 %v3397, %v3605
        %v3607 = vpop.f32.mrb[0].mxu0
        %3608 = vmatprep.mubr.bf16.mxu0 0
        %3609 = vmatmul.mubr.bf16.gmra.mrb[0].mxu0 %v3192
        %v3610 = vpop.f32.mrb[0].mxu0
        %v3611 = vadd.f32 %v3402, %v3610
        %v3612 = vpop.f32.mrb[0].mxu0
        %v3613 = vpop.f32.mrb[0].mxu0
        %v3614 = vadd.f32 %v3405, %v3613
        %v3615 = vpop.f32.mrb[0].mxu0
        %3616 = vmatprep.mubr.bf16.mxu0 0
        %3617 = vmatmul.mubr.bf16.gmra.mrb[0].mxu0 %v3193
        %v3618 = vpop.f32.mrb[0].mxu0
        %v3619 = vadd.f32 %v3410, %v3618
        %v3620 = vpop.f32.mrb[0].mxu0
        %v3621 = vpop.f32.mrb[0].mxu0
        %v3622 = vadd.f32 %v3413, %v3621
        %v3623 = vpop.f32.mrb[0].mxu0
        %3624 = vmatprep.mubr.bf16.mxu0 0
        %3625 = vmatmul.mubr.bf16.gmra.mrb[0].mxu0 %v3194
        %v3626 = vpop.f32.mrb[0].mxu0
        %v3627 = vadd.f32 %v3418, %v3626
        %v3628 = vpop.f32.mrb[0].mxu0
        %v3629 = vpop.f32.mrb[0].mxu0
        %v3630 = vadd.f32 %v3421, %v3629
        %v3631 = vpop.f32.mrb[0].mxu0
        %3632 = vmatprep.mubr.bf16.mxu0 0
        %3633 = vmatmul.mubr.bf16.gmra.mrb[0].mxu0 %v3195
        %v3634 = vpop.f32.mrb[0].mxu0
        %v3635 = vadd.f32 %v3426, %v3634
        %v3636 = vpop.f32.mrb[0].mxu0
        %v3637 = vpop.f32.mrb[0].mxu0
        %v3638 = vadd.f32 %v3429, %v3637
        %v3639 = vpop.f32.mrb[0].mxu0
        %3640 = vmatprep.mubr.bf16.mxu0 0
        %3641 = vmatmul.mubr.bf16.gmra.mrb[0].mxu0 %v3196
        %v3642 = vpop.f32.mrb[0].mxu0
        %v3643 = vadd.f32 %v3434, %v3642
        %v3644 = vpop.f32.mrb[0].mxu0
        %v3645 = vpop.f32.mrb[0].mxu0
        %v3646 = vadd.f32 %v3437, %v3645
        %v3647 = vpop.f32.mrb[0].mxu0
        %3648 = vmatprep.mubr.bf16.mxu0 0
        %3649 = vmatmul.mubr.bf16.gmra.mrb[0].mxu0 %v3197
        %v3650 = vpop.f32.mrb[0].mxu0
        %v3651 = vadd.f32 %v3442, %v3650
        %v3652 = vpop.f32.mrb[0].mxu0
        %v3653 = vpop.f32.mrb[0].mxu0
        %v3654 = vadd.f32 %v3445, %v3653
        %v3655 = vpop.f32.mrb[0].mxu0
        %3656 = vmatprep.mubr.bf16.mxu0 0
        %3657 = vmatmul.mubr.bf16.gmra.mrb[0].mxu0 %v3198
        %v3658 = vpop.f32.mrb[0].mxu0
        %v3659 = vadd.f32 %v3450, %v3658
        %v3660 = vpop.f32.mrb[0].mxu0
        %v3661 = vpop.f32.mrb[0].mxu0
        %v3662 = vadd.f32 %v3453, %v3661
        %v3663 = vpop.f32.mrb[0].mxu0
        %3664 = vmatprep.mubr.bf16.mxu0 0
        %3665 = vmatmul.mubr.bf16.gmra.mrb[0].mxu0 %v3199
        %v3666 = vpop.f32.mrb[0].mxu0
        %v3667 = vadd.f32 %v3458, %v3666
        %v3668 = vpop.f32.mrb[0].mxu0
        %v3669 = vpop.f32.mrb[0].mxu0
        %v3670 = vadd.f32 %v3461, %v3669
        %v3671 = vpop.f32.mrb[0].mxu0
        %3672 = vmatprep.mubr.bf16.mxu0 0
        %3673 = vmatmul.mubr.bf16.gmra.mrb[0].mxu0 %v3200
        %v3674 = vpop.f32.mrb[0].mxu0
        %v3675 = vadd.f32 %v3466, %v3674
        %v3676 = vpop.f32.mrb[0].mxu0
        %v3677 = vpop.f32.mrb[0].mxu0
        %v3678 = vadd.f32 %v3469, %v3677
        %v3679 = vpop.f32.mrb[0].mxu0
        %3680 = vmatprep.mubr.bf16.mxu0 0
        %3681 = vmatmul.mubr.bf16.gmra.mrb[0].mxu0 %v3201
        %v3682 = vpop.f32.mrb[0].mxu0
        %v3683 = vadd.f32 %v3474, %v3682
        %v3684 = vpop.f32.mrb[0].mxu0
        %v3685 = vpop.f32.mrb[0].mxu0
        %v3686 = vadd.f32 %v3477, %v3685
        %v3687 = vpop.f32.mrb[0].mxu0
        %3688 = vdwg.mxu0
        %s3689 = scalar_lea.vmem %s1, 832
        %v3690 = vld [vmem:[%s3689] sm:$0xf]
        %v3691 = vld [vmem:[%s3689 + $0x4] sm:$0xf]
        %v3692 = vld [vmem:[%s3689 + $0x8] sm:$0xf]
        %v3693 = vld [vmem:[%s3689 + $0xc] sm:$0xf]
        %v3694 = vld [vmem:[%s3689 + $0x10] sm:$0xf]
        %v3695 = vld [vmem:[%s3689 + $0x14] sm:$0xf]
        %v3696 = vld [vmem:[%s3689 + $0x18] sm:$0xf]
        %v3697 = vld [vmem:[%s3689 + $0x1c] sm:$0xf]
        %v3698 = vld [vmem:[%s3689 + $0x20] sm:$0xf]
        %v3699 = vld [vmem:[%s3689 + $0x24] sm:$0xf]
        %v3700 = vld [vmem:[%s3689 + $0x28] sm:$0xf]
        %v3701 = vld [vmem:[%s3689 + $0x2c] sm:$0xf]
        %v3702 = vld [vmem:[%s3689 + $0x30] sm:$0xf]
        %v3703 = vld [vmem:[%s3689 + $0x34] sm:$0xf]
        %v3704 = vld [vmem:[%s3689 + $0x38] sm:$0xf]
        %v3705 = vld [vmem:[%s3689 + $0x3c] sm:$0xf]
        %v3722 = vunpack.c.l.b16 %v3690
        %v3723 = vunpack.c.l.b16 %v3691
        %v3724 = vunpack.c.l.b16 %v3692
        %v3725 = vunpack.c.l.b16 %v3693
        %v3726 = vunpack.c.l.b16 %v3694
        %v3727 = vunpack.c.l.b16 %v3695
        %v3728 = vunpack.c.l.b16 %v3696
        %v3729 = vunpack.c.l.b16 %v3697
        %v3730 = vunpack.c.l.b16 %v3698
        %v3731 = vunpack.c.l.b16 %v3699
        %v3732 = vunpack.c.l.b16 %v3700
        %v3733 = vunpack.c.l.b16 %v3701
        %v3734 = vunpack.c.l.b16 %v3702
        %v3735 = vunpack.c.l.b16 %v3703
        %v3736 = vunpack.c.l.b16 %v3704
        %v3737 = vunpack.c.l.b16 %v3705
        %v3738 = vpack.c.b16 %v3723, %v3722
        %v3739 = vpack.c.b16 %v3725, %v3724
        %v3740 = vpack.c.b16 %v3727, %v3726
        %v3741 = vpack.c.b16 %v3729, %v3728
        %v3742 = vpack.c.b16 %v3731, %v3730
        %v3743 = vpack.c.b16 %v3733, %v3732
        %v3744 = vpack.c.b16 %v3735, %v3734
        %v3745 = vpack.c.b16 %v3737, %v3736
        %3754 = vmatprep.subr.bf16.mxu0 0
        %3755 = vmatpush1.bf16.msra.mxu0 %v3738
        %3756 = vmatprep.subr.bf16.mxu0 0
        %3757 = vmatpush1.bf16.msra.mxu0 %v3739
        %3758 = vmatprep.subr.bf16.mxu0 0
        %3759 = vmatpush1.bf16.msra.mxu0 %v3740
        %3760 = vmatprep.subr.bf16.mxu0 0
        %3761 = vmatpush1.bf16.msra.mxu0 %v3741
        %3762 = vmatprep.subr.bf16.mxu0 0
        %3763 = vmatpush1.bf16.msra.mxu0 %v3742
        %3764 = vmatprep.subr.bf16.mxu0 0
        %3765 = vmatpush1.bf16.msra.mxu0 %v3743
        %3766 = vmatprep.subr.bf16.mxu0 0
        %3767 = vmatpush1.bf16.msra.mxu0 %v3744
        %3768 = vmatprep.subr.bf16.mxu0 0
        %3769 = vmatpush1.bf16.msra.mxu0 %v3745
        %3770 = vmatprep.subr.bf16.mxu0 0
        %3771 = vmatpush1.bf16.msra.mxu0 0
        %3772 = vmatprep.subr.bf16.mxu0 0
        %3773 = vmatpush1.bf16.msra.mxu0 0
        %3774 = vmatprep.subr.bf16.mxu0 0
        %3775 = vmatpush1.bf16.msra.mxu0 0
        %3776 = vmatprep.subr.bf16.mxu0 0
        %3777 = vmatpush1.bf16.msra.mxu0 0
        %3778 = vmatprep.subr.bf16.mxu0 0
        %3779 = vmatpush1.bf16.msra.mxu0 0
        %3780 = vmatprep.subr.bf16.mxu0 0
        %3781 = vmatpush1.bf16.msra.mxu0 0
        %3782 = vmatprep.subr.bf16.mxu0 0
        %3783 = vmatpush1.bf16.msra.mxu0 0
        %3784 = vmatprep.subr.bf16.mxu0 0
        %3785 = vmatpush1.bf16.msra.mxu0 0
        %3786 = vmatprep.mubr.bf16.mxu0 0
        %3787 = vmatmul.mubr.bf16.gmra.mrb[0].mxu0 %v3187
        %v3788 = vpop.f32.mrb[0].mxu0
        %v3789 = vadd.f32 0.0, %v3788
        %v3790 = vpop.f32.mrb[0].mxu0
        %v3791 = vpop.f32.mrb[0].mxu0
        %v3792 = vadd.f32 0.0, %v3791
        %v3793 = vpop.f32.mrb[0].mxu0
        %3794 = vmatprep.mubr.bf16.mxu0 0
        %3795 = vmatmul.mubr.bf16.gmra.mrb[0].mxu0 %v3188
        %v3796 = vpop.f32.mrb[0].mxu0
        %v3797 = vadd.f32 0.0, %v3796
        %v3798 = vpop.f32.mrb[0].mxu0
        %v3799 = vpop.f32.mrb[0].mxu0
        %v3800 = vadd.f32 0.0, %v3799
        %v3801 = vpop.f32.mrb[0].mxu0
        %3802 = vmatprep.mubr.bf16.mxu0 0
        %3803 = vmatmul.mubr.bf16.gmra.mrb[0].mxu0 %v3189
        %v3804 = vpop.f32.mrb[0].mxu0
        %v3805 = vadd.f32 0.0, %v3804
        %v3806 = vpop.f32.mrb[0].mxu0
        %v3807 = vpop.f32.mrb[0].mxu0
        %v3808 = vadd.f32 0.0, %v3807
        %v3809 = vpop.f32.mrb[0].mxu0
        %3810 = vmatprep.mubr.bf16.mxu0 0
        %3811 = vmatmul.mubr.bf16.gmra.mrb[0].mxu0 %v3190
        %v3812 = vpop.f32.mrb[0].mxu0
        %v3813 = vadd.f32 0.0, %v3812
        %v3814 = vpop.f32.mrb[0].mxu0
        %v3815 = vpop.f32.mrb[0].mxu0
        %v3816 = vadd.f32 0.0, %v3815
        %v3817 = vpop.f32.mrb[0].mxu0
        %3818 = vmatprep.mubr.bf16.mxu0 0
        %3819 = vmatmul.mubr.bf16.gmra.mrb[0].mxu0 %v3191
        %v3820 = vpop.f32.mrb[0].mxu0
        %v3821 = vadd.f32 0.0, %v3820
        %v3822 = vpop.f32.mrb[0].mxu0
        %v3823 = vpop.f32.mrb[0].mxu0
        %v3824 = vadd.f32 0.0, %v3823
        %v3825 = vpop.f32.mrb[0].mxu0
        %3826 = vmatprep.mubr.bf16.mxu0 0
        %3827 = vmatmul.mubr.bf16.gmra.mrb[0].mxu0 %v3192
        %v3828 = vpop.f32.mrb[0].mxu0
        %v3829 = vadd.f32 0.0, %v3828
        %v3830 = vpop.f32.mrb[0].mxu0
        %v3831 = vpop.f32.mrb[0].mxu0
        %v3832 = vadd.f32 0.0, %v3831
        %v3833 = vpop.f32.mrb[0].mxu0
        %3834 = vmatprep.mubr.bf16.mxu0 0
        %3835 = vmatmul.mubr.bf16.gmra.mrb[0].mxu0 %v3193
        %v3836 = vpop.f32.mrb[0].mxu0
        %v3837 = vadd.f32 0.0, %v3836
        %v3838 = vpop.f32.mrb[0].mxu0
        %v3839 = vpop.f32.mrb[0].mxu0
        %v3840 = vadd.f32 0.0, %v3839
        %v3841 = vpop.f32.mrb[0].mxu0
        %3842 = vmatprep.mubr.bf16.mxu0 0
        %3843 = vmatmul.mubr.bf16.gmra.mrb[0].mxu0 %v3194
        %v3844 = vpop.f32.mrb[0].mxu0
        %v3845 = vadd.f32 0.0, %v3844
        %v3846 = vpop.f32.mrb[0].mxu0
        %v3847 = vpop.f32.mrb[0].mxu0
        %v3848 = vadd.f32 0.0, %v3847
        %v3849 = vpop.f32.mrb[0].mxu0
        %3850 = vmatprep.mubr.bf16.mxu0 0
        %3851 = vmatmul.mubr.bf16.gmra.mrb[0].mxu0 %v3195
        %v3852 = vpop.f32.mrb[0].mxu0
        %v3853 = vadd.f32 0.0, %v3852
        %v3854 = vpop.f32.mrb[0].mxu0
        %v3855 = vpop.f32.mrb[0].mxu0
        %v3856 = vadd.f32 0.0, %v3855
        %v3857 = vpop.f32.mrb[0].mxu0
        %3858 = vmatprep.mubr.bf16.mxu0 0
        %3859 = vmatmul.mubr.bf16.gmra.mrb[0].mxu0 %v3196
        %v3860 = vpop.f32.mrb[0].mxu0
        %v3861 = vadd.f32 0.0, %v3860
        %v3862 = vpop.f32.mrb[0].mxu0
        %v3863 = vpop.f32.mrb[0].mxu0
        %v3864 = vadd.f32 0.0, %v3863
        %v3865 = vpop.f32.mrb[0].mxu0
        %3866 = vmatprep.mubr.bf16.mxu0 0
        %3867 = vmatmul.mubr.bf16.gmra.mrb[0].mxu0 %v3197
        %v3868 = vpop.f32.mrb[0].mxu0
        %v3869 = vadd.f32 0.0, %v3868
        %v3870 = vpop.f32.mrb[0].mxu0
        %v3871 = vpop.f32.mrb[0].mxu0
        %v3872 = vadd.f32 0.0, %v3871
        %v3873 = vpop.f32.mrb[0].mxu0
        %3874 = vmatprep.mubr.bf16.mxu0 0
        %3875 = vmatmul.mubr.bf16.gmra.mrb[0].mxu0 %v3198
        %v3876 = vpop.f32.mrb[0].mxu0
        %v3877 = vadd.f32 0.0, %v3876
        %v3878 = vpop.f32.mrb[0].mxu0
        %v3879 = vpop.f32.mrb[0].mxu0
        %v3880 = vadd.f32 0.0, %v3879
        %v3881 = vpop.f32.mrb[0].mxu0
        %3882 = vmatprep.mubr.bf16.mxu0 0
        %3883 = vmatmul.mubr.bf16.gmra.mrb[0].mxu0 %v3199
        %v3884 = vpop.f32.mrb[0].mxu0
        %v3885 = vadd.f32 0.0, %v3884
        %v3886 = vpop.f32.mrb[0].mxu0
        %v3887 = vpop.f32.mrb[0].mxu0
        %v3888 = vadd.f32 0.0, %v3887
        %v3889 = vpop.f32.mrb[0].mxu0
        %3890 = vmatprep.mubr.bf16.mxu0 0
        %3891 = vmatmul.mubr.bf16.gmra.mrb[0].mxu0 %v3200
        %v3892 = vpop.f32.mrb[0].mxu0
        %v3893 = vadd.f32 0.0, %v3892
        %v3894 = vpop.f32.mrb[0].mxu0
        %v3895 = vpop.f32.mrb[0].mxu0
        %v3896 = vadd.f32 0.0, %v3895
        %v3897 = vpop.f32.mrb[0].mxu0
        %3898 = vmatprep.mubr.bf16.mxu0 0
        %3899 = vmatmul.mubr.bf16.gmra.mrb[0].mxu0 %v3201
        %v3900 = vpop.f32.mrb[0].mxu0
        %v3901 = vadd.f32 0.0, %v3900
        %v3902 = vpop.f32.mrb[0].mxu0
        %v3903 = vpop.f32.mrb[0].mxu0
        %v3904 = vadd.f32 0.0, %v3903
        %v3905 = vpop.f32.mrb[0].mxu0
        %3906 = vmatprep.mubr.bf16.mxu0 0
        %3907 = vmatmul.mubr.bf16.gmra.mrb[0].mxu0 %v3253
        %v3908 = vpop.f32.mrb[0].mxu0
        %v3909 = vadd.f32 0.0, %v3908
        %v3910 = vpop.f32.mrb[0].mxu0
        %v3911 = vpop.f32.mrb[0].mxu0
        %v3912 = vadd.f32 0.0, %v3911
        %v3913 = vpop.f32.mrb[0].mxu0
        %3914 = vdwg.mxu0
        %v3931 = vunpack.c.l.b16 %v3220
        %v3932 = vunpack.c.l.b16 %v3221
        %v3933 = vunpack.c.l.b16 %v3222
        %v3934 = vunpack.c.l.b16 %v3223
        %v3935 = vunpack.c.l.b16 %v3224
        %v3936 = vunpack.c.l.b16 %v3225
        %v3937 = vunpack.c.l.b16 %v3226
        %v3938 = vunpack.c.l.b16 %v3227
        %v3939 = vunpack.c.l.b16 %v3228
        %v3940 = vunpack.c.l.b16 %v3229
        %v3941 = vunpack.c.l.b16 %v3230
        %v3942 = vunpack.c.l.b16 %v3231
        %v3943 = vunpack.c.l.b16 %v3232
        %v3944 = vunpack.c.l.b16 %v3233
        %v3945 = vunpack.c.l.b16 %v3234
        %v3946 = vunpack.c.l.b16 %v3235
        %v3947 = vpack.c.b16 %v3932, %v3931
        %v3948 = vpack.c.b16 %v3934, %v3933
        %v3949 = vpack.c.b16 %v3936, %v3935
        %v3950 = vpack.c.b16 %v3938, %v3937
        %v3951 = vpack.c.b16 %v3940, %v3939
        %v3952 = vpack.c.b16 %v3942, %v3941
        %v3953 = vpack.c.b16 %v3944, %v3943
        %v3954 = vpack.c.b16 %v3946, %v3945
        %3963 = vmatprep.subr.bf16.mxu0 0
        %3964 = vmatpush1.bf16.msra.mxu0 %v3947
        %3965 = vmatprep.subr.bf16.mxu0 0
        %3966 = vmatpush1.bf16.msra.mxu0 %v3948
        %3967 = vmatprep.subr.bf16.mxu0 0
        %3968 = vmatpush1.bf16.msra.mxu0 %v3949
        %3969 = vmatprep.subr.bf16.mxu0 0
        %3970 = vmatpush1.bf16.msra.mxu0 %v3950
        %3971 = vmatprep.subr.bf16.mxu0 0
        %3972 = vmatpush1.bf16.msra.mxu0 %v3951
        %3973 = vmatprep.subr.bf16.mxu0 0
        %3974 = vmatpush1.bf16.msra.mxu0 %v3952
        %3975 = vmatprep.subr.bf16.mxu0 0
        %3976 = vmatpush1.bf16.msra.mxu0 %v3953
        %3977 = vmatprep.subr.bf16.mxu0 0
        %3978 = vmatpush1.bf16.msra.mxu0 %v3954
        %3979 = vmatprep.subr.bf16.mxu0 0
        %3980 = vmatpush1.bf16.msra.mxu0 0
        %3981 = vmatprep.subr.bf16.mxu0 0
        %3982 = vmatpush1.bf16.msra.mxu0 0
        %3983 = vmatprep.subr.bf16.mxu0 0
        %3984 = vmatpush1.bf16.msra.mxu0 0
        %3985 = vmatprep.subr.bf16.mxu0 0
        %3986 = vmatpush1.bf16.msra.mxu0 0
        %3987 = vmatprep.subr.bf16.mxu0 0
        %3988 = vmatpush1.bf16.msra.mxu0 0
        %3989 = vmatprep.subr.bf16.mxu0 0
        %3990 = vmatpush1.bf16.msra.mxu0 0
        %3991 = vmatprep.subr.bf16.mxu0 0
        %3992 = vmatpush1.bf16.msra.mxu0 0
        %3993 = vmatprep.subr.bf16.mxu0 0
        %3994 = vmatpush1.bf16.msra.mxu0 0
        %3995 = vmatprep.mubr.bf16.mxu0 0
        %3996 = vmatmul.mubr.bf16.gmra.mrb[0].mxu0 %v3186
        %v3997 = vpop.f32.mrb[0].mxu0
        %v3998 = vadd.f32 %v3789, %v3997
        %v3999 = vpop.f32.mrb[0].mxu0
        %v4000 = vpop.f32.mrb[0].mxu0
        %v4001 = vadd.f32 %v3792, %v4000
        %v4002 = vpop.f32.mrb[0].mxu0
        %4003 = vmatprep.mubr.bf16.mxu0 0
        %4004 = vmatmul.mubr.bf16.gmra.mrb[0].mxu0 %v3187
        %v4005 = vpop.f32.mrb[0].mxu0
        %v4006 = vadd.f32 %v3797, %v4005
        %v4007 = vpop.f32.mrb[0].mxu0
        %v4008 = vpop.f32.mrb[0].mxu0
        %v4009 = vadd.f32 %v3800, %v4008
        %v4010 = vpop.f32.mrb[0].mxu0
        %4011 = vmatprep.mubr.bf16.mxu0 0
        %4012 = vmatmul.mubr.bf16.gmra.mrb[0].mxu0 %v3188
        %v4013 = vpop.f32.mrb[0].mxu0
        %v4014 = vadd.f32 %v3805, %v4013
        %v4015 = vpop.f32.mrb[0].mxu0
        %v4016 = vpop.f32.mrb[0].mxu0
        %v4017 = vadd.f32 %v3808, %v4016
        %v4018 = vpop.f32.mrb[0].mxu0
        %4019 = vmatprep.mubr.bf16.mxu0 0
        %4020 = vmatmul.mubr.bf16.gmra.mrb[0].mxu0 %v3189
        %v4021 = vpop.f32.mrb[0].mxu0
        %v4022 = vadd.f32 %v3813, %v4021
        %v4023 = vpop.f32.mrb[0].mxu0
        %v4024 = vpop.f32.mrb[0].mxu0
        %v4025 = vadd.f32 %v3816, %v4024
        %v4026 = vpop.f32.mrb[0].mxu0
        %4027 = vmatprep.mubr.bf16.mxu0 0
        %4028 = vmatmul.mubr.bf16.gmra.mrb[0].mxu0 %v3190
        %v4029 = vpop.f32.mrb[0].mxu0
        %v4030 = vadd.f32 %v3821, %v4029
        %v4031 = vpop.f32.mrb[0].mxu0
        %v4032 = vpop.f32.mrb[0].mxu0
        %v4033 = vadd.f32 %v3824, %v4032
        %v4034 = vpop.f32.mrb[0].mxu0
        %4035 = vmatprep.mubr.bf16.mxu0 0
        %4036 = vmatmul.mubr.bf16.gmra.mrb[0].mxu0 %v3191
        %v4037 = vpop.f32.mrb[0].mxu0
        %v4038 = vadd.f32 %v3829, %v4037
        %v4039 = vpop.f32.mrb[0].mxu0
        %v4040 = vpop.f32.mrb[0].mxu0
        %v4041 = vadd.f32 %v3832, %v4040
        %v4042 = vpop.f32.mrb[0].mxu0
        %4043 = vmatprep.mubr.bf16.mxu0 0
        %4044 = vmatmul.mubr.bf16.gmra.mrb[0].mxu0 %v3192
        %v4045 = vpop.f32.mrb[0].mxu0
        %v4046 = vadd.f32 %v3837, %v4045
        %v4047 = vpop.f32.mrb[0].mxu0
        %v4048 = vpop.f32.mrb[0].mxu0
        %v4049 = vadd.f32 %v3840, %v4048
        %v4050 = vpop.f32.mrb[0].mxu0
        %4051 = vmatprep.mubr.bf16.mxu0 0
        %4052 = vmatmul.mubr.bf16.gmra.mrb[0].mxu0 %v3193
        %v4053 = vpop.f32.mrb[0].mxu0
        %v4054 = vadd.f32 %v3845, %v4053
        %v4055 = vpop.f32.mrb[0].mxu0
        %v4056 = vpop.f32.mrb[0].mxu0
        %v4057 = vadd.f32 %v3848, %v4056
        %v4058 = vpop.f32.mrb[0].mxu0
        %4059 = vmatprep.mubr.bf16.mxu0 0
        %4060 = vmatmul.mubr.bf16.gmra.mrb[0].mxu0 %v3194
        %v4061 = vpop.f32.mrb[0].mxu0
        %v4062 = vadd.f32 %v3853, %v4061
        %v4063 = vpop.f32.mrb[0].mxu0
        %v4064 = vpop.f32.mrb[0].mxu0
        %v4065 = vadd.f32 %v3856, %v4064
        %v4066 = vpop.f32.mrb[0].mxu0
        %4067 = vmatprep.mubr.bf16.mxu0 0
        %4068 = vmatmul.mubr.bf16.gmra.mrb[0].mxu0 %v3195
        %v4069 = vpop.f32.mrb[0].mxu0
        %v4070 = vadd.f32 %v3861, %v4069
        %v4071 = vpop.f32.mrb[0].mxu0
        %v4072 = vpop.f32.mrb[0].mxu0
        %v4073 = vadd.f32 %v3864, %v4072
        %v4074 = vpop.f32.mrb[0].mxu0
        %4075 = vmatprep.mubr.bf16.mxu0 0
        %4076 = vmatmul.mubr.bf16.gmra.mrb[0].mxu0 %v3196
        %v4077 = vpop.f32.mrb[0].mxu0
        %v4078 = vadd.f32 %v3869, %v4077
        %v4079 = vpop.f32.mrb[0].mxu0
        %v4080 = vpop.f32.mrb[0].mxu0
        %v4081 = vadd.f32 %v3872, %v4080
        %v4082 = vpop.f32.mrb[0].mxu0
        %4083 = vmatprep.mubr.bf16.mxu0 0
        %4084 = vmatmul.mubr.bf16.gmra.mrb[0].mxu0 %v3197
        %v4085 = vpop.f32.mrb[0].mxu0
        %v4086 = vadd.f32 %v3877, %v4085
        %v4087 = vpop.f32.mrb[0].mxu0
        %v4088 = vpop.f32.mrb[0].mxu0
        %v4089 = vadd.f32 %v3880, %v4088
        %v4090 = vpop.f32.mrb[0].mxu0
        %4091 = vmatprep.mubr.bf16.mxu0 0
        %4092 = vmatmul.mubr.bf16.gmra.mrb[0].mxu0 %v3198
        %v4093 = vpop.f32.mrb[0].mxu0
        %v4094 = vadd.f32 %v3885, %v4093
        %v4095 = vpop.f32.mrb[0].mxu0
        %v4096 = vpop.f32.mrb[0].mxu0
        %v4097 = vadd.f32 %v3888, %v4096
        %v4098 = vpop.f32.mrb[0].mxu0
        %4099 = vmatprep.mubr.bf16.mxu0 0
        %4100 = vmatmul.mubr.bf16.gmra.mrb[0].mxu0 %v3199
        %v4101 = vpop.f32.mrb[0].mxu0
        %v4102 = vadd.f32 %v3893, %v4101
        %v4103 = vpop.f32.mrb[0].mxu0
        %v4104 = vpop.f32.mrb[0].mxu0
        %v4105 = vadd.f32 %v3896, %v4104
        %v4106 = vpop.f32.mrb[0].mxu0
        %4107 = vmatprep.mubr.bf16.mxu0 0
        %4108 = vmatmul.mubr.bf16.gmra.mrb[0].mxu0 %v3200
        %v4109 = vpop.f32.mrb[0].mxu0
        %v4110 = vadd.f32 %v3901, %v4109
        %v4111 = vpop.f32.mrb[0].mxu0
        %v4112 = vpop.f32.mrb[0].mxu0
        %v4113 = vadd.f32 %v3904, %v4112
        %v4114 = vpop.f32.mrb[0].mxu0
        %4115 = vmatprep.mubr.bf16.mxu0 0
        %4116 = vmatmul.mubr.bf16.gmra.mrb[0].mxu0 %v3201
        %v4117 = vpop.f32.mrb[0].mxu0
        %v4118 = vadd.f32 %v3909, %v4117
        %v4119 = vpop.f32.mrb[0].mxu0
        %v4120 = vpop.f32.mrb[0].mxu0
        %v4121 = vadd.f32 %v3912, %v4120
        %v4122 = vpop.f32.mrb[0].mxu0
        %4123 = vdwg.mxu0
        %s4124 = scalar_lea.vmem %s1, 896
        %v4125 = vld [vmem:[%s4124] sm:$0xf]
        %v4126 = vld [vmem:[%s4124 + $0x4] sm:$0xf]
        %v4127 = vld [vmem:[%s4124 + $0x8] sm:$0xf]
        %v4128 = vld [vmem:[%s4124 + $0xc] sm:$0xf]
        %v4129 = vld [vmem:[%s4124 + $0x10] sm:$0xf]
        %v4130 = vld [vmem:[%s4124 + $0x14] sm:$0xf]
        %v4131 = vld [vmem:[%s4124 + $0x18] sm:$0xf]
        %v4132 = vld [vmem:[%s4124 + $0x1c] sm:$0xf]
        %v4133 = vld [vmem:[%s4124 + $0x20] sm:$0xf]
        %v4134 = vld [vmem:[%s4124 + $0x24] sm:$0xf]
        %v4135 = vld [vmem:[%s4124 + $0x28] sm:$0xf]
        %v4136 = vld [vmem:[%s4124 + $0x2c] sm:$0xf]
        %v4137 = vld [vmem:[%s4124 + $0x30] sm:$0xf]
        %v4138 = vld [vmem:[%s4124 + $0x34] sm:$0xf]
        %v4139 = vld [vmem:[%s4124 + $0x38] sm:$0xf]
        %v4140 = vld [vmem:[%s4124 + $0x3c] sm:$0xf]
        %v4157 = vunpack.c.l.b16 %v4125
        %v4158 = vunpack.c.l.b16 %v4126
        %v4159 = vunpack.c.l.b16 %v4127
        %v4160 = vunpack.c.l.b16 %v4128
        %v4161 = vunpack.c.l.b16 %v4129
        %v4162 = vunpack.c.l.b16 %v4130
        %v4163 = vunpack.c.l.b16 %v4131
        %v4164 = vunpack.c.l.b16 %v4132
        %v4165 = vunpack.c.l.b16 %v4133
        %v4166 = vunpack.c.l.b16 %v4134
        %v4167 = vunpack.c.l.b16 %v4135
        %v4168 = vunpack.c.l.b16 %v4136
        %v4169 = vunpack.c.l.b16 %v4137
        %v4170 = vunpack.c.l.b16 %v4138
        %v4171 = vunpack.c.l.b16 %v4139
        %v4172 = vunpack.c.l.b16 %v4140
        %v4173 = vpack.c.b16 %v4158, %v4157
        %v4174 = vpack.c.b16 %v4160, %v4159
        %v4175 = vpack.c.b16 %v4162, %v4161
        %v4176 = vpack.c.b16 %v4164, %v4163
        %v4177 = vpack.c.b16 %v4166, %v4165
        %v4178 = vpack.c.b16 %v4168, %v4167
        %v4179 = vpack.c.b16 %v4170, %v4169
        %v4180 = vpack.c.b16 %v4172, %v4171
        %4189 = vmatprep.subr.bf16.mxu0 0
        %4190 = vmatpush1.bf16.msra.mxu0 %v4173
        %4191 = vmatprep.subr.bf16.mxu0 0
        %4192 = vmatpush1.bf16.msra.mxu0 %v4174
        %4193 = vmatprep.subr.bf16.mxu0 0
        %4194 = vmatpush1.bf16.msra.mxu0 %v4175
        %4195 = vmatprep.subr.bf16.mxu0 0
        %4196 = vmatpush1.bf16.msra.mxu0 %v4176
        %4197 = vmatprep.subr.bf16.mxu0 0
        %4198 = vmatpush1.bf16.msra.mxu0 %v4177
        %4199 = vmatprep.subr.bf16.mxu0 0
        %4200 = vmatpush1.bf16.msra.mxu0 %v4178
        %4201 = vmatprep.subr.bf16.mxu0 0
        %4202 = vmatpush1.bf16.msra.mxu0 %v4179
        %4203 = vmatprep.subr.bf16.mxu0 0
        %4204 = vmatpush1.bf16.msra.mxu0 %v4180
        %4205 = vmatprep.subr.bf16.mxu0 0
        %4206 = vmatpush1.bf16.msra.mxu0 0
        %4207 = vmatprep.subr.bf16.mxu0 0
        %4208 = vmatpush1.bf16.msra.mxu0 0
        %4209 = vmatprep.subr.bf16.mxu0 0
        %4210 = vmatpush1.bf16.msra.mxu0 0
        %4211 = vmatprep.subr.bf16.mxu0 0
        %4212 = vmatpush1.bf16.msra.mxu0 0
        %4213 = vmatprep.subr.bf16.mxu0 0
        %4214 = vmatpush1.bf16.msra.mxu0 0
        %4215 = vmatprep.subr.bf16.mxu0 0
        %4216 = vmatpush1.bf16.msra.mxu0 0
        %4217 = vmatprep.subr.bf16.mxu0 0
        %4218 = vmatpush1.bf16.msra.mxu0 0
        %4219 = vmatprep.subr.bf16.mxu0 0
        %4220 = vmatpush1.bf16.msra.mxu0 0
        %4221 = vmatprep.mubr.bf16.mxu0 0
        %4222 = vmatmul.mubr.bf16.gmra.mrb[0].mxu0 %v3187
        %v4223 = vpop.f32.mrb[0].mxu0
        %v4224 = vadd.f32 0.0, %v4223
        %v4225 = vpop.f32.mrb[0].mxu0
        %v4226 = vpop.f32.mrb[0].mxu0
        %v4227 = vadd.f32 0.0, %v4226
        %v4228 = vpop.f32.mrb[0].mxu0
        %4229 = vmatprep.mubr.bf16.mxu0 0
        %4230 = vmatmul.mubr.bf16.gmra.mrb[0].mxu0 %v3188
        %v4231 = vpop.f32.mrb[0].mxu0
        %v4232 = vadd.f32 0.0, %v4231
        %v4233 = vpop.f32.mrb[0].mxu0
        %v4234 = vpop.f32.mrb[0].mxu0
        %v4235 = vadd.f32 0.0, %v4234
        %v4236 = vpop.f32.mrb[0].mxu0
        %4237 = vmatprep.mubr.bf16.mxu0 0
        %4238 = vmatmul.mubr.bf16.gmra.mrb[0].mxu0 %v3189
        %v4239 = vpop.f32.mrb[0].mxu0
        %v4240 = vadd.f32 0.0, %v4239
        %v4241 = vpop.f32.mrb[0].mxu0
        %v4242 = vpop.f32.mrb[0].mxu0
        %v4243 = vadd.f32 0.0, %v4242
        %v4244 = vpop.f32.mrb[0].mxu0
        %4245 = vmatprep.mubr.bf16.mxu0 0
        %4246 = vmatmul.mubr.bf16.gmra.mrb[0].mxu0 %v3190
        %v4247 = vpop.f32.mrb[0].mxu0
        %v4248 = vadd.f32 0.0, %v4247
        %v4249 = vpop.f32.mrb[0].mxu0
        %v4250 = vpop.f32.mrb[0].mxu0
        %v4251 = vadd.f32 0.0, %v4250
        %v4252 = vpop.f32.mrb[0].mxu0
        %4253 = vmatprep.mubr.bf16.mxu0 0
        %4254 = vmatmul.mubr.bf16.gmra.mrb[0].mxu0 %v3191
        %v4255 = vpop.f32.mrb[0].mxu0
        %v4256 = vadd.f32 0.0, %v4255
        %v4257 = vpop.f32.mrb[0].mxu0
        %v4258 = vpop.f32.mrb[0].mxu0
        %v4259 = vadd.f32 0.0, %v4258
        %v4260 = vpop.f32.mrb[0].mxu0
        %4261 = vmatprep.mubr.bf16.mxu0 0
        %4262 = vmatmul.mubr.bf16.gmra.mrb[0].mxu0 %v3192
        %v4263 = vpop.f32.mrb[0].mxu0
        %v4264 = vadd.f32 0.0, %v4263
        %v4265 = vpop.f32.mrb[0].mxu0
        %v4266 = vpop.f32.mrb[0].mxu0
        %v4267 = vadd.f32 0.0, %v4266
        %v4268 = vpop.f32.mrb[0].mxu0
        %4269 = vmatprep.mubr.bf16.mxu0 0
        %4270 = vmatmul.mubr.bf16.gmra.mrb[0].mxu0 %v3193
        %v4271 = vpop.f32.mrb[0].mxu0
        %v4272 = vadd.f32 0.0, %v4271
        %v4273 = vpop.f32.mrb[0].mxu0
        %v4274 = vpop.f32.mrb[0].mxu0
        %v4275 = vadd.f32 0.0, %v4274
        %v4276 = vpop.f32.mrb[0].mxu0
        %4277 = vmatprep.mubr.bf16.mxu0 0
        %4278 = vmatmul.mubr.bf16.gmra.mrb[0].mxu0 %v3194
        %v4279 = vpop.f32.mrb[0].mxu0
        %v4280 = vadd.f32 0.0, %v4279
        %v4281 = vpop.f32.mrb[0].mxu0
        %v4282 = vpop.f32.mrb[0].mxu0
        %v4283 = vadd.f32 0.0, %v4282
        %v4284 = vpop.f32.mrb[0].mxu0
        %4285 = vmatprep.mubr.bf16.mxu0 0
        %4286 = vmatmul.mubr.bf16.gmra.mrb[0].mxu0 %v3195
        %v4287 = vpop.f32.mrb[0].mxu0
        %v4288 = vadd.f32 0.0, %v4287
        %v4289 = vpop.f32.mrb[0].mxu0
        %v4290 = vpop.f32.mrb[0].mxu0
        %v4291 = vadd.f32 0.0, %v4290
        %v4292 = vpop.f32.mrb[0].mxu0
        %4293 = vmatprep.mubr.bf16.mxu0 0
        %4294 = vmatmul.mubr.bf16.gmra.mrb[0].mxu0 %v3196
        %v4295 = vpop.f32.mrb[0].mxu0
        %v4296 = vadd.f32 0.0, %v4295
        %v4297 = vpop.f32.mrb[0].mxu0
        %v4298 = vpop.f32.mrb[0].mxu0
        %v4299 = vadd.f32 0.0, %v4298
        %v4300 = vpop.f32.mrb[0].mxu0
        %4301 = vmatprep.mubr.bf16.mxu0 0
        %4302 = vmatmul.mubr.bf16.gmra.mrb[0].mxu0 %v3197
        %v4303 = vpop.f32.mrb[0].mxu0
        %v4304 = vadd.f32 0.0, %v4303
        %v4305 = vpop.f32.mrb[0].mxu0
        %v4306 = vpop.f32.mrb[0].mxu0
        %v4307 = vadd.f32 0.0, %v4306
        %v4308 = vpop.f32.mrb[0].mxu0
        %4309 = vmatprep.mubr.bf16.mxu0 0
        %4310 = vmatmul.mubr.bf16.gmra.mrb[0].mxu0 %v3198
        %v4311 = vpop.f32.mrb[0].mxu0
        %v4312 = vadd.f32 0.0, %v4311
        %v4313 = vpop.f32.mrb[0].mxu0
        %v4314 = vpop.f32.mrb[0].mxu0
        %v4315 = vadd.f32 0.0, %v4314
        %v4316 = vpop.f32.mrb[0].mxu0
        %4317 = vmatprep.mubr.bf16.mxu0 0
        %4318 = vmatmul.mubr.bf16.gmra.mrb[0].mxu0 %v3199
        %v4319 = vpop.f32.mrb[0].mxu0
        %v4320 = vadd.f32 0.0, %v4319
        %v4321 = vpop.f32.mrb[0].mxu0
        %v4322 = vpop.f32.mrb[0].mxu0
        %v4323 = vadd.f32 0.0, %v4322
        %v4324 = vpop.f32.mrb[0].mxu0
        %4325 = vmatprep.mubr.bf16.mxu0 0
        %4326 = vmatmul.mubr.bf16.gmra.mrb[0].mxu0 %v3200
        %v4327 = vpop.f32.mrb[0].mxu0
        %v4328 = vadd.f32 0.0, %v4327
        %v4329 = vpop.f32.mrb[0].mxu0
        %v4330 = vpop.f32.mrb[0].mxu0
        %v4331 = vadd.f32 0.0, %v4330
        %v4332 = vpop.f32.mrb[0].mxu0
        %4333 = vmatprep.mubr.bf16.mxu0 0
        %4334 = vmatmul.mubr.bf16.gmra.mrb[0].mxu0 %v3201
        %v4335 = vpop.f32.mrb[0].mxu0
        %v4336 = vadd.f32 0.0, %v4335
        %v4337 = vpop.f32.mrb[0].mxu0
        %v4338 = vpop.f32.mrb[0].mxu0
        %v4339 = vadd.f32 0.0, %v4338
        %v4340 = vpop.f32.mrb[0].mxu0
        %4341 = vmatprep.mubr.bf16.mxu0 0
        %4342 = vmatmul.mubr.bf16.gmra.mrb[0].mxu0 %v3253
        %v4343 = vpop.f32.mrb[0].mxu0
        %v4344 = vadd.f32 0.0, %v4343
        %v4345 = vpop.f32.mrb[0].mxu0
        %v4346 = vpop.f32.mrb[0].mxu0
        %v4347 = vadd.f32 0.0, %v4346
        %v4348 = vpop.f32.mrb[0].mxu0
        %4349 = vdwg.mxu0
        %v4366 = vunpack.c.l.b16 %v3237
        %v4367 = vunpack.c.l.b16 %v3238
        %v4368 = vunpack.c.l.b16 %v3239
        %v4369 = vunpack.c.l.b16 %v3240
        %v4370 = vunpack.c.l.b16 %v3241
        %v4371 = vunpack.c.l.b16 %v3242
        %v4372 = vunpack.c.l.b16 %v3243
        %v4373 = vunpack.c.l.b16 %v3244
        %v4374 = vunpack.c.l.b16 %v3245
        %v4375 = vunpack.c.l.b16 %v3246
        %v4376 = vunpack.c.l.b16 %v3247
        %v4377 = vunpack.c.l.b16 %v3248
        %v4378 = vunpack.c.l.b16 %v3249
        %v4379 = vunpack.c.l.b16 %v3250
        %v4380 = vunpack.c.l.b16 %v3251
        %v4381 = vunpack.c.l.b16 %v3252
        %v4382 = vpack.c.b16 %v4367, %v4366
        %v4383 = vpack.c.b16 %v4369, %v4368
        %v4384 = vpack.c.b16 %v4371, %v4370
        %v4385 = vpack.c.b16 %v4373, %v4372
        %v4386 = vpack.c.b16 %v4375, %v4374
        %v4387 = vpack.c.b16 %v4377, %v4376
        %v4388 = vpack.c.b16 %v4379, %v4378
        %v4389 = vpack.c.b16 %v4381, %v4380
        %4398 = vmatprep.subr.bf16.mxu0 0
        %4399 = vmatpush1.bf16.msra.mxu0 %v4382
        %4400 = vmatprep.subr.bf16.mxu0 0
        %4401 = vmatpush1.bf16.msra.mxu0 %v4383
        %4402 = vmatprep.subr.bf16.mxu0 0
        %4403 = vmatpush1.bf16.msra.mxu0 %v4384
        %4404 = vmatprep.subr.bf16.mxu0 0
        %4405 = vmatpush1.bf16.msra.mxu0 %v4385
        %4406 = vmatprep.subr.bf16.mxu0 0
        %4407 = vmatpush1.bf16.msra.mxu0 %v4386
        %4408 = vmatprep.subr.bf16.mxu0 0
        %4409 = vmatpush1.bf16.msra.mxu0 %v4387
        %4410 = vmatprep.subr.bf16.mxu0 0
        %4411 = vmatpush1.bf16.msra.mxu0 %v4388
        %4412 = vmatprep.subr.bf16.mxu0 0
        %4413 = vmatpush1.bf16.msra.mxu0 %v4389
        %4414 = vmatprep.subr.bf16.mxu0 0
        %4415 = vmatpush1.bf16.msra.mxu0 0
        %4416 = vmatprep.subr.bf16.mxu0 0
        %4417 = vmatpush1.bf16.msra.mxu0 0
        %4418 = vmatprep.subr.bf16.mxu0 0
        %4419 = vmatpush1.bf16.msra.mxu0 0
        %4420 = vmatprep.subr.bf16.mxu0 0
        %4421 = vmatpush1.bf16.msra.mxu0 0
        %4422 = vmatprep.subr.bf16.mxu0 0
        %4423 = vmatpush1.bf16.msra.mxu0 0
        %4424 = vmatprep.subr.bf16.mxu0 0
        %4425 = vmatpush1.bf16.msra.mxu0 0
        %4426 = vmatprep.subr.bf16.mxu0 0
        %4427 = vmatpush1.bf16.msra.mxu0 0
        %4428 = vmatprep.subr.bf16.mxu0 0
        %4429 = vmatpush1.bf16.msra.mxu0 0
        %4430 = vmatprep.mubr.bf16.mxu0 0
        %4431 = vmatmul.mubr.bf16.gmra.mrb[0].mxu0 %v3186
        %v4432 = vpop.f32.mrb[0].mxu0
        %v4433 = vadd.f32 %v4224, %v4432
        %v4434 = vpop.f32.mrb[0].mxu0
        %v4435 = vpop.f32.mrb[0].mxu0
        %v4436 = vadd.f32 %v4227, %v4435
        %v4437 = vpop.f32.mrb[0].mxu0
        %4438 = vmatprep.mubr.bf16.mxu0 0
        %4439 = vmatmul.mubr.bf16.gmra.mrb[0].mxu0 %v3187
        %v4440 = vpop.f32.mrb[0].mxu0
        %v4441 = vadd.f32 %v4232, %v4440
        %v4442 = vpop.f32.mrb[0].mxu0
        %v4443 = vpop.f32.mrb[0].mxu0
        %v4444 = vadd.f32 %v4235, %v4443
        %v4445 = vpop.f32.mrb[0].mxu0
        %4446 = vmatprep.mubr.bf16.mxu0 0
        %4447 = vmatmul.mubr.bf16.gmra.mrb[0].mxu0 %v3188
        %v4448 = vpop.f32.mrb[0].mxu0
        %v4449 = vadd.f32 %v4240, %v4448
        %v4450 = vpop.f32.mrb[0].mxu0
        %v4451 = vpop.f32.mrb[0].mxu0
        %v4452 = vadd.f32 %v4243, %v4451
        %v4453 = vpop.f32.mrb[0].mxu0
        %4454 = vmatprep.mubr.bf16.mxu0 0
        %4455 = vmatmul.mubr.bf16.gmra.mrb[0].mxu0 %v3189
        %v4456 = vpop.f32.mrb[0].mxu0
        %v4457 = vadd.f32 %v4248, %v4456
        %v4458 = vpop.f32.mrb[0].mxu0
        %v4459 = vpop.f32.mrb[0].mxu0
        %v4460 = vadd.f32 %v4251, %v4459
        %v4461 = vpop.f32.mrb[0].mxu0
        %4462 = vmatprep.mubr.bf16.mxu0 0
        %4463 = vmatmul.mubr.bf16.gmra.mrb[0].mxu0 %v3190
        %v4464 = vpop.f32.mrb[0].mxu0
        %v4465 = vadd.f32 %v4256, %v4464
        %v4466 = vpop.f32.mrb[0].mxu0
        %v4467 = vpop.f32.mrb[0].mxu0
        %v4468 = vadd.f32 %v4259, %v4467
        %v4469 = vpop.f32.mrb[0].mxu0
        %4470 = vmatprep.mubr.bf16.mxu0 0
        %4471 = vmatmul.mubr.bf16.gmra.mrb[0].mxu0 %v3191
        %v4472 = vpop.f32.mrb[0].mxu0
        %v4473 = vadd.f32 %v4264, %v4472
        %v4474 = vpop.f32.mrb[0].mxu0
        %v4475 = vpop.f32.mrb[0].mxu0
        %v4476 = vadd.f32 %v4267, %v4475
        %v4477 = vpop.f32.mrb[0].mxu0
        %4478 = vmatprep.mubr.bf16.mxu0 0
        %4479 = vmatmul.mubr.bf16.gmra.mrb[0].mxu0 %v3192
        %v4480 = vpop.f32.mrb[0].mxu0
        %v4481 = vadd.f32 %v4272, %v4480
        %v4482 = vpop.f32.mrb[0].mxu0
        %v4483 = vpop.f32.mrb[0].mxu0
        %v4484 = vadd.f32 %v4275, %v4483
        %v4485 = vpop.f32.mrb[0].mxu0
        %4486 = vmatprep.mubr.bf16.mxu0 0
        %4487 = vmatmul.mubr.bf16.gmra.mrb[0].mxu0 %v3193
        %v4488 = vpop.f32.mrb[0].mxu0
        %v4489 = vadd.f32 %v4280, %v4488
        %v4490 = vpop.f32.mrb[0].mxu0
        %v4491 = vpop.f32.mrb[0].mxu0
        %v4492 = vadd.f32 %v4283, %v4491
        %v4493 = vpop.f32.mrb[0].mxu0
        %4494 = vmatprep.mubr.bf16.mxu0 0
        %4495 = vmatmul.mubr.bf16.gmra.mrb[0].mxu0 %v3194
        %v4496 = vpop.f32.mrb[0].mxu0
        %v4497 = vadd.f32 %v4288, %v4496
        %v4498 = vpop.f32.mrb[0].mxu0
        %v4499 = vpop.f32.mrb[0].mxu0
        %v4500 = vadd.f32 %v4291, %v4499
        %v4501 = vpop.f32.mrb[0].mxu0
        %4502 = vmatprep.mubr.bf16.mxu0 0
        %4503 = vmatmul.mubr.bf16.gmra.mrb[0].mxu0 %v3195
        %v4504 = vpop.f32.mrb[0].mxu0
        %v4505 = vadd.f32 %v4296, %v4504
        %v4506 = vpop.f32.mrb[0].mxu0
        %v4507 = vpop.f32.mrb[0].mxu0
        %v4508 = vadd.f32 %v4299, %v4507
        %v4509 = vpop.f32.mrb[0].mxu0
        %4510 = vmatprep.mubr.bf16.mxu0 0
        %4511 = vmatmul.mubr.bf16.gmra.mrb[0].mxu0 %v3196
        %v4512 = vpop.f32.mrb[0].mxu0
        %v4513 = vadd.f32 %v4304, %v4512
        %v4514 = vpop.f32.mrb[0].mxu0
        %v4515 = vpop.f32.mrb[0].mxu0
        %v4516 = vadd.f32 %v4307, %v4515
        %v4517 = vpop.f32.mrb[0].mxu0
        %4518 = vmatprep.mubr.bf16.mxu0 0
        %4519 = vmatmul.mubr.bf16.gmra.mrb[0].mxu0 %v3197
        %v4520 = vpop.f32.mrb[0].mxu0
        %v4521 = vadd.f32 %v4312, %v4520
        %v4522 = vpop.f32.mrb[0].mxu0
        %v4523 = vpop.f32.mrb[0].mxu0
        %v4524 = vadd.f32 %v4315, %v4523
        %v4525 = vpop.f32.mrb[0].mxu0
        %4526 = vmatprep.mubr.bf16.mxu0 0
        %4527 = vmatmul.mubr.bf16.gmra.mrb[0].mxu0 %v3198
        %v4528 = vpop.f32.mrb[0].mxu0
        %v4529 = vadd.f32 %v4320, %v4528
        %v4530 = vpop.f32.mrb[0].mxu0
        %v4531 = vpop.f32.mrb[0].mxu0
        %v4532 = vadd.f32 %v4323, %v4531
        %v4533 = vpop.f32.mrb[0].mxu0
        %4534 = vmatprep.mubr.bf16.mxu0 0
        %4535 = vmatmul.mubr.bf16.gmra.mrb[0].mxu0 %v3199
        %v4536 = vpop.f32.mrb[0].mxu0
        %v4537 = vadd.f32 %v4328, %v4536
        %v4538 = vpop.f32.mrb[0].mxu0
        %v4539 = vpop.f32.mrb[0].mxu0
        %v4540 = vadd.f32 %v4331, %v4539
        %v4541 = vpop.f32.mrb[0].mxu0
        %4542 = vmatprep.mubr.bf16.mxu0 0
        %4543 = vmatmul.mubr.bf16.gmra.mrb[0].mxu0 %v3200
        %v4544 = vpop.f32.mrb[0].mxu0
        %v4545 = vadd.f32 %v4336, %v4544
        %v4546 = vpop.f32.mrb[0].mxu0
        %v4547 = vpop.f32.mrb[0].mxu0
        %v4548 = vadd.f32 %v4339, %v4547
        %v4549 = vpop.f32.mrb[0].mxu0
        %4550 = vmatprep.mubr.bf16.mxu0 0
        %4551 = vmatmul.mubr.bf16.gmra.mrb[0].mxu0 %v3201
        %v4552 = vpop.f32.mrb[0].mxu0
        %v4553 = vadd.f32 %v4344, %v4552
        %v4554 = vpop.f32.mrb[0].mxu0
        %v4555 = vpop.f32.mrb[0].mxu0
        %v4556 = vadd.f32 %v4347, %v4555
        %v4557 = vpop.f32.mrb[0].mxu0
        %4558 = vdwg.mxu0
        %v4559 = vld [vmem:[#allocation2 + $0x10] sm:$0xff]
        %v4560 = vld [vmem:[#allocation2 + $0x18] sm:$0xff]
        %v4561 = vld [vmem:[#allocation2 + $0x20] sm:$0xff]
        %v4562 = vld [vmem:[#allocation2 + $0x28] sm:$0xff]
        %v4563 = vld [vmem:[#allocation2 + $0x30] sm:$0xff]
        %v4564 = vld [vmem:[#allocation2 + $0x38] sm:$0xff]
        %v4565 = vld [vmem:[#allocation2 + $0x40] sm:$0xff]
        %v4566 = vld [vmem:[#allocation2 + $0x48] sm:$0xff]
        %v4567 = vld [vmem:[#allocation2 + $0x50] sm:$0xff]
        %v4568 = vld [vmem:[#allocation2 + $0x58] sm:$0xff]
        %v4569 = vld [vmem:[#allocation2 + $0x60] sm:$0xff]
        %v4570 = vld [vmem:[#allocation2 + $0x68] sm:$0xff]
        %v4571 = vld [vmem:[#allocation2 + $0x70] sm:$0xff]
        %v4572 = vld [vmem:[#allocation2 + $0x78] sm:$0xff]
        %v4573 = vld [vmem:[#allocation2 + $0x80] sm:$0xff]
        %v4574 = vld [vmem:[#allocation2 + $0x88] sm:$0xff]
        %s4575 = scalar_lea.vmem %s1, 960
        %v4576 = vld [vmem:[%s4575] sm:$0xf]
        %v4577 = vld [vmem:[%s4575 + $0x4] sm:$0xf]
        %v4578 = vld [vmem:[%s4575 + $0x8] sm:$0xf]
        %v4579 = vld [vmem:[%s4575 + $0xc] sm:$0xf]
        %v4580 = vld [vmem:[%s4575 + $0x10] sm:$0xf]
        %v4581 = vld [vmem:[%s4575 + $0x14] sm:$0xf]
        %v4582 = vld [vmem:[%s4575 + $0x18] sm:$0xf]
        %v4583 = vld [vmem:[%s4575 + $0x1c] sm:$0xf]
        %v4584 = vld [vmem:[%s4575 + $0x20] sm:$0xf]
        %v4585 = vld [vmem:[%s4575 + $0x24] sm:$0xf]
        %v4586 = vld [vmem:[%s4575 + $0x28] sm:$0xf]
        %v4587 = vld [vmem:[%s4575 + $0x2c] sm:$0xf]
        %v4588 = vld [vmem:[%s4575 + $0x30] sm:$0xf]
        %v4589 = vld [vmem:[%s4575 + $0x34] sm:$0xf]
        %v4590 = vld [vmem:[%s4575 + $0x38] sm:$0xf]
        %v4591 = vld [vmem:[%s4575 + $0x3c] sm:$0xf]
        %v4608 = vunpack.c.l.b16 %v4576
        %v4609 = vunpack.c.l.b16 %v4577
        %v4610 = vunpack.c.l.b16 %v4578
        %v4611 = vunpack.c.l.b16 %v4579
        %v4612 = vunpack.c.l.b16 %v4580
        %v4613 = vunpack.c.l.b16 %v4581
        %v4614 = vunpack.c.l.b16 %v4582
        %v4615 = vunpack.c.l.b16 %v4583
        %v4616 = vunpack.c.l.b16 %v4584
        %v4617 = vunpack.c.l.b16 %v4585
        %v4618 = vunpack.c.l.b16 %v4586
        %v4619 = vunpack.c.l.b16 %v4587
        %v4620 = vunpack.c.l.b16 %v4588
        %v4621 = vunpack.c.l.b16 %v4589
        %v4622 = vunpack.c.l.b16 %v4590
        %v4623 = vunpack.c.l.b16 %v4591
        %v4624 = vpack.c.b16 %v4609, %v4608
        %v4625 = vpack.c.b16 %v4611, %v4610
        %v4626 = vpack.c.b16 %v4613, %v4612
        %v4627 = vpack.c.b16 %v4615, %v4614
        %v4628 = vpack.c.b16 %v4617, %v4616
        %v4629 = vpack.c.b16 %v4619, %v4618
        %v4630 = vpack.c.b16 %v4621, %v4620
        %v4631 = vpack.c.b16 %v4623, %v4622
        %4640 = vmatprep.subr.bf16.mxu0 0
        %4641 = vmatpush1.bf16.msra.mxu0 %v4624
        %4642 = vmatprep.subr.bf16.mxu0 0
        %4643 = vmatpush1.bf16.msra.mxu0 %v4625
        %4644 = vmatprep.subr.bf16.mxu0 0
        %4645 = vmatpush1.bf16.msra.mxu0 %v4626
        %4646 = vmatprep.subr.bf16.mxu0 0
        %4647 = vmatpush1.bf16.msra.mxu0 %v4627
        %4648 = vmatprep.subr.bf16.mxu0 0
        %4649 = vmatpush1.bf16.msra.mxu0 %v4628
        %4650 = vmatprep.subr.bf16.mxu0 0
        %4651 = vmatpush1.bf16.msra.mxu0 %v4629
        %4652 = vmatprep.subr.bf16.mxu0 0
        %4653 = vmatpush1.bf16.msra.mxu0 %v4630
        %4654 = vmatprep.subr.bf16.mxu0 0
        %4655 = vmatpush1.bf16.msra.mxu0 %v4631
        %4656 = vmatprep.subr.bf16.mxu0 0
        %4657 = vmatpush1.bf16.msra.mxu0 0
        %4658 = vmatprep.subr.bf16.mxu0 0
        %4659 = vmatpush1.bf16.msra.mxu0 0
        %4660 = vmatprep.subr.bf16.mxu0 0
        %4661 = vmatpush1.bf16.msra.mxu0 0
        %4662 = vmatprep.subr.bf16.mxu0 0
        %4663 = vmatpush1.bf16.msra.mxu0 0
        %4664 = vmatprep.subr.bf16.mxu0 0
        %4665 = vmatpush1.bf16.msra.mxu0 0
        %4666 = vmatprep.subr.bf16.mxu0 0
        %4667 = vmatpush1.bf16.msra.mxu0 0
        %4668 = vmatprep.subr.bf16.mxu0 0
        %4669 = vmatpush1.bf16.msra.mxu0 0
        %4670 = vmatprep.subr.bf16.mxu0 0
        %4671 = vmatpush1.bf16.msra.mxu0 0
        %4672 = vmatprep.mubr.bf16.mxu0 0
        %4673 = vmatmul.mubr.bf16.gmra.mrb[0].mxu0 %v4559
        %v4674 = vpop.f32.mrb[0].mxu0
        %v4675 = vadd.f32 0.0, %v4674
        %v4676 = vpop.f32.mrb[0].mxu0
        %v4677 = vpop.f32.mrb[0].mxu0
        %v4678 = vadd.f32 0.0, %v4677
        %v4679 = vpop.f32.mrb[0].mxu0
        %4680 = vmatprep.mubr.bf16.mxu0 0
        %4681 = vmatmul.mubr.bf16.gmra.mrb[0].mxu0 %v4560
        %v4682 = vpop.f32.mrb[0].mxu0
        %v4683 = vadd.f32 0.0, %v4682
        %v4684 = vpop.f32.mrb[0].mxu0
        %v4685 = vpop.f32.mrb[0].mxu0
        %v4686 = vadd.f32 0.0, %v4685
        %v4687 = vpop.f32.mrb[0].mxu0
        %4688 = vmatprep.mubr.bf16.mxu0 0
        %4689 = vmatmul.mubr.bf16.gmra.mrb[0].mxu0 %v4561
        %v4690 = vpop.f32.mrb[0].mxu0
        %v4691 = vadd.f32 0.0, %v4690
        %v4692 = vpop.f32.mrb[0].mxu0
        %v4693 = vpop.f32.mrb[0].mxu0
        %v4694 = vadd.f32 0.0, %v4693
        %v4695 = vpop.f32.mrb[0].mxu0
        %4696 = vmatprep.mubr.bf16.mxu0 0
        %4697 = vmatmul.mubr.bf16.gmra.mrb[0].mxu0 %v4562
        %v4698 = vpop.f32.mrb[0].mxu0
        %v4699 = vadd.f32 0.0, %v4698
        %v4700 = vpop.f32.mrb[0].mxu0
        %v4701 = vpop.f32.mrb[0].mxu0
        %v4702 = vadd.f32 0.0, %v4701
        %v4703 = vpop.f32.mrb[0].mxu0
        %4704 = vmatprep.mubr.bf16.mxu0 0
        %4705 = vmatmul.mubr.bf16.gmra.mrb[0].mxu0 %v4563
        %v4706 = vpop.f32.mrb[0].mxu0
        %v4707 = vadd.f32 0.0, %v4706
        %v4708 = vpop.f32.mrb[0].mxu0
        %v4709 = vpop.f32.mrb[0].mxu0
        %v4710 = vadd.f32 0.0, %v4709
        %v4711 = vpop.f32.mrb[0].mxu0
        %4712 = vmatprep.mubr.bf16.mxu0 0
        %4713 = vmatmul.mubr.bf16.gmra.mrb[0].mxu0 %v4564
        %v4714 = vpop.f32.mrb[0].mxu0
        %v4715 = vadd.f32 0.0, %v4714
        %v4716 = vpop.f32.mrb[0].mxu0
        %v4717 = vpop.f32.mrb[0].mxu0
        %v4718 = vadd.f32 0.0, %v4717
        %v4719 = vpop.f32.mrb[0].mxu0
        %4720 = vmatprep.mubr.bf16.mxu0 0
        %4721 = vmatmul.mubr.bf16.gmra.mrb[0].mxu0 %v4565
        %v4722 = vpop.f32.mrb[0].mxu0
        %v4723 = vadd.f32 0.0, %v4722
        %v4724 = vpop.f32.mrb[0].mxu0
        %v4725 = vpop.f32.mrb[0].mxu0
        %v4726 = vadd.f32 0.0, %v4725
        %v4727 = vpop.f32.mrb[0].mxu0
        %4728 = vmatprep.mubr.bf16.mxu0 0
        %4729 = vmatmul.mubr.bf16.gmra.mrb[0].mxu0 %v4566
        %v4730 = vpop.f32.mrb[0].mxu0
        %v4731 = vadd.f32 0.0, %v4730
        %v4732 = vpop.f32.mrb[0].mxu0
        %v4733 = vpop.f32.mrb[0].mxu0
        %v4734 = vadd.f32 0.0, %v4733
        %v4735 = vpop.f32.mrb[0].mxu0
        %4736 = vmatprep.mubr.bf16.mxu0 0
        %4737 = vmatmul.mubr.bf16.gmra.mrb[0].mxu0 %v4567
        %v4738 = vpop.f32.mrb[0].mxu0
        %v4739 = vadd.f32 0.0, %v4738
        %v4740 = vpop.f32.mrb[0].mxu0
        %v4741 = vpop.f32.mrb[0].mxu0
        %v4742 = vadd.f32 0.0, %v4741
        %v4743 = vpop.f32.mrb[0].mxu0
        %4744 = vmatprep.mubr.bf16.mxu0 0
        %4745 = vmatmul.mubr.bf16.gmra.mrb[0].mxu0 %v4568
        %v4746 = vpop.f32.mrb[0].mxu0
        %v4747 = vadd.f32 0.0, %v4746
        %v4748 = vpop.f32.mrb[0].mxu0
        %v4749 = vpop.f32.mrb[0].mxu0
        %v4750 = vadd.f32 0.0, %v4749
        %v4751 = vpop.f32.mrb[0].mxu0
        %4752 = vmatprep.mubr.bf16.mxu0 0
        %4753 = vmatmul.mubr.bf16.gmra.mrb[0].mxu0 %v4569
        %v4754 = vpop.f32.mrb[0].mxu0
        %v4755 = vadd.f32 0.0, %v4754
        %v4756 = vpop.f32.mrb[0].mxu0
        %v4757 = vpop.f32.mrb[0].mxu0
        %v4758 = vadd.f32 0.0, %v4757
        %v4759 = vpop.f32.mrb[0].mxu0
        %4760 = vmatprep.mubr.bf16.mxu0 0
        %4761 = vmatmul.mubr.bf16.gmra.mrb[0].mxu0 %v4570
        %v4762 = vpop.f32.mrb[0].mxu0
        %v4763 = vadd.f32 0.0, %v4762
        %v4764 = vpop.f32.mrb[0].mxu0
        %v4765 = vpop.f32.mrb[0].mxu0
        %v4766 = vadd.f32 0.0, %v4765
        %v4767 = vpop.f32.mrb[0].mxu0
        %4768 = vmatprep.mubr.bf16.mxu0 0
        %4769 = vmatmul.mubr.bf16.gmra.mrb[0].mxu0 %v4571
        %v4770 = vpop.f32.mrb[0].mxu0
        %v4771 = vadd.f32 0.0, %v4770
        %v4772 = vpop.f32.mrb[0].mxu0
        %v4773 = vpop.f32.mrb[0].mxu0
        %v4774 = vadd.f32 0.0, %v4773
        %v4775 = vpop.f32.mrb[0].mxu0
        %4776 = vmatprep.mubr.bf16.mxu0 0
        %4777 = vmatmul.mubr.bf16.gmra.mrb[0].mxu0 %v4572
        %v4778 = vpop.f32.mrb[0].mxu0
        %v4779 = vadd.f32 0.0, %v4778
        %v4780 = vpop.f32.mrb[0].mxu0
        %v4781 = vpop.f32.mrb[0].mxu0
        %v4782 = vadd.f32 0.0, %v4781
        %v4783 = vpop.f32.mrb[0].mxu0
        %4784 = vmatprep.mubr.bf16.mxu0 0
        %4785 = vmatmul.mubr.bf16.gmra.mrb[0].mxu0 %v4573
        %v4786 = vpop.f32.mrb[0].mxu0
        %v4787 = vadd.f32 0.0, %v4786
        %v4788 = vpop.f32.mrb[0].mxu0
        %v4789 = vpop.f32.mrb[0].mxu0
        %v4790 = vadd.f32 0.0, %v4789
        %v4791 = vpop.f32.mrb[0].mxu0
        %4792 = vmatprep.mubr.bf16.mxu0 0
        %4793 = vmatmul.mubr.bf16.gmra.mrb[0].mxu0 %v4574
        %v4794 = vpop.f32.mrb[0].mxu0
        %v4795 = vadd.f32 0.0, %v4794
        %v4796 = vpop.f32.mrb[0].mxu0
        %v4797 = vpop.f32.mrb[0].mxu0
        %v4798 = vadd.f32 0.0, %v4797
        %v4799 = vpop.f32.mrb[0].mxu0
        %4800 = vdwg.mxu0
        %v4801 = vadd.f32 %v3563, %v4675
        %v4802 = vadd.f32 %v3566, %v4678
        %v4803 = vadd.f32 %v3571, %v4683
        %v4804 = vadd.f32 %v3574, %v4686
        %v4805 = vadd.f32 %v3579, %v4691
        %v4806 = vadd.f32 %v3582, %v4694
        %v4807 = vadd.f32 %v3587, %v4699
        %v4808 = vadd.f32 %v3590, %v4702
        %v4809 = vadd.f32 %v3595, %v4707
        %v4810 = vadd.f32 %v3598, %v4710
        %v4811 = vadd.f32 %v3603, %v4715
        %v4812 = vadd.f32 %v3606, %v4718
        %v4813 = vadd.f32 %v3611, %v4723
        %v4814 = vadd.f32 %v3614, %v4726
        %v4815 = vadd.f32 %v3619, %v4731
        %v4816 = vadd.f32 %v3622, %v4734
        %v4817 = vadd.f32 %v3627, %v4739
        %v4818 = vadd.f32 %v3630, %v4742
        %v4819 = vadd.f32 %v3635, %v4747
        %v4820 = vadd.f32 %v3638, %v4750
        %v4821 = vadd.f32 %v3643, %v4755
        %v4822 = vadd.f32 %v3646, %v4758
        %v4823 = vadd.f32 %v3651, %v4763
        %v4824 = vadd.f32 %v3654, %v4766
        %v4825 = vadd.f32 %v3659, %v4771
        %v4826 = vadd.f32 %v3662, %v4774
        %v4827 = vadd.f32 %v3667, %v4779
        %v4828 = vadd.f32 %v3670, %v4782
        %v4829 = vadd.f32 %v3675, %v4787
        %v4830 = vadd.f32 %v3678, %v4790
        %v4831 = vadd.f32 %v3683, %v4795
        %v4832 = vadd.f32 %v3686, %v4798
        %s4833 = scalar_lea.vmem %s1, 1024
        %v4834 = vld [vmem:[%s4833] sm:$0xf]
        %v4835 = vld [vmem:[%s4833 + $0x4] sm:$0xf]
        %v4836 = vld [vmem:[%s4833 + $0x8] sm:$0xf]
        %v4837 = vld [vmem:[%s4833 + $0xc] sm:$0xf]
        %v4838 = vld [vmem:[%s4833 + $0x10] sm:$0xf]
        %v4839 = vld [vmem:[%s4833 + $0x14] sm:$0xf]
        %v4840 = vld [vmem:[%s4833 + $0x18] sm:$0xf]
        %v4841 = vld [vmem:[%s4833 + $0x1c] sm:$0xf]
        %v4842 = vld [vmem:[%s4833 + $0x20] sm:$0xf]
        %v4843 = vld [vmem:[%s4833 + $0x24] sm:$0xf]
        %v4844 = vld [vmem:[%s4833 + $0x28] sm:$0xf]
        %v4845 = vld [vmem:[%s4833 + $0x2c] sm:$0xf]
        %v4846 = vld [vmem:[%s4833 + $0x30] sm:$0xf]
        %v4847 = vld [vmem:[%s4833 + $0x34] sm:$0xf]
        %v4848 = vld [vmem:[%s4833 + $0x38] sm:$0xf]
        %v4849 = vld [vmem:[%s4833 + $0x3c] sm:$0xf]
        %v4866 = vunpack.c.l.b16 %v4834
        %v4867 = vunpack.c.l.b16 %v4835
        %v4868 = vunpack.c.l.b16 %v4836
        %v4869 = vunpack.c.l.b16 %v4837
        %v4870 = vunpack.c.l.b16 %v4838
        %v4871 = vunpack.c.l.b16 %v4839
        %v4872 = vunpack.c.l.b16 %v4840
        %v4873 = vunpack.c.l.b16 %v4841
        %v4874 = vunpack.c.l.b16 %v4842
        %v4875 = vunpack.c.l.b16 %v4843
        %v4876 = vunpack.c.l.b16 %v4844
        %v4877 = vunpack.c.l.b16 %v4845
        %v4878 = vunpack.c.l.b16 %v4846
        %v4879 = vunpack.c.l.b16 %v4847
        %v4880 = vunpack.c.l.b16 %v4848
        %v4881 = vunpack.c.l.b16 %v4849
        %v4882 = vpack.c.b16 %v4867, %v4866
        %v4883 = vpack.c.b16 %v4869, %v4868
        %v4884 = vpack.c.b16 %v4871, %v4870
        %v4885 = vpack.c.b16 %v4873, %v4872
        %v4886 = vpack.c.b16 %v4875, %v4874
        %v4887 = vpack.c.b16 %v4877, %v4876
        %v4888 = vpack.c.b16 %v4879, %v4878
        %v4889 = vpack.c.b16 %v4881, %v4880
        %4898 = vmatprep.subr.bf16.mxu0 0
        %4899 = vmatpush1.bf16.msra.mxu0 %v4882
        %4900 = vmatprep.subr.bf16.mxu0 0
        %4901 = vmatpush1.bf16.msra.mxu0 %v4883
        %4902 = vmatprep.subr.bf16.mxu0 0
        %4903 = vmatpush1.bf16.msra.mxu0 %v4884
        %4904 = vmatprep.subr.bf16.mxu0 0
        %4905 = vmatpush1.bf16.msra.mxu0 %v4885
        %4906 = vmatprep.subr.bf16.mxu0 0
        %4907 = vmatpush1.bf16.msra.mxu0 %v4886
        %4908 = vmatprep.subr.bf16.mxu0 0
        %4909 = vmatpush1.bf16.msra.mxu0 %v4887
        %4910 = vmatprep.subr.bf16.mxu0 0
        %4911 = vmatpush1.bf16.msra.mxu0 %v4888
        %4912 = vmatprep.subr.bf16.mxu0 0
        %4913 = vmatpush1.bf16.msra.mxu0 %v4889
        %4914 = vmatprep.subr.bf16.mxu0 0
        %4915 = vmatpush1.bf16.msra.mxu0 0
        %4916 = vmatprep.subr.bf16.mxu0 0
        %4917 = vmatpush1.bf16.msra.mxu0 0
        %4918 = vmatprep.subr.bf16.mxu0 0
        %4919 = vmatpush1.bf16.msra.mxu0 0
        %4920 = vmatprep.subr.bf16.mxu0 0
        %4921 = vmatpush1.bf16.msra.mxu0 0
        %4922 = vmatprep.subr.bf16.mxu0 0
        %4923 = vmatpush1.bf16.msra.mxu0 0
        %4924 = vmatprep.subr.bf16.mxu0 0
        %4925 = vmatpush1.bf16.msra.mxu0 0
        %4926 = vmatprep.subr.bf16.mxu0 0
        %4927 = vmatpush1.bf16.msra.mxu0 0
        %4928 = vmatprep.subr.bf16.mxu0 0
        %4929 = vmatpush1.bf16.msra.mxu0 0
        %4930 = vmatprep.mubr.bf16.mxu0 0
        %4931 = vmatmul.mubr.bf16.gmra.mrb[0].mxu0 %v4559
        %v4932 = vpop.f32.mrb[0].mxu0
        %v4933 = vadd.f32 0.0, %v4932
        %v4934 = vpop.f32.mrb[0].mxu0
        %v4935 = vpop.f32.mrb[0].mxu0
        %v4936 = vadd.f32 0.0, %v4935
        %v4937 = vpop.f32.mrb[0].mxu0
        %4938 = vmatprep.mubr.bf16.mxu0 0
        %4939 = vmatmul.mubr.bf16.gmra.mrb[0].mxu0 %v4560
        %v4940 = vpop.f32.mrb[0].mxu0
        %v4941 = vadd.f32 0.0, %v4940
        %v4942 = vpop.f32.mrb[0].mxu0
        %v4943 = vpop.f32.mrb[0].mxu0
        %v4944 = vadd.f32 0.0, %v4943
        %v4945 = vpop.f32.mrb[0].mxu0
        %4946 = vmatprep.mubr.bf16.mxu0 0
        %4947 = vmatmul.mubr.bf16.gmra.mrb[0].mxu0 %v4561
        %v4948 = vpop.f32.mrb[0].mxu0
        %v4949 = vadd.f32 0.0, %v4948
        %v4950 = vpop.f32.mrb[0].mxu0
        %v4951 = vpop.f32.mrb[0].mxu0
        %v4952 = vadd.f32 0.0, %v4951
        %v4953 = vpop.f32.mrb[0].mxu0
        %4954 = vmatprep.mubr.bf16.mxu0 0
        %4955 = vmatmul.mubr.bf16.gmra.mrb[0].mxu0 %v4562
        %v4956 = vpop.f32.mrb[0].mxu0
        %v4957 = vadd.f32 0.0, %v4956
        %v4958 = vpop.f32.mrb[0].mxu0
        %v4959 = vpop.f32.mrb[0].mxu0
        %v4960 = vadd.f32 0.0, %v4959
        %v4961 = vpop.f32.mrb[0].mxu0
        %4962 = vmatprep.mubr.bf16.mxu0 0
        %4963 = vmatmul.mubr.bf16.gmra.mrb[0].mxu0 %v4563
        %v4964 = vpop.f32.mrb[0].mxu0
        %v4965 = vadd.f32 0.0, %v4964
        %v4966 = vpop.f32.mrb[0].mxu0
        %v4967 = vpop.f32.mrb[0].mxu0
        %v4968 = vadd.f32 0.0, %v4967
        %v4969 = vpop.f32.mrb[0].mxu0
        %4970 = vmatprep.mubr.bf16.mxu0 0
        %4971 = vmatmul.mubr.bf16.gmra.mrb[0].mxu0 %v4564
        %v4972 = vpop.f32.mrb[0].mxu0
        %v4973 = vadd.f32 0.0, %v4972
        %v4974 = vpop.f32.mrb[0].mxu0
        %v4975 = vpop.f32.mrb[0].mxu0
        %v4976 = vadd.f32 0.0, %v4975
        %v4977 = vpop.f32.mrb[0].mxu0
        %4978 = vmatprep.mubr.bf16.mxu0 0
        %4979 = vmatmul.mubr.bf16.gmra.mrb[0].mxu0 %v4565
        %v4980 = vpop.f32.mrb[0].mxu0
        %v4981 = vadd.f32 0.0, %v4980
        %v4982 = vpop.f32.mrb[0].mxu0
        %v4983 = vpop.f32.mrb[0].mxu0
        %v4984 = vadd.f32 0.0, %v4983
        %v4985 = vpop.f32.mrb[0].mxu0
        %4986 = vmatprep.mubr.bf16.mxu0 0
        %4987 = vmatmul.mubr.bf16.gmra.mrb[0].mxu0 %v4566
        %v4988 = vpop.f32.mrb[0].mxu0
        %v4989 = vadd.f32 0.0, %v4988
        %v4990 = vpop.f32.mrb[0].mxu0
        %v4991 = vpop.f32.mrb[0].mxu0
        %v4992 = vadd.f32 0.0, %v4991
        %v4993 = vpop.f32.mrb[0].mxu0
        %4994 = vmatprep.mubr.bf16.mxu0 0
        %4995 = vmatmul.mubr.bf16.gmra.mrb[0].mxu0 %v4567
        %v4996 = vpop.f32.mrb[0].mxu0
        %v4997 = vadd.f32 0.0, %v4996
        %v4998 = vpop.f32.mrb[0].mxu0
        %v4999 = vpop.f32.mrb[0].mxu0
        %v5000 = vadd.f32 0.0, %v4999
        %v5001 = vpop.f32.mrb[0].mxu0
        %5002 = vmatprep.mubr.bf16.mxu0 0
        %5003 = vmatmul.mubr.bf16.gmra.mrb[0].mxu0 %v4568
        %v5004 = vpop.f32.mrb[0].mxu0
        %v5005 = vadd.f32 0.0, %v5004
        %v5006 = vpop.f32.mrb[0].mxu0
        %v5007 = vpop.f32.mrb[0].mxu0
        %v5008 = vadd.f32 0.0, %v5007
        %v5009 = vpop.f32.mrb[0].mxu0
        %5010 = vmatprep.mubr.bf16.mxu0 0
        %5011 = vmatmul.mubr.bf16.gmra.mrb[0].mxu0 %v4569
        %v5012 = vpop.f32.mrb[0].mxu0
        %v5013 = vadd.f32 0.0, %v5012
        %v5014 = vpop.f32.mrb[0].mxu0
        %v5015 = vpop.f32.mrb[0].mxu0
        %v5016 = vadd.f32 0.0, %v5015
        %v5017 = vpop.f32.mrb[0].mxu0
        %5018 = vmatprep.mubr.bf16.mxu0 0
        %5019 = vmatmul.mubr.bf16.gmra.mrb[0].mxu0 %v4570
        %v5020 = vpop.f32.mrb[0].mxu0
        %v5021 = vadd.f32 0.0, %v5020
        %v5022 = vpop.f32.mrb[0].mxu0
        %v5023 = vpop.f32.mrb[0].mxu0
        %v5024 = vadd.f32 0.0, %v5023
        %v5025 = vpop.f32.mrb[0].mxu0
        %5026 = vmatprep.mubr.bf16.mxu0 0
        %5027 = vmatmul.mubr.bf16.gmra.mrb[0].mxu0 %v4571
        %v5028 = vpop.f32.mrb[0].mxu0
        %v5029 = vadd.f32 0.0, %v5028
        %v5030 = vpop.f32.mrb[0].mxu0
        %v5031 = vpop.f32.mrb[0].mxu0
        %v5032 = vadd.f32 0.0, %v5031
        %v5033 = vpop.f32.mrb[0].mxu0
        %5034 = vmatprep.mubr.bf16.mxu0 0
        %5035 = vmatmul.mubr.bf16.gmra.mrb[0].mxu0 %v4572
        %v5036 = vpop.f32.mrb[0].mxu0
        %v5037 = vadd.f32 0.0, %v5036
        %v5038 = vpop.f32.mrb[0].mxu0
        %v5039 = vpop.f32.mrb[0].mxu0
        %v5040 = vadd.f32 0.0, %v5039
        %v5041 = vpop.f32.mrb[0].mxu0
        %5042 = vmatprep.mubr.bf16.mxu0 0
        %5043 = vmatmul.mubr.bf16.gmra.mrb[0].mxu0 %v4573
        %v5044 = vpop.f32.mrb[0].mxu0
        %v5045 = vadd.f32 0.0, %v5044
        %v5046 = vpop.f32.mrb[0].mxu0
        %v5047 = vpop.f32.mrb[0].mxu0
        %v5048 = vadd.f32 0.0, %v5047
        %v5049 = vpop.f32.mrb[0].mxu0
        %5050 = vmatprep.mubr.bf16.mxu0 0
        %5051 = vmatmul.mubr.bf16.gmra.mrb[0].mxu0 %v4574
        %v5052 = vpop.f32.mrb[0].mxu0
        %v5053 = vadd.f32 0.0, %v5052
        %v5054 = vpop.f32.mrb[0].mxu0
        %v5055 = vpop.f32.mrb[0].mxu0
        %v5056 = vadd.f32 0.0, %v5055
        %v5057 = vpop.f32.mrb[0].mxu0
        %5058 = vdwg.mxu0
        %v5059 = vadd.f32 %v3998, %v4933
        %v5060 = vadd.f32 %v4001, %v4936
        %v5061 = vadd.f32 %v4006, %v4941
        %v5062 = vadd.f32 %v4009, %v4944
        %v5063 = vadd.f32 %v4014, %v4949
        %v5064 = vadd.f32 %v4017, %v4952
        %v5065 = vadd.f32 %v4022, %v4957
        %v5066 = vadd.f32 %v4025, %v4960
        %v5067 = vadd.f32 %v4030, %v4965
        %v5068 = vadd.f32 %v4033, %v4968
        %v5069 = vadd.f32 %v4038, %v4973
        %v5070 = vadd.f32 %v4041, %v4976
        %v5071 = vadd.f32 %v4046, %v4981
        %v5072 = vadd.f32 %v4049, %v4984
        %v5073 = vadd.f32 %v4054, %v4989
        %v5074 = vadd.f32 %v4057, %v4992
        %v5075 = vadd.f32 %v4062, %v4997
        %v5076 = vadd.f32 %v4065, %v5000
        %v5077 = vadd.f32 %v4070, %v5005
        %v5078 = vadd.f32 %v4073, %v5008
        %v5079 = vadd.f32 %v4078, %v5013
        %v5080 = vadd.f32 %v4081, %v5016
        %v5081 = vadd.f32 %v4086, %v5021
        %v5082 = vadd.f32 %v4089, %v5024
        %v5083 = vadd.f32 %v4094, %v5029
        %v5084 = vadd.f32 %v4097, %v5032
        %v5085 = vadd.f32 %v4102, %v5037
        %v5086 = vadd.f32 %v4105, %v5040
        %v5087 = vadd.f32 %v4110, %v5045
        %v5088 = vadd.f32 %v4113, %v5048
        %v5089 = vadd.f32 %v4118, %v5053
        %v5090 = vadd.f32 %v4121, %v5056
        %s5091 = scalar_lea.vmem %s1, 1088
        %v5092 = vld [vmem:[%s5091] sm:$0xf]
        %v5093 = vld [vmem:[%s5091 + $0x4] sm:$0xf]
        %v5094 = vld [vmem:[%s5091 + $0x8] sm:$0xf]
        %v5095 = vld [vmem:[%s5091 + $0xc] sm:$0xf]
        %v5096 = vld [vmem:[%s5091 + $0x10] sm:$0xf]
        %v5097 = vld [vmem:[%s5091 + $0x14] sm:$0xf]
        %v5098 = vld [vmem:[%s5091 + $0x18] sm:$0xf]
        %v5099 = vld [vmem:[%s5091 + $0x1c] sm:$0xf]
        %v5100 = vld [vmem:[%s5091 + $0x20] sm:$0xf]
        %v5101 = vld [vmem:[%s5091 + $0x24] sm:$0xf]
        %v5102 = vld [vmem:[%s5091 + $0x28] sm:$0xf]
        %v5103 = vld [vmem:[%s5091 + $0x2c] sm:$0xf]
        %v5104 = vld [vmem:[%s5091 + $0x30] sm:$0xf]
        %v5105 = vld [vmem:[%s5091 + $0x34] sm:$0xf]
        %v5106 = vld [vmem:[%s5091 + $0x38] sm:$0xf]
        %v5107 = vld [vmem:[%s5091 + $0x3c] sm:$0xf]
        %v5124 = vunpack.c.l.b16 %v5092
        %v5125 = vunpack.c.l.b16 %v5093
        %v5126 = vunpack.c.l.b16 %v5094
        %v5127 = vunpack.c.l.b16 %v5095
        %v5128 = vunpack.c.l.b16 %v5096
        %v5129 = vunpack.c.l.b16 %v5097
        %v5130 = vunpack.c.l.b16 %v5098
        %v5131 = vunpack.c.l.b16 %v5099
        %v5132 = vunpack.c.l.b16 %v5100
        %v5133 = vunpack.c.l.b16 %v5101
        %v5134 = vunpack.c.l.b16 %v5102
        %v5135 = vunpack.c.l.b16 %v5103
        %v5136 = vunpack.c.l.b16 %v5104
        %v5137 = vunpack.c.l.b16 %v5105
        %v5138 = vunpack.c.l.b16 %v5106
        %v5139 = vunpack.c.l.b16 %v5107
        %v5140 = vpack.c.b16 %v5125, %v5124
        %v5141 = vpack.c.b16 %v5127, %v5126
        %v5142 = vpack.c.b16 %v5129, %v5128
        %v5143 = vpack.c.b16 %v5131, %v5130
        %v5144 = vpack.c.b16 %v5133, %v5132
        %v5145 = vpack.c.b16 %v5135, %v5134
        %v5146 = vpack.c.b16 %v5137, %v5136
        %v5147 = vpack.c.b16 %v5139, %v5138
        %5156 = vmatprep.subr.bf16.mxu0 0
        %5157 = vmatpush1.bf16.msra.mxu0 %v5140
        %5158 = vmatprep.subr.bf16.mxu0 0
        %5159 = vmatpush1.bf16.msra.mxu0 %v5141
        %5160 = vmatprep.subr.bf16.mxu0 0
        %5161 = vmatpush1.bf16.msra.mxu0 %v5142
        %5162 = vmatprep.subr.bf16.mxu0 0
        %5163 = vmatpush1.bf16.msra.mxu0 %v5143
        %5164 = vmatprep.subr.bf16.mxu0 0
        %5165 = vmatpush1.bf16.msra.mxu0 %v5144
        %5166 = vmatprep.subr.bf16.mxu0 0
        %5167 = vmatpush1.bf16.msra.mxu0 %v5145
        %5168 = vmatprep.subr.bf16.mxu0 0
        %5169 = vmatpush1.bf16.msra.mxu0 %v5146
        %5170 = vmatprep.subr.bf16.mxu0 0
        %5171 = vmatpush1.bf16.msra.mxu0 %v5147
        %5172 = vmatprep.subr.bf16.mxu0 0
        %5173 = vmatpush1.bf16.msra.mxu0 0
        %5174 = vmatprep.subr.bf16.mxu0 0
        %5175 = vmatpush1.bf16.msra.mxu0 0
        %5176 = vmatprep.subr.bf16.mxu0 0
        %5177 = vmatpush1.bf16.msra.mxu0 0
        %5178 = vmatprep.subr.bf16.mxu0 0
        %5179 = vmatpush1.bf16.msra.mxu0 0
        %5180 = vmatprep.subr.bf16.mxu0 0
        %5181 = vmatpush1.bf16.msra.mxu0 0
        %5182 = vmatprep.subr.bf16.mxu0 0
        %5183 = vmatpush1.bf16.msra.mxu0 0
        %5184 = vmatprep.subr.bf16.mxu0 0
        %5185 = vmatpush1.bf16.msra.mxu0 0
        %5186 = vmatprep.subr.bf16.mxu0 0
        %5187 = vmatpush1.bf16.msra.mxu0 0
        %5188 = vmatprep.mubr.bf16.mxu0 0
        %5189 = vmatmul.mubr.bf16.gmra.mrb[0].mxu0 %v4559
        %v5190 = vpop.f32.mrb[0].mxu0
        %v5191 = vadd.f32 0.0, %v5190
        %v5192 = vpop.f32.mrb[0].mxu0
        %v5193 = vpop.f32.mrb[0].mxu0
        %v5194 = vadd.f32 0.0, %v5193
        %v5195 = vpop.f32.mrb[0].mxu0
        %5196 = vmatprep.mubr.bf16.mxu0 0
        %5197 = vmatmul.mubr.bf16.gmra.mrb[0].mxu0 %v4560
        %v5198 = vpop.f32.mrb[0].mxu0
        %v5199 = vadd.f32 0.0, %v5198
        %v5200 = vpop.f32.mrb[0].mxu0
        %v5201 = vpop.f32.mrb[0].mxu0
        %v5202 = vadd.f32 0.0, %v5201
        %v5203 = vpop.f32.mrb[0].mxu0
        %5204 = vmatprep.mubr.bf16.mxu0 0
        %5205 = vmatmul.mubr.bf16.gmra.mrb[0].mxu0 %v4561
        %v5206 = vpop.f32.mrb[0].mxu0
        %v5207 = vadd.f32 0.0, %v5206
        %v5208 = vpop.f32.mrb[0].mxu0
        %v5209 = vpop.f32.mrb[0].mxu0
        %v5210 = vadd.f32 0.0, %v5209
        %v5211 = vpop.f32.mrb[0].mxu0
        %5212 = vmatprep.mubr.bf16.mxu0 0
        %5213 = vmatmul.mubr.bf16.gmra.mrb[0].mxu0 %v4562
        %v5214 = vpop.f32.mrb[0].mxu0
        %v5215 = vadd.f32 0.0, %v5214
        %v5216 = vpop.f32.mrb[0].mxu0
        %v5217 = vpop.f32.mrb[0].mxu0
        %v5218 = vadd.f32 0.0, %v5217
        %v5219 = vpop.f32.mrb[0].mxu0
        %5220 = vmatprep.mubr.bf16.mxu0 0
        %5221 = vmatmul.mubr.bf16.gmra.mrb[0].mxu0 %v4563
        %v5222 = vpop.f32.mrb[0].mxu0
        %v5223 = vadd.f32 0.0, %v5222
        %v5224 = vpop.f32.mrb[0].mxu0
        %v5225 = vpop.f32.mrb[0].mxu0
        %v5226 = vadd.f32 0.0, %v5225
        %v5227 = vpop.f32.mrb[0].mxu0
        %5228 = vmatprep.mubr.bf16.mxu0 0
        %5229 = vmatmul.mubr.bf16.gmra.mrb[0].mxu0 %v4564
        %v5230 = vpop.f32.mrb[0].mxu0
        %v5231 = vadd.f32 0.0, %v5230
        %v5232 = vpop.f32.mrb[0].mxu0
        %v5233 = vpop.f32.mrb[0].mxu0
        %v5234 = vadd.f32 0.0, %v5233
        %v5235 = vpop.f32.mrb[0].mxu0
        %5236 = vmatprep.mubr.bf16.mxu0 0
        %5237 = vmatmul.mubr.bf16.gmra.mrb[0].mxu0 %v4565
        %v5238 = vpop.f32.mrb[0].mxu0
        %v5239 = vadd.f32 0.0, %v5238
        %v5240 = vpop.f32.mrb[0].mxu0
        %v5241 = vpop.f32.mrb[0].mxu0
        %v5242 = vadd.f32 0.0, %v5241
        %v5243 = vpop.f32.mrb[0].mxu0
        %5244 = vmatprep.mubr.bf16.mxu0 0
        %5245 = vmatmul.mubr.bf16.gmra.mrb[0].mxu0 %v4566
        %v5246 = vpop.f32.mrb[0].mxu0
        %v5247 = vadd.f32 0.0, %v5246
        %v5248 = vpop.f32.mrb[0].mxu0
        %v5249 = vpop.f32.mrb[0].mxu0
        %v5250 = vadd.f32 0.0, %v5249
        %v5251 = vpop.f32.mrb[0].mxu0
        %5252 = vmatprep.mubr.bf16.mxu0 0
        %5253 = vmatmul.mubr.bf16.gmra.mrb[0].mxu0 %v4567
        %v5254 = vpop.f32.mrb[0].mxu0
        %v5255 = vadd.f32 0.0, %v5254
        %v5256 = vpop.f32.mrb[0].mxu0
        %v5257 = vpop.f32.mrb[0].mxu0
        %v5258 = vadd.f32 0.0, %v5257
        %v5259 = vpop.f32.mrb[0].mxu0
        %5260 = vmatprep.mubr.bf16.mxu0 0
        %5261 = vmatmul.mubr.bf16.gmra.mrb[0].mxu0 %v4568
        %v5262 = vpop.f32.mrb[0].mxu0
        %v5263 = vadd.f32 0.0, %v5262
        %v5264 = vpop.f32.mrb[0].mxu0
        %v5265 = vpop.f32.mrb[0].mxu0
        %v5266 = vadd.f32 0.0, %v5265
        %v5267 = vpop.f32.mrb[0].mxu0
        %5268 = vmatprep.mubr.bf16.mxu0 0
        %5269 = vmatmul.mubr.bf16.gmra.mrb[0].mxu0 %v4569
        %v5270 = vpop.f32.mrb[0].mxu0
        %v5271 = vadd.f32 0.0, %v5270
        %v5272 = vpop.f32.mrb[0].mxu0
        %v5273 = vpop.f32.mrb[0].mxu0
        %v5274 = vadd.f32 0.0, %v5273
        %v5275 = vpop.f32.mrb[0].mxu0
        %5276 = vmatprep.mubr.bf16.mxu0 0
        %5277 = vmatmul.mubr.bf16.gmra.mrb[0].mxu0 %v4570
        %v5278 = vpop.f32.mrb[0].mxu0
        %v5279 = vadd.f32 0.0, %v5278
        %v5280 = vpop.f32.mrb[0].mxu0
        %v5281 = vpop.f32.mrb[0].mxu0
        %v5282 = vadd.f32 0.0, %v5281
        %v5283 = vpop.f32.mrb[0].mxu0
        %5284 = vmatprep.mubr.bf16.mxu0 0
        %5285 = vmatmul.mubr.bf16.gmra.mrb[0].mxu0 %v4571
        %v5286 = vpop.f32.mrb[0].mxu0
        %v5287 = vadd.f32 0.0, %v5286
        %v5288 = vpop.f32.mrb[0].mxu0
        %v5289 = vpop.f32.mrb[0].mxu0
        %v5290 = vadd.f32 0.0, %v5289
        %v5291 = vpop.f32.mrb[0].mxu0
        %5292 = vmatprep.mubr.bf16.mxu0 0
        %5293 = vmatmul.mubr.bf16.gmra.mrb[0].mxu0 %v4572
        %v5294 = vpop.f32.mrb[0].mxu0
        %v5295 = vadd.f32 0.0, %v5294
        %v5296 = vpop.f32.mrb[0].mxu0
        %v5297 = vpop.f32.mrb[0].mxu0
        %v5298 = vadd.f32 0.0, %v5297
        %v5299 = vpop.f32.mrb[0].mxu0
        %5300 = vmatprep.mubr.bf16.mxu0 0
        %5301 = vmatmul.mubr.bf16.gmra.mrb[0].mxu0 %v4573
        %v5302 = vpop.f32.mrb[0].mxu0
        %v5303 = vadd.f32 0.0, %v5302
        %v5304 = vpop.f32.mrb[0].mxu0
        %v5305 = vpop.f32.mrb[0].mxu0
        %v5306 = vadd.f32 0.0, %v5305
        %v5307 = vpop.f32.mrb[0].mxu0
        %5308 = vmatprep.mubr.bf16.mxu0 0
        %5309 = vmatmul.mubr.bf16.gmra.mrb[0].mxu0 %v4574
        %v5310 = vpop.f32.mrb[0].mxu0
        %v5311 = vadd.f32 0.0, %v5310
        %v5312 = vpop.f32.mrb[0].mxu0
        %v5313 = vpop.f32.mrb[0].mxu0
        %v5314 = vadd.f32 0.0, %v5313
        %v5315 = vpop.f32.mrb[0].mxu0
        %5316 = vdwg.mxu0
        %v5317 = vadd.f32 %v4433, %v5191
        %v5318 = vadd.f32 %v4436, %v5194
        %v5319 = vadd.f32 %v4441, %v5199
        %v5320 = vadd.f32 %v4444, %v5202
        %v5321 = vadd.f32 %v4449, %v5207
        %v5322 = vadd.f32 %v4452, %v5210
        %v5323 = vadd.f32 %v4457, %v5215
        %v5324 = vadd.f32 %v4460, %v5218
        %v5325 = vadd.f32 %v4465, %v5223
        %v5326 = vadd.f32 %v4468, %v5226
        %v5327 = vadd.f32 %v4473, %v5231
        %v5328 = vadd.f32 %v4476, %v5234
        %v5329 = vadd.f32 %v4481, %v5239
        %v5330 = vadd.f32 %v4484, %v5242
        %v5331 = vadd.f32 %v4489, %v5247
        %v5332 = vadd.f32 %v4492, %v5250
        %v5333 = vadd.f32 %v4497, %v5255
        %v5334 = vadd.f32 %v4500, %v5258
        %v5335 = vadd.f32 %v4505, %v5263
        %v5336 = vadd.f32 %v4508, %v5266
        %v5337 = vadd.f32 %v4513, %v5271
        %v5338 = vadd.f32 %v4516, %v5274
        %v5339 = vadd.f32 %v4521, %v5279
        %v5340 = vadd.f32 %v4524, %v5282
        %v5341 = vadd.f32 %v4529, %v5287
        %v5342 = vadd.f32 %v4532, %v5290
        %v5343 = vadd.f32 %v4537, %v5295
        %v5344 = vadd.f32 %v4540, %v5298
        %v5345 = vadd.f32 %v4545, %v5303
        %v5346 = vadd.f32 %v4548, %v5306
        %v5347 = vadd.f32 %v4553, %v5311
        %v5348 = vadd.f32 %v4556, %v5314
        %v5381 = vrot.slane %v4801, 7
        %v5382 = vrot.slane %v4802, 7
        %v5383 = vsel %vm2462, %v5381, %v5382
        %v5384 = vrot.slane %v4803, 7
        %v5385 = vrot.slane %v4804, 7
        %v5386 = vsel %vm2462, %v5384, %v5385
        %v5387 = vrot.slane %v4805, 7
        %v5388 = vrot.slane %v4806, 7
        %v5389 = vsel %vm2462, %v5387, %v5388
        %v5390 = vrot.slane %v4807, 7
        %v5391 = vrot.slane %v4808, 7
        %v5392 = vsel %vm2462, %v5390, %v5391
        %v5393 = vrot.slane %v4809, 7
        %v5394 = vrot.slane %v4810, 7
        %v5395 = vsel %vm2462, %v5393, %v5394
        %v5396 = vrot.slane %v4811, 7
        %v5397 = vrot.slane %v4812, 7
        %v5398 = vsel %vm2462, %v5396, %v5397
        %v5399 = vrot.slane %v4813, 7
        %v5400 = vrot.slane %v4814, 7
        %v5401 = vsel %vm2462, %v5399, %v5400
        %v5402 = vrot.slane %v4815, 7
        %v5403 = vrot.slane %v4816, 7
        %v5404 = vsel %vm2462, %v5402, %v5403
        %v5405 = vrot.slane %v4817, 7
        %v5406 = vrot.slane %v4818, 7
        %v5407 = vsel %vm2462, %v5405, %v5406
        %v5408 = vrot.slane %v4819, 7
        %v5409 = vrot.slane %v4820, 7
        %v5410 = vsel %vm2462, %v5408, %v5409
        %v5411 = vrot.slane %v4821, 7
        %v5412 = vrot.slane %v4822, 7
        %v5413 = vsel %vm2462, %v5411, %v5412
        %v5414 = vrot.slane %v4823, 7
        %v5415 = vrot.slane %v4824, 7
        %v5416 = vsel %vm2462, %v5414, %v5415
        %v5417 = vrot.slane %v4825, 7
        %v5418 = vrot.slane %v4826, 7
        %v5419 = vsel %vm2462, %v5417, %v5418
        %v5420 = vrot.slane %v4827, 7
        %v5421 = vrot.slane %v4828, 7
        %v5422 = vsel %vm2462, %v5420, %v5421
        %v5423 = vrot.slane %v4829, 7
        %v5424 = vrot.slane %v4830, 7
        %v5425 = vsel %vm2462, %v5423, %v5424
        %v5426 = vrot.slane %v4831, 7
        %v5427 = vrot.slane %v4832, 7
        %v5428 = vsel %vm2462, %v5426, %v5427
        %v5461 = vsel %vm2462, 0.0, %v5381
        %v5462 = vsel %vm2462, 0.0, %v5384
        %v5463 = vsel %vm2462, 0.0, %v5387
        %v5464 = vsel %vm2462, 0.0, %v5390
        %v5465 = vsel %vm2462, 0.0, %v5393
        %v5466 = vsel %vm2462, 0.0, %v5396
        %v5467 = vsel %vm2462, 0.0, %v5399
        %v5468 = vsel %vm2462, 0.0, %v5402
        %v5469 = vsel %vm2462, 0.0, %v5405
        %v5470 = vsel %vm2462, 0.0, %v5408
        %v5471 = vsel %vm2462, 0.0, %v5411
        %v5472 = vsel %vm2462, 0.0, %v5414
        %v5473 = vsel %vm2462, 0.0, %v5417
        %v5474 = vsel %vm2462, 0.0, %v5420
        %v5475 = vsel %vm2462, 0.0, %v5423
        %v5476 = vsel %vm2462, 0.0, %v5426
        %v5477 = vadd.f32 %v5059, %v5461
        %v5478 = vadd.f32 %v5060, %v5383
        %v5479 = vadd.f32 %v5061, %v5462
        %v5480 = vadd.f32 %v5062, %v5386
        %v5481 = vadd.f32 %v5063, %v5463
        %v5482 = vadd.f32 %v5064, %v5389
        %v5483 = vadd.f32 %v5065, %v5464
        %v5484 = vadd.f32 %v5066, %v5392
        %v5485 = vadd.f32 %v5067, %v5465
        %v5486 = vadd.f32 %v5068, %v5395
        %v5487 = vadd.f32 %v5069, %v5466
        %v5488 = vadd.f32 %v5070, %v5398
        %v5489 = vadd.f32 %v5071, %v5467
        %v5490 = vadd.f32 %v5072, %v5401
        %v5491 = vadd.f32 %v5073, %v5468
        %v5492 = vadd.f32 %v5074, %v5404
        %v5493 = vadd.f32 %v5075, %v5469
        %v5494 = vadd.f32 %v5076, %v5407
        %v5495 = vadd.f32 %v5077, %v5470
        %v5496 = vadd.f32 %v5078, %v5410
        %v5497 = vadd.f32 %v5079, %v5471
        %v5498 = vadd.f32 %v5080, %v5413
        %v5499 = vadd.f32 %v5081, %v5472
        %v5500 = vadd.f32 %v5082, %v5416
        %v5501 = vadd.f32 %v5083, %v5473
        %v5502 = vadd.f32 %v5084, %v5419
        %v5503 = vadd.f32 %v5085, %v5474
        %v5504 = vadd.f32 %v5086, %v5422
        %v5505 = vadd.f32 %v5087, %v5475
        %v5506 = vadd.f32 %v5088, %v5425
        %v5507 = vadd.f32 %v5089, %v5476
        %v5508 = vadd.f32 %v5090, %v5428
        %v5541 = vrot.slane %v5317, 1
        %v5542 = vrot.slane %v5318, 1
        %v5543 = vsel %vm2623, %v5541, %v5542
        %v5544 = vrot.slane %v5319, 1
        %v5545 = vrot.slane %v5320, 1
        %v5546 = vsel %vm2623, %v5544, %v5545
        %v5547 = vrot.slane %v5321, 1
        %v5548 = vrot.slane %v5322, 1
        %v5549 = vsel %vm2623, %v5547, %v5548
        %v5550 = vrot.slane %v5323, 1
        %v5551 = vrot.slane %v5324, 1
        %v5552 = vsel %vm2623, %v5550, %v5551
        %v5553 = vrot.slane %v5325, 1
        %v5554 = vrot.slane %v5326, 1
        %v5555 = vsel %vm2623, %v5553, %v5554
        %v5556 = vrot.slane %v5327, 1
        %v5557 = vrot.slane %v5328, 1
        %v5558 = vsel %vm2623, %v5556, %v5557
        %v5559 = vrot.slane %v5329, 1
        %v5560 = vrot.slane %v5330, 1
        %v5561 = vsel %vm2623, %v5559, %v5560
        %v5562 = vrot.slane %v5331, 1
        %v5563 = vrot.slane %v5332, 1
        %v5564 = vsel %vm2623, %v5562, %v5563
        %v5565 = vrot.slane %v5333, 1
        %v5566 = vrot.slane %v5334, 1
        %v5567 = vsel %vm2623, %v5565, %v5566
        %v5568 = vrot.slane %v5335, 1
        %v5569 = vrot.slane %v5336, 1
        %v5570 = vsel %vm2623, %v5568, %v5569
        %v5571 = vrot.slane %v5337, 1
        %v5572 = vrot.slane %v5338, 1
        %v5573 = vsel %vm2623, %v5571, %v5572
        %v5574 = vrot.slane %v5339, 1
        %v5575 = vrot.slane %v5340, 1
        %v5576 = vsel %vm2623, %v5574, %v5575
        %v5577 = vrot.slane %v5341, 1
        %v5578 = vrot.slane %v5342, 1
        %v5579 = vsel %vm2623, %v5577, %v5578
        %v5580 = vrot.slane %v5343, 1
        %v5581 = vrot.slane %v5344, 1
        %v5582 = vsel %vm2623, %v5580, %v5581
        %v5583 = vrot.slane %v5345, 1
        %v5584 = vrot.slane %v5346, 1
        %v5585 = vsel %vm2623, %v5583, %v5584
        %v5586 = vrot.slane %v5347, 1
        %v5587 = vrot.slane %v5348, 1
        %v5588 = vsel %vm2623, %v5586, %v5587
        %v5621 = vsel %vm2623, %v5542, 0.0
        %v5622 = vsel %vm2623, %v5545, 0.0
        %v5623 = vsel %vm2623, %v5548, 0.0
        %v5624 = vsel %vm2623, %v5551, 0.0
        %v5625 = vsel %vm2623, %v5554, 0.0
        %v5626 = vsel %vm2623, %v5557, 0.0
        %v5627 = vsel %vm2623, %v5560, 0.0
        %v5628 = vsel %vm2623, %v5563, 0.0
        %v5629 = vsel %vm2623, %v5566, 0.0
        %v5630 = vsel %vm2623, %v5569, 0.0
        %v5631 = vsel %vm2623, %v5572, 0.0
        %v5632 = vsel %vm2623, %v5575, 0.0
        %v5633 = vsel %vm2623, %v5578, 0.0
        %v5634 = vsel %vm2623, %v5581, 0.0
        %v5635 = vsel %vm2623, %v5584, 0.0
        %v5636 = vsel %vm2623, %v5587, 0.0
        %v5637 = vadd.f32 %v5477, %v5543
        %v5638 = vadd.f32 %v5478, %v5621
        %v5639 = vadd.f32 %v5479, %v5546
        %v5640 = vadd.f32 %v5480, %v5622
        %v5641 = vadd.f32 %v5481, %v5549
        %v5642 = vadd.f32 %v5482, %v5623
        %v5643 = vadd.f32 %v5483, %v5552
        %v5644 = vadd.f32 %v5484, %v5624
        %v5645 = vadd.f32 %v5485, %v5555
        %v5646 = vadd.f32 %v5486, %v5625
        %v5647 = vadd.f32 %v5487, %v5558
        %v5648 = vadd.f32 %v5488, %v5626
        %v5649 = vadd.f32 %v5489, %v5561
        %v5650 = vadd.f32 %v5490, %v5627
        %v5651 = vadd.f32 %v5491, %v5564
        %v5652 = vadd.f32 %v5492, %v5628
        %v5653 = vadd.f32 %v5493, %v5567
        %v5654 = vadd.f32 %v5494, %v5629
        %v5655 = vadd.f32 %v5495, %v5570
        %v5656 = vadd.f32 %v5496, %v5630
        %v5657 = vadd.f32 %v5497, %v5573
        %v5658 = vadd.f32 %v5498, %v5631
        %v5659 = vadd.f32 %v5499, %v5576
        %v5660 = vadd.f32 %v5500, %v5632
        %v5661 = vadd.f32 %v5501, %v5579
        %v5662 = vadd.f32 %v5502, %v5633
        %v5663 = vadd.f32 %v5503, %v5582
        %v5664 = vadd.f32 %v5504, %v5634
        %v5665 = vadd.f32 %v5505, %v5585
        %v5666 = vadd.f32 %v5506, %v5635
        %v5667 = vadd.f32 %v5507, %v5588
        %v5668 = vadd.f32 %v5508, %v5636
        %v5669 = vmax.f32 %v5637, 0.0
        %v5670 = vmax.f32 %v5638, 0.0
        %v5671 = vmax.f32 %v5639, 0.0
        %v5672 = vmax.f32 %v5640, 0.0
        %v5673 = vmax.f32 %v5641, 0.0
        %v5674 = vmax.f32 %v5642, 0.0
        %v5675 = vmax.f32 %v5643, 0.0
        %v5676 = vmax.f32 %v5644, 0.0
        %v5677 = vmax.f32 %v5645, 0.0
        %v5678 = vmax.f32 %v5646, 0.0
        %v5679 = vmax.f32 %v5647, 0.0
        %v5680 = vmax.f32 %v5648, 0.0
        %v5681 = vmax.f32 %v5649, 0.0
        %v5682 = vmax.f32 %v5650, 0.0
        %v5683 = vmax.f32 %v5651, 0.0
        %v5684 = vmax.f32 %v5652, 0.0
        %v5685 = vmax.f32 %v5653, 0.0
        %v5686 = vmax.f32 %v5654, 0.0
        %v5687 = vmax.f32 %v5655, 0.0
        %v5688 = vmax.f32 %v5656, 0.0
        %v5689 = vmax.f32 %v5657, 0.0
        %v5690 = vmax.f32 %v5658, 0.0
        %v5691 = vmax.f32 %v5659, 0.0
        %v5692 = vmax.f32 %v5660, 0.0
        %v5693 = vmax.f32 %v5661, 0.0
        %v5694 = vmax.f32 %v5662, 0.0
        %v5695 = vmax.f32 %v5663, 0.0
        %v5696 = vmax.f32 %v5664, 0.0
        %v5697 = vmax.f32 %v5665, 0.0
        %v5698 = vmax.f32 %v5666, 0.0
        %v5699 = vmax.f32 %v5667, 0.0
        %v5700 = vmax.f32 %v5668, 0.0
        %v5701 = vpack.c.bf16 %v5670, %v5669
        %v5702 = vpack.c.bf16 %v5672, %v5671
        %v5703 = vpack.c.bf16 %v5674, %v5673
        %v5704 = vpack.c.bf16 %v5676, %v5675
        %v5705 = vpack.c.bf16 %v5678, %v5677
        %v5706 = vpack.c.bf16 %v5680, %v5679
        %v5707 = vpack.c.bf16 %v5682, %v5681
        %v5708 = vpack.c.bf16 %v5684, %v5683
        %v5709 = vpack.c.bf16 %v5686, %v5685
        %v5710 = vpack.c.bf16 %v5688, %v5687
        %v5711 = vpack.c.bf16 %v5690, %v5689
        %v5712 = vpack.c.bf16 %v5692, %v5691
        %v5713 = vpack.c.bf16 %v5694, %v5693
        %v5714 = vpack.c.bf16 %v5696, %v5695
        %v5715 = vpack.c.bf16 %v5698, %v5697
        %v5716 = vpack.c.bf16 %v5700, %v5699
        %s5717 = scalar_lea.vmem %s2, 16
        %v5718 = vld [vmem:[%s5717] sm:$0xf]
        %v5719 = vld [vmem:[%s5717 + $0x4] sm:$0xf]
        %v5720 = vld [vmem:[%s5717 + $0x8] sm:$0xf]
        %v5721 = vld [vmem:[%s5717 + $0xc] sm:$0xf]
        %v5726 = vunpack.c.l.b16 %v5718
        %v5727 = vunpack.c.l.b16 %v5719
        %v5728 = vunpack.c.l.b16 %v5720
        %v5729 = vunpack.c.l.b16 %v5721
        %v5730 = vpack.c.b16 %v5727, %v5726
        %v5731 = vpack.c.b16 %v5729, %v5728
        %v5735 = vsel %vm2816, %v5701, 0
        %v5738 = vsel %vm2816, %v5702, 0
        %v5741 = vsel %vm2816, %v5703, 0
        %v5744 = vsel %vm2816, %v5704, 0
        %v5747 = vsel %vm2816, %v5705, 0
        %v5750 = vsel %vm2816, %v5706, 0
        %v5753 = vsel %vm2816, %v5707, 0
        %v5756 = vsel %vm2816, %v5708, 0
        %v5759 = vsel %vm2816, %v5709, 0
        %v5762 = vsel %vm2816, %v5710, 0
        %v5765 = vsel %vm2816, %v5711, 0
        %v5768 = vsel %vm2816, %v5712, 0
        %v5771 = vsel %vm2816, %v5713, 0
        %v5774 = vsel %vm2816, %v5714, 0
        %v5777 = vsel %vm2816, %v5715, 0
        %v5780 = vsel %vm2816, %v5716, 0
        %5782 = vmatprep.subr.bf16.mxu0 0
        %5783 = vmatpush1.bf16.msra.mxu0 %v5730
        %5784 = vmatprep.subr.bf16.mxu0 0
        %5785 = vmatpush1.bf16.msra.mxu0 %v5731
        %5786 = vmatprep.subr.bf16.mxu0 0
        %5787 = vmatpush1.bf16.msra.mxu0 0
        %5788 = vmatprep.subr.bf16.mxu0 0
        %5789 = vmatpush1.bf16.msra.mxu0 0
        %5790 = vmatprep.subr.bf16.mxu0 0
        %5791 = vmatpush1.bf16.msra.mxu0 0
        %5792 = vmatprep.subr.bf16.mxu0 0
        %5793 = vmatpush1.bf16.msra.mxu0 0
        %5794 = vmatprep.subr.bf16.mxu0 0
        %5795 = vmatpush1.bf16.msra.mxu0 0
        %5796 = vmatprep.subr.bf16.mxu0 0
        %5797 = vmatpush1.bf16.msra.mxu0 0
        %5798 = vmatprep.subr.bf16.mxu0 0
        %5799 = vmatpush1.bf16.msra.mxu0 0
        %5800 = vmatprep.subr.bf16.mxu0 0
        %5801 = vmatpush1.bf16.msra.mxu0 0
        %5802 = vmatprep.subr.bf16.mxu0 0
        %5803 = vmatpush1.bf16.msra.mxu0 0
        %5804 = vmatprep.subr.bf16.mxu0 0
        %5805 = vmatpush1.bf16.msra.mxu0 0
        %5806 = vmatprep.subr.bf16.mxu0 0
        %5807 = vmatpush1.bf16.msra.mxu0 0
        %5808 = vmatprep.subr.bf16.mxu0 0
        %5809 = vmatpush1.bf16.msra.mxu0 0
        %5810 = vmatprep.subr.bf16.mxu0 0
        %5811 = vmatpush1.bf16.msra.mxu0 0
        %5812 = vmatprep.subr.bf16.mxu0 0
        %5813 = vmatpush1.bf16.msra.mxu0 0
        %5814 = vmatprep.mubr.bf16.mxu0 0
        %5815 = vmatmul.mubr.bf16.gmra.mrb[0].mxu0 %v5735
        %v5816 = vpop.f32.mrb[0].mxu0
        %v5817 = vadd.f32 0.0, %v5816
        %v5818 = vpop.f32.mrb[0].mxu0
        %v5819 = vpop.f32.mrb[0].mxu0
        %v5820 = vadd.f32 0.0, %v5819
        %v5821 = vpop.f32.mrb[0].mxu0
        %5822 = vmatprep.mubr.bf16.mxu0 0
        %5823 = vmatmul.mubr.bf16.gmra.mrb[0].mxu0 %v5738
        %v5824 = vpop.f32.mrb[0].mxu0
        %v5825 = vadd.f32 0.0, %v5824
        %v5826 = vpop.f32.mrb[0].mxu0
        %v5827 = vpop.f32.mrb[0].mxu0
        %v5828 = vadd.f32 0.0, %v5827
        %v5829 = vpop.f32.mrb[0].mxu0
        %5830 = vmatprep.mubr.bf16.mxu0 0
        %5831 = vmatmul.mubr.bf16.gmra.mrb[0].mxu0 %v5741
        %v5832 = vpop.f32.mrb[0].mxu0
        %v5833 = vadd.f32 0.0, %v5832
        %v5834 = vpop.f32.mrb[0].mxu0
        %v5835 = vpop.f32.mrb[0].mxu0
        %v5836 = vadd.f32 0.0, %v5835
        %v5837 = vpop.f32.mrb[0].mxu0
        %5838 = vmatprep.mubr.bf16.mxu0 0
        %5839 = vmatmul.mubr.bf16.gmra.mrb[0].mxu0 %v5744
        %v5840 = vpop.f32.mrb[0].mxu0
        %v5841 = vadd.f32 0.0, %v5840
        %v5842 = vpop.f32.mrb[0].mxu0
        %v5843 = vpop.f32.mrb[0].mxu0
        %v5844 = vadd.f32 0.0, %v5843
        %v5845 = vpop.f32.mrb[0].mxu0
        %5846 = vmatprep.mubr.bf16.mxu0 0
        %5847 = vmatmul.mubr.bf16.gmra.mrb[0].mxu0 %v5747
        %v5848 = vpop.f32.mrb[0].mxu0
        %v5849 = vadd.f32 0.0, %v5848
        %v5850 = vpop.f32.mrb[0].mxu0
        %v5851 = vpop.f32.mrb[0].mxu0
        %v5852 = vadd.f32 0.0, %v5851
        %v5853 = vpop.f32.mrb[0].mxu0
        %5854 = vmatprep.mubr.bf16.mxu0 0
        %5855 = vmatmul.mubr.bf16.gmra.mrb[0].mxu0 %v5750
        %v5856 = vpop.f32.mrb[0].mxu0
        %v5857 = vadd.f32 0.0, %v5856
        %v5858 = vpop.f32.mrb[0].mxu0
        %v5859 = vpop.f32.mrb[0].mxu0
        %v5860 = vadd.f32 0.0, %v5859
        %v5861 = vpop.f32.mrb[0].mxu0
        %5862 = vmatprep.mubr.bf16.mxu0 0
        %5863 = vmatmul.mubr.bf16.gmra.mrb[0].mxu0 %v5753
        %v5864 = vpop.f32.mrb[0].mxu0
        %v5865 = vadd.f32 0.0, %v5864
        %v5866 = vpop.f32.mrb[0].mxu0
        %v5867 = vpop.f32.mrb[0].mxu0
        %v5868 = vadd.f32 0.0, %v5867
        %v5869 = vpop.f32.mrb[0].mxu0
        %5870 = vmatprep.mubr.bf16.mxu0 0
        %5871 = vmatmul.mubr.bf16.gmra.mrb[0].mxu0 %v5756
        %v5872 = vpop.f32.mrb[0].mxu0
        %v5873 = vadd.f32 0.0, %v5872
        %v5874 = vpop.f32.mrb[0].mxu0
        %v5875 = vpop.f32.mrb[0].mxu0
        %v5876 = vadd.f32 0.0, %v5875
        %v5877 = vpop.f32.mrb[0].mxu0
        %5878 = vmatprep.mubr.bf16.mxu0 0
        %5879 = vmatmul.mubr.bf16.gmra.mrb[0].mxu0 %v5759
        %v5880 = vpop.f32.mrb[0].mxu0
        %v5881 = vadd.f32 0.0, %v5880
        %v5882 = vpop.f32.mrb[0].mxu0
        %v5883 = vpop.f32.mrb[0].mxu0
        %v5884 = vadd.f32 0.0, %v5883
        %v5885 = vpop.f32.mrb[0].mxu0
        %5886 = vmatprep.mubr.bf16.mxu0 0
        %5887 = vmatmul.mubr.bf16.gmra.mrb[0].mxu0 %v5762
        %v5888 = vpop.f32.mrb[0].mxu0
        %v5889 = vadd.f32 0.0, %v5888
        %v5890 = vpop.f32.mrb[0].mxu0
        %v5891 = vpop.f32.mrb[0].mxu0
        %v5892 = vadd.f32 0.0, %v5891
        %v5893 = vpop.f32.mrb[0].mxu0
        %5894 = vmatprep.mubr.bf16.mxu0 0
        %5895 = vmatmul.mubr.bf16.gmra.mrb[0].mxu0 %v5765
        %v5896 = vpop.f32.mrb[0].mxu0
        %v5897 = vadd.f32 0.0, %v5896
        %v5898 = vpop.f32.mrb[0].mxu0
        %v5899 = vpop.f32.mrb[0].mxu0
        %v5900 = vadd.f32 0.0, %v5899
        %v5901 = vpop.f32.mrb[0].mxu0
        %5902 = vmatprep.mubr.bf16.mxu0 0
        %5903 = vmatmul.mubr.bf16.gmra.mrb[0].mxu0 %v5768
        %v5904 = vpop.f32.mrb[0].mxu0
        %v5905 = vadd.f32 0.0, %v5904
        %v5906 = vpop.f32.mrb[0].mxu0
        %v5907 = vpop.f32.mrb[0].mxu0
        %v5908 = vadd.f32 0.0, %v5907
        %v5909 = vpop.f32.mrb[0].mxu0
        %5910 = vmatprep.mubr.bf16.mxu0 0
        %5911 = vmatmul.mubr.bf16.gmra.mrb[0].mxu0 %v5771
        %v5912 = vpop.f32.mrb[0].mxu0
        %v5913 = vadd.f32 0.0, %v5912
        %v5914 = vpop.f32.mrb[0].mxu0
        %v5915 = vpop.f32.mrb[0].mxu0
        %v5916 = vadd.f32 0.0, %v5915
        %v5917 = vpop.f32.mrb[0].mxu0
        %5918 = vmatprep.mubr.bf16.mxu0 0
        %5919 = vmatmul.mubr.bf16.gmra.mrb[0].mxu0 %v5774
        %v5920 = vpop.f32.mrb[0].mxu0
        %v5921 = vadd.f32 0.0, %v5920
        %v5922 = vpop.f32.mrb[0].mxu0
        %v5923 = vpop.f32.mrb[0].mxu0
        %v5924 = vadd.f32 0.0, %v5923
        %v5925 = vpop.f32.mrb[0].mxu0
        %5926 = vmatprep.mubr.bf16.mxu0 0
        %5927 = vmatmul.mubr.bf16.gmra.mrb[0].mxu0 %v5777
        %v5928 = vpop.f32.mrb[0].mxu0
        %v5929 = vadd.f32 0.0, %v5928
        %v5930 = vpop.f32.mrb[0].mxu0
        %v5931 = vpop.f32.mrb[0].mxu0
        %v5932 = vadd.f32 0.0, %v5931
        %v5933 = vpop.f32.mrb[0].mxu0
        %5934 = vmatprep.mubr.bf16.mxu0 0
        %5935 = vmatmul.mubr.bf16.gmra.mrb[0].mxu0 %v5780
        %v5936 = vpop.f32.mrb[0].mxu0
        %v5937 = vadd.f32 0.0, %v5936
        %v5938 = vpop.f32.mrb[0].mxu0
        %v5939 = vpop.f32.mrb[0].mxu0
        %v5940 = vadd.f32 0.0, %v5939
        %v5941 = vpop.f32.mrb[0].mxu0
        %5942 = vdwg.mxu0
        %v5943 = vadd.f32 %v3090, %v5817
        %v5944 = vadd.f32 %v3091, %v5820
        %v5945 = vadd.f32 %v3092, %v5825
        %v5946 = vadd.f32 %v3093, %v5828
        %v5947 = vadd.f32 %v3094, %v5833
        %v5948 = vadd.f32 %v3095, %v5836
        %v5949 = vadd.f32 %v3096, %v5841
        %v5950 = vadd.f32 %v3097, %v5844
        %v5951 = vadd.f32 %v3098, %v5849
        %v5952 = vadd.f32 %v3099, %v5852
        %v5953 = vadd.f32 %v3100, %v5857
        %v5954 = vadd.f32 %v3101, %v5860
        %v5955 = vadd.f32 %v3102, %v5865
        %v5956 = vadd.f32 %v3103, %v5868
        %v5957 = vadd.f32 %v3104, %v5873
        %v5958 = vadd.f32 %v3105, %v5876
        %v5959 = vadd.f32 %v3106, %v5881
        %v5960 = vadd.f32 %v3107, %v5884
        %v5961 = vadd.f32 %v3108, %v5889
        %v5962 = vadd.f32 %v3109, %v5892
        %v5963 = vadd.f32 %v3110, %v5897
        %v5964 = vadd.f32 %v3111, %v5900
        %v5965 = vadd.f32 %v3112, %v5905
        %v5966 = vadd.f32 %v3113, %v5908
        %v5967 = vadd.f32 %v3114, %v5913
        %v5968 = vadd.f32 %v3115, %v5916
        %v5969 = vadd.f32 %v3116, %v5921
        %v5970 = vadd.f32 %v3117, %v5924
        %v5971 = vadd.f32 %v3118, %v5929
        %v5972 = vadd.f32 %v3119, %v5932
        %v5973 = vadd.f32 %v3120, %v5937
        %v5974 = vadd.f32 %v3121, %v5940
        %v5975 = vmax.f32 %v5943, 0.0
        %v5976 = vmax.f32 %v5944, 0.0
        %v5977 = vmax.f32 %v5945, 0.0
        %v5978 = vmax.f32 %v5946, 0.0
        %v5979 = vmax.f32 %v5947, 0.0
        %v5980 = vmax.f32 %v5948, 0.0
        %v5981 = vmax.f32 %v5949, 0.0
        %v5982 = vmax.f32 %v5950, 0.0
        %v5983 = vmax.f32 %v5951, 0.0
        %v5984 = vmax.f32 %v5952, 0.0
        %v5985 = vmax.f32 %v5953, 0.0
        %v5986 = vmax.f32 %v5954, 0.0
        %v5987 = vmax.f32 %v5955, 0.0
        %v5988 = vmax.f32 %v5956, 0.0
        %v5989 = vmax.f32 %v5957, 0.0
        %v5990 = vmax.f32 %v5958, 0.0
        %v5991 = vmax.f32 %v5959, 0.0
        %v5992 = vmax.f32 %v5960, 0.0
        %v5993 = vmax.f32 %v5961, 0.0
        %v5994 = vmax.f32 %v5962, 0.0
        %v5995 = vmax.f32 %v5963, 0.0
        %v5996 = vmax.f32 %v5964, 0.0
        %v5997 = vmax.f32 %v5965, 0.0
        %v5998 = vmax.f32 %v5966, 0.0
        %v5999 = vmax.f32 %v5967, 0.0
        %v6000 = vmax.f32 %v5968, 0.0
        %v6001 = vmax.f32 %v5969, 0.0
        %v6002 = vmax.f32 %v5970, 0.0
        %v6003 = vmax.f32 %v5971, 0.0
        %v6004 = vmax.f32 %v5972, 0.0
        %v6005 = vmax.f32 %v5973, 0.0
        %v6006 = vmax.f32 %v5974, 0.0
        %6007 = vst [vmem:[%s163] sm:$0xff] %v5975
        %6008 = vst [vmem:[%s163 + $0x8] sm:$0xff] %v5976
        %6009 = vst [vmem:[%s163 + $0x10] sm:$0xff] %v5977
        %6010 = vst [vmem:[%s163 + $0x18] sm:$0xff] %v5978
        %6011 = vst [vmem:[%s163 + $0x20] sm:$0xff] %v5979
        %6012 = vst [vmem:[%s163 + $0x28] sm:$0xff] %v5980
        %6013 = vst [vmem:[%s163 + $0x30] sm:$0xff] %v5981
        %6014 = vst [vmem:[%s163 + $0x38] sm:$0xff] %v5982
        %6015 = vst [vmem:[%s163 + $0x40] sm:$0xff] %v5983
        %6016 = vst [vmem:[%s163 + $0x48] sm:$0xff] %v5984
        %6017 = vst [vmem:[%s163 + $0x50] sm:$0xff] %v5985
        %6018 = vst [vmem:[%s163 + $0x58] sm:$0xff] %v5986
        %6019 = vst [vmem:[%s163 + $0x60] sm:$0xff] %v5987
        %6020 = vst [vmem:[%s163 + $0x68] sm:$0xff] %v5988
        %6021 = vst [vmem:[%s163 + $0x70] sm:$0xff] %v5989
        %6022 = vst [vmem:[%s163 + $0x78] sm:$0xff] %v5990
        %6023 = vst [vmem:[%s163 + $0x80] sm:$0xff] %v5991
        %6024 = vst [vmem:[%s163 + $0x88] sm:$0xff] %v5992
        %6025 = vst [vmem:[%s163 + $0x90] sm:$0xff] %v5993
        %6026 = vst [vmem:[%s163 + $0x98] sm:$0xff] %v5994
        %6027 = vst [vmem:[%s163 + $0xa0] sm:$0xff] %v5995
        %6028 = vst [vmem:[%s163 + $0xa8] sm:$0xff] %v5996
        %6029 = vst [vmem:[%s163 + $0xb0] sm:$0xff] %v5997
        %6030 = vst [vmem:[%s163 + $0xb8] sm:$0xff] %v5998
        %6031 = vst [vmem:[%s163 + $0xc0] sm:$0xff] %v5999
        %6032 = vst [vmem:[%s163 + $0xc8] sm:$0xff] %v6000
        %6033 = vst [vmem:[%s163 + $0xd0] sm:$0xff] %v6001
        %6034 = vst [vmem:[%s163 + $0xd8] sm:$0xff] %v6002
        %6035 = vst [vmem:[%s163 + $0xe0] sm:$0xff] %v6003
        %6036 = vst [vmem:[%s163 + $0xe8] sm:$0xff] %v6004
        %6037 = vst [vmem:[%s163 + $0xf0] sm:$0xff] %v6005
        %6038 = vst [vmem:[%s163 + $0xf8] sm:$0xff] %v6006
        %s6039 = sand.u32 %s93, 1
        %s6040 = scalar_lea.sflag [#allocation4], %s6039
        %s6041 = sand.u32 %s93, 1
        %s6042 = smul.addr %s6041, 256
        %s6043 = scalar_lea.vmem [#allocation3], %s6042
        // Predicated region
        $region33: #{tpu_custom_call.1} parent=31 // pred_check
          %p6044 = pneg %p103
        $region34: #{tpu_custom_call.1} parent=31 // pred_check_branch
          %6046 = sbr.rel (%p6044) target = $region36
        $region35: #{tpu_custom_call.1} parent=31 // pred_region
          %s6048 = ssub.s32 4096, 4096
          %6049 = vsyncadd %s6040, %s6048
          %s6050 = smul.addr %s17, 32
          %s6051 = smul.addr %s6050, 128
          %s6052 = scalar_lea.hbm %s3, %s6051
          %s6053 = sshll.u32 %s6043, 4
          %s6054 = int_to_ptr.vmem [resolvable:$true] %s6053
          %6059 = dma.vmem_to_hbm [thread:$0]  %s6054, 4096, %s6052, %s6040, 128, 128, 8
        $region36: #{tpu_custom_call.1} parent=31 // pred_fallthru
          _
      $region32: #{tpu_custom_call.1} parent=5 // pred_fallthru
        _
      %p6060 = scmp.le.s32.totalorder 2, %s12
      // Predicated region
      $region37: #{tpu_custom_call.1} parent=5 // pred_check
        %p6061 = pneg %p6060
      $region38: #{tpu_custom_call.1} parent=5 // pred_check_branch
        %6063 = sbr.rel (%p6061) target = $region40
      $region39: #{tpu_custom_call.1} parent=5 // pred_region
        %s6064 = ssub.s32 %s12, 2
        // Predicated region
        $region41: #{tpu_custom_call.1} parent=39 // pred_check
          %p6065 = pneg %p109
        $region42: #{tpu_custom_call.1} parent=39 // pred_check_branch
          %6067 = sbr.rel (%p6065) target = $region44
        $region43: #{tpu_custom_call.1} parent=39 // pred_region
          %s6068 = sand.u32 %s94, 1
          %s6069 = scalar_lea.sflag [#allocation4], %s6068
          %s6070 = sand.u32 %s94, 1
          %s6071 = smul.addr %s6070, 256
          %s6072 = scalar_lea.vmem [#allocation3], %s6071
          %6073 = dma.done %s6069, 4096
        $region44: #{tpu_custom_call.1} parent=39 // pred_fallthru
          _
      $region40: #{tpu_custom_call.1} parent=5 // pred_fallthru
        _
    $region6: #{tpu_custom_call.1} parent=1 // loop_footer
      %s16 = sadd.s32 1, %s12
    $region7: #{tpu_custom_call.1} parent=1 // loop_footer_branch
      %11 = sbr.rel target = $region3
    $region8: #{tpu_custom_call.1} parent=1 // loop_exit
      _
    %6074 = vsyncpa [#allocation4], 1
    %s6075 = scalar_lea.sflag [#allocation4], 1
    %6076 = vsyncpa %s6075, 1

</llo_original>
